<compile_context>
chip_gen: v7x
topology: tpu7x:2x2x1
jax: 0.10.0
libtpu: 0.0.40
codegen_flags: <defaults>
</compile_context>

<pallas_src>
import jax
import jax.numpy as jnp
from jax import lax
from jax.experimental import pallas as pl
from jax.experimental.pallas import tpu as pltpu


# ---------------------------------------------------------------------------
# geometry of the fused kernel (toy VGG-analog sizes, see init_params)
# ---------------------------------------------------------------------------
C = 128          # lane-padded channel / feature width
H1 = W1 = 16     # input spatial size
N_COL = 256      # im2col rows per image (= 16*16), pool-window-grouped order
WP2 = 16         # row stride of the padded conv2 input layout
N_P2 = 176       # rows of the padded conv2 input scratch (11 rows-of-16)
P2_BASE = 32     # first real data row in the conv2 scratch (2 halo rows-of-16)
L2 = 120         # conv2 output rows computed per image (row = 16*h + w, h,w<8)
N_HEAD = 16      # valid pooled rows fed to the 1x1 head (4x4 spatial)


# ---------------------------------------------------------------------------
# the fused Pallas kernel (one block of images per grid step)
# ---------------------------------------------------------------------------
def _cnn_fused_kernel(x_ref, w1_ref, w2_ref, w3_ref, wc2_ref, wy_ref, b_ref,
                      y_ref, ff_ref, p2_ref, s2_ref):
    f32, bf16 = jnp.float32, jnp.bfloat16
    n_img = x_ref.shape[0]

    # hoist loop-invariant weight / bias loads
    w1 = w1_ref[...]
    w3 = w3_ref[...]
    wc2 = wc2_ref[...]
    wy = wy_ref[...]
    b1r, b2r, b3r = b_ref[0:1, :], b_ref[1:2, :], b_ref[2:3, :]
    bc2r, byr = b_ref[3:4, :], b_ref[4:5, :]
    zero8 = jnp.zeros((8, C), bf16)

    for img in range(n_img):
        # -- conv1 (single im2col matmul) fused with maxpool1 -----------------
        # input rows are ordered r = k*64 + (8*ho + wo), k = position inside
        # the 2x2 pool window, so pool1 is a running max over 4 contiguous
        # 64-row groups and the accumulator stays at 8 fp32 vregs.
        m1 = None
        for k in range(4):
            hk = jnp.dot(x_ref[img, pl.ds(64 * k, 64), :], w1,
                         preferred_element_type=f32)
            hk = jnp.maximum(hk + b1r, 0.0)
            m1 = hk if m1 is None else jnp.maximum(m1, hk)

        # -- scatter the pooled 8x8 map into the zero-padded conv2 layout -----
        # layout row = (h+2)*16 + w; columns 8..15 of every data row and the
        # top/bottom halo rows stay zero = conv2's SAME padding.  (Zeroed every
        # step: cheap, and correct under any grid-to-core partitioning.)
        p2_ref[pl.ds(0, P2_BASE), :] = jnp.zeros((P2_BASE, C), bf16)
        p2_ref[pl.ds(P2_BASE + 8 * WP2, 16), :] = jnp.zeros((16, C), bf16)
        for ho in range(8):
            p2_ref[pl.ds(P2_BASE + WP2 * ho, 16), :] = jnp.concatenate(
                [m1[8 * ho:8 * ho + 8, :].astype(bf16), zero8], axis=0)

        # -- conv2: 3x3 direct form, 9 shifted windows, 15-vreg accumulator ---
        acc2 = jnp.zeros((L2, C), f32)
        for ki in range(3):
            for kj in range(3):
                win = p2_ref[pl.ds(P2_BASE + (ki - 1) * WP2 + (kj - 1), L2), :]
                acc2 = acc2 + jnp.dot(win, w2_ref[3 * ki + kj],
                                      preferred_element_type=f32)
        s2_ref[...] = jnp.maximum(acc2 + b2r, 0.0)

        # -- maxpool2 restricted to the 16 valid head rows ---------------------
        # conv2 output (h, w) sits at s2 row 16*h + w; pooled value for head
        # position (ho, wo) = max over rows 32*ho + 2*wo + {0, 1, 16, 17}.
        rows = []
        for ho2 in range(4):
            base = 32 * ho2
            v = jnp.maximum(
                jnp.maximum(s2_ref[pl.ds(base + 0, 4, stride=2), :],
                            s2_ref[pl.ds(base + 1, 4, stride=2), :]),
                jnp.maximum(s2_ref[pl.ds(base + 16, 4, stride=2), :],
                            s2_ref[pl.ds(base + 17, 4, stride=2), :]))
            rows.append(v)                                       # (4, 128)
        m2 = jnp.concatenate(rows, axis=0).astype(bf16)          # (16, 128)

        # -- 1x1 head on the 16 valid rows only --------------------------------
        f = jnp.maximum(jnp.dot(m2, w3, preferred_element_type=f32) + b3r, 0.0)
        fb = f.astype(bf16)
        ff_ref[img] = jnp.dot(fb, wc2, preferred_element_type=f32) + bc2r
        # VGG classifier folded into classifier2 at trace time (wy = Wc2 @ Wcls)
        y_ref[img] = jnp.dot(fb, wy, preferred_element_type=f32) + byr


def _imgs_per_step(batch):
    # Block the batch axis (amortize per-grid-step overhead, bigger MXU LHS)
    # while keeping >= 2 grid steps so a 2-TensorCore chip can split the work.
    for ips in (8, 4, 2):
        if batch % ips == 0 and batch // ips >= 2:
            return ips
    return 1


def _dim_semantics():
    kind = ""
    try:
        kind = jax.devices()[0].device_kind.lower()
    except Exception:
        pass
    if "7" in kind:   # v7x: 2 TensorCores/chip -> shard grid steps across them
        return (getattr(pltpu, "CORE_PARALLEL", "parallel"),)
    return ("parallel",)


def _fused_forward_pallas(x_col, w1p, w2p, w3p, wc2p, wyp, bias):
    B = x_col.shape[0]
    ips = _imgs_per_step(B)
    return pl.pallas_call(
        _cnn_fused_kernel,
        out_shape=(jax.ShapeDtypeStruct((B, N_HEAD, C), jnp.float32),   # y
                   jax.ShapeDtypeStruct((B, N_HEAD, C), jnp.float32)),  # ff
        grid_spec=pltpu.PrefetchScalarGridSpec(
            num_scalar_prefetch=0,
            grid=(B // ips,),
            in_specs=[
                pl.BlockSpec((ips, N_COL, C), lambda b: (b, 0, 0)),  # im2col in
                pl.BlockSpec((C, C), lambda b: (0, 0)),              # w1 packed
                pl.BlockSpec((9, C, C), lambda b: (0, 0, 0)),        # w2 taps
                pl.BlockSpec((C, C), lambda b: (0, 0)),              # w3 ("fc")
                pl.BlockSpec((C, C), lambda b: (0, 0)),              # classifier2
                pl.BlockSpec((C, C), lambda b: (0, 0)),              # folded cls
                pl.BlockSpec((8, C), lambda b: (0, 0)),              # biases
            ],
            out_specs=[
                pl.BlockSpec((ips, N_HEAD, C), lambda b: (b, 0, 0)),
                pl.BlockSpec((ips, N_HEAD, C), lambda b: (b, 0, 0)),
            ],
            scratch_shapes=[
                pltpu.VMEM((N_P2, C), jnp.bfloat16),  # zero-padded conv2 input
                pltpu.VMEM((L2, C), jnp.float32),     # conv2 output (for pool2)
            ]),
        compiler_params=pltpu.CompilerParams(
            dimension_semantics=_dim_semantics()),
    )(x_col, w1p, w2p, w3p, wc2p, wyp, bias)


# ---------------------------------------------------------------------------
# trace-time packing of inputs / weights into lane-dense, zero-padded layouts
# ---------------------------------------------------------------------------
def _pack_mat(m):
    """(cin, cout) fp32 matrix -> (128, 128) bf16, zero-padded."""
    ci, co = m.shape
    return jnp.pad(m, ((0, C - ci), (0, C - co))).astype(jnp.bfloat16)


def _pack_w1_im2col(w):
    """conv1 (Cout, Cin, 3, 3) -> (128, 128) bf16, row index = (3*ki+kj)*Cin + c."""
    co, ci = w.shape[0], w.shape[1]
    wt = jnp.transpose(w, (2, 3, 1, 0)).reshape(9 * ci, co)
    return _pack_mat(wt)


def _pack_conv3x3(w):
    """(Cout, Cin, 3, 3) -> (9, 128, 128) bf16, layout [tap, cin, cout]."""
    co, ci = w.shape[0], w.shape[1]
    wt = jnp.transpose(w, (2, 3, 1, 0)).reshape(9, ci, co)
    return jnp.pad(wt, ((0, 0), (0, C - ci), (0, C - co))).astype(jnp.bfloat16)


def _pack_conv1x1(w):
    """(Cout, Cin, 1, 1) -> (128, 128) bf16, layout [cin, cout]."""
    co, ci = w.shape[0], w.shape[1]
    return _pack_mat(jnp.transpose(w.reshape(co, ci), (1, 0)))


def _pack_biases(bs):
    """5 bias vectors -> one (8, 128) fp32 block (one full vreg)."""
    rows = [jnp.pad(b.astype(jnp.float32), (0, C - b.shape[0])) for b in bs]
    rows += [jnp.zeros((C,), jnp.float32)] * (8 - len(rows))
    return jnp.stack(rows, axis=0)


def _prep_input(x_nchw):
    """(B, 3, 16, 16) NCHW -> (B, 256, 128) bf16 im2col, pool-window-grouped.

    Row r = (2*di + dj)*64 + 8*ho + wo corresponds to conv1 output position
    (2*ho + di, 2*wo + dj); lane l = (3*ki + kj)*Cin + c holds the input value
    at (h + ki - 1, w + kj - 1, c) with SAME zero padding.
    """
    B, cin, H, W = x_nchw.shape
    x = jnp.transpose(x_nchw, (0, 2, 3, 1))                       # NHWC
    xp = jnp.pad(x, ((0, 0), (1, 1), (1, 1), (0, 0)))
    cols = [xp[:, ki:ki + H, kj:kj + W, :] for ki in range(3) for kj in range(3)]
    col = jnp.concatenate(cols, axis=-1)                          # (B,16,16,9*cin)
    col = col.reshape(B, H // 2, 2, W // 2, 2, 9 * cin)
    col = jnp.transpose(col, (0, 2, 4, 1, 3, 5)).reshape(B, H * W, 9 * cin)
    col = jnp.pad(col, ((0, 0), (0, 0), (0, C - 9 * cin)))
    return col.astype(jnp.bfloat16)


# ---------------------------------------------------------------------------
# cnn_model forward
# ---------------------------------------------------------------------------
def cnn_model_forward(params, x_nchw):
    B = x_nchw.shape[0]
    bit = params["w_c2"].shape[0]
    ncls = params["w_cls"].shape[0]

    # fold the VGG classifier (1x1) into classifier2 at trace time:
    #   y = f @ (Wc2 @ Wcls) + (b_c2 @ Wcls + b_cls)
    wc2_mat = jnp.transpose(params["w_c2"].reshape(bit, -1), (1, 0))      # (F, bit)
    wcls_mat = jnp.transpose(params["w_cls"].reshape(ncls, bit), (1, 0))  # (bit, ncls)
    wy_mat = wc2_mat @ wcls_mat                                           # (F, ncls)
    by = params["b_c2"] @ wcls_mat + params["b_cls"]

    y_pad, ff_pad = _fused_forward_pallas(
        _prep_input(x_nchw),
        _pack_w1_im2col(params["w1"]),
        _pack_conv3x3(params["w2"]),
        _pack_conv1x1(params["w3"]),
        _pack_conv1x1(params["w_c2"]),
        _pack_mat(wy_mat),
        _pack_biases([params["b1"], params["b2"], params["b3"],
                      params["b_c2"], by]))

    # head rows are already exactly the 4x4 valid positions (row = 4*ho + wo)
    ff = ff_pad[:, :, :bit].reshape(B, 4, 4, bit)
    y = y_pad[:, :, :ncls].reshape(B, 4, 4, ncls)
    ff_nchw = jnp.transpose(ff, (0, 3, 1, 2))
    y_nchw = jnp.transpose(y, (0, 3, 1, 2))
    return y_nchw.reshape(B, -1), ff_nchw                # matches torch view(B,-1)


# ---------------------------------------------------------------------------
# pure-JAX (XLA) reference of the same forward, for a numeric cross-check
# ---------------------------------------------------------------------------
def _reference_forward(params, x_nchw):
    def conv2d(x_nhwc, w, b):
        out = lax.conv_general_dilated(
            x_nhwc, jnp.transpose(w, (2, 3, 1, 0)),
            window_strides=(1, 1), padding="SAME",
            dimension_numbers=("NHWC", "HWIO", "NHWC"))
        return out + b

    def pool(x_nhwc):
        return lax.reduce_window(x_nhwc, -jnp.inf, lax.max,
                                 (1, 2, 2, 1), (1, 2, 2, 1), "VALID")

    x = jnp.transpose(x_nchw, (0, 2, 3, 1))
    h = pool(jax.nn.relu(conv2d(x, params["w1"], params["b1"])))
    h = pool(jax.nn.relu(conv2d(h, params["w2"], params["b2"])))
    f = jax.nn.relu(conv2d(h, params["w3"], params["b3"]))
    ff = conv2d(f, params["w_c2"], params["b_c2"])
    y = conv2d(ff, params["w_cls"], params["b_cls"])
    ff_nchw = jnp.transpose(ff, (0, 3, 1, 2))
    y_nchw = jnp.transpose(y, (0, 3, 1, 2))
    return y_nchw.reshape(y_nchw.shape[0], -1), ff_nchw


# ---------------------------------------------------------------------------
# parameters (scaled-down stand-in for the unavailable vgg16_rf weights)
# ---------------------------------------------------------------------------
def init_params(key):
    ks = jax.random.split(key, 5)

    def conv_init(k, cout, cin, kh, kwd):
        fan_in = cin * kh * kwd
        k_w, k_b = jax.random.split(k)
        w = jax.random.normal(k_w, (cout, cin, kh, kwd), jnp.float32) / jnp.sqrt(fan_in)
        b = 0.01 * jax.random.normal(k_b, (cout,), jnp.float32)
        return w, b

    w1, b1 = conv_init(ks[0], 8, 3, 3, 3)          # conv block 1
    w2, b2 = conv_init(ks[1], 16, 8, 3, 3)         # conv block 2
    w3, b3 = conv_init(ks[2], 32, 16, 1, 1)        # fully-conv "fc" (4096 analog -> 32)
    w_c2, b_c2 = conv_init(ks[3], 12, 32, 1, 1)    # classifier2: Conv2d(F, bit=12, 1)
    w_cls, b_cls = conv_init(ks[4], 10, 12, 1, 1)  # classifier: Conv2d(bit, 10, 1)
    return dict(w1=w1, b1=b1, w2=w2, b2=b2, w3=w3, b3=b3,
                w_c2=w_c2, b_c2=b_c2, w_cls=w_cls, b_cls=b_cls)


if __name__ == "__main__":
    key = jax.random.PRNGKey(0)
    pkey, xkey = jax.random.split(key)
    params = init_params(pkey)

    # NCHW input, like PyTorch: batch=2, 3 channels, 16x16 spatial
    x = jax.random.normal(xkey, (2, 3, 16, 16), jnp.float32)

    y, ff = jax.jit(cnn_model_forward)(params, x)
    jax.block_until_ready((y, ff))

    assert y.shape == (2, 10 * 4 * 4), y.shape        # flattened class scores
    assert ff.shape == (2, 12, 4, 4), ff.shape        # hash feature map (NCHW)
    assert bool(jnp.all(jnp.isfinite(y))) and bool(jnp.all(jnp.isfinite(ff)))

    # numeric cross-check against the pure-JAX reference (loose tolerance: the
    # Pallas path uses bf16 MXU operands with fp32 accumulation)
    y_ref, ff_ref = jax.jit(_reference_forward)(params, x)
    assert float(jnp.max(jnp.abs(y - y_ref))) < 0.25
    assert float(jnp.max(jnp.abs(ff - ff_ref))) < 0.25

    print("KERNEL_OK")
</pallas_src>

<mosaic_0001>
module attributes {stable_mosaic.version = 11 : i64} {
  func.func @_cnn_fused_kernel(%arg0: i32, %arg1: memref<1x256x128xbf16, #tpu.memory_space<vmem>>, %arg2: memref<128x128xbf16, #tpu.memory_space<vmem>>, %arg3: memref<9x128x128xbf16, #tpu.memory_space<vmem>>, %arg4: memref<128x128xbf16, #tpu.memory_space<vmem>>, %arg5: memref<128x128xbf16, #tpu.memory_space<vmem>>, %arg6: memref<128x128xbf16, #tpu.memory_space<vmem>>, %arg7: memref<8x128xf32, #tpu.memory_space<vmem>>, %arg8: memref<1x16x128xf32, #tpu.memory_space<vmem>>, %arg9: memref<1x16x128xf32, #tpu.memory_space<vmem>>, %arg10: memref<176x128xbf16, #tpu.memory_space<vmem>>, %arg11: memref<120x128xf32, #tpu.memory_space<vmem>>) attributes {dimension_semantics = [#tpu.dimension_semantics<parallel>], iteration_bounds = array<i64: 2>, scalar_prefetch = 0 : i64, scratch_operands = 2 : i64, tpu.core_type = #tpu.core_type<tc>, window_params = [{transform_indices = @transform_0, window_bounds = array<i64: 1, 256, 128>}, {pipeline_mode = #tpu.pipeline_mode<synchronous>, transform_indices = @transform_1, window_bounds = array<i64: 128, 128>}, {pipeline_mode = #tpu.pipeline_mode<synchronous>, transform_indices = @transform_2, window_bounds = array<i64: 9, 128, 128>}, {pipeline_mode = #tpu.pipeline_mode<synchronous>, transform_indices = @transform_3, window_bounds = array<i64: 128, 128>}, {pipeline_mode = #tpu.pipeline_mode<synchronous>, transform_indices = @transform_4, window_bounds = array<i64: 128, 128>}, {pipeline_mode = #tpu.pipeline_mode<synchronous>, transform_indices = @transform_5, window_bounds = array<i64: 128, 128>}, {pipeline_mode = #tpu.pipeline_mode<synchronous>, transform_indices = @transform_6, window_bounds = array<i64: 8, 128>}, {transform_indices = @transform_7, window_bounds = array<i64: 1, 16, 128>}, {transform_indices = @transform_8, window_bounds = array<i64: 1, 16, 128>}]} {
    %c0 = arith.constant 0 : index
    %c0_0 = arith.constant 0 : index
    %0 = vector.load %arg2[%c0, %c0_0] : memref<128x128xbf16, #tpu.memory_space<vmem>>, vector<128x128xbf16>
    %c0_1 = arith.constant 0 : index
    %c0_2 = arith.constant 0 : index
    %1 = vector.load %arg4[%c0_1, %c0_2] : memref<128x128xbf16, #tpu.memory_space<vmem>>, vector<128x128xbf16>
    %c0_3 = arith.constant 0 : index
    %c0_4 = arith.constant 0 : index
    %2 = vector.load %arg5[%c0_3, %c0_4] : memref<128x128xbf16, #tpu.memory_space<vmem>>, vector<128x128xbf16>
    %c0_5 = arith.constant 0 : index
    %c0_6 = arith.constant 0 : index
    %3 = vector.load %arg6[%c0_5, %c0_6] : memref<128x128xbf16, #tpu.memory_space<vmem>>, vector<128x128xbf16>
    %c0_7 = arith.constant 0 : index
    %c0_8 = arith.constant 0 : index
    %4 = vector.load %arg7[%c0_7, %c0_8] : memref<8x128xf32, #tpu.memory_space<vmem>>, vector<1x128xf32>
    %c1 = arith.constant 1 : index
    %c0_9 = arith.constant 0 : index
    %5 = vector.load %arg7[%c1, %c0_9] : memref<8x128xf32, #tpu.memory_space<vmem>>, vector<1x128xf32>
    %c2 = arith.constant 2 : index
    %c0_10 = arith.constant 0 : index
    %6 = vector.load %arg7[%c2, %c0_10] : memref<8x128xf32, #tpu.memory_space<vmem>>, vector<1x128xf32>
    %c3 = arith.constant 3 : index
    %c0_11 = arith.constant 0 : index
    %7 = vector.load %arg7[%c3, %c0_11] : memref<8x128xf32, #tpu.memory_space<vmem>>, vector<1x128xf32>
    %c4 = arith.constant 4 : index
    %c0_12 = arith.constant 0 : index
    %8 = vector.load %arg7[%c4, %c0_12] : memref<8x128xf32, #tpu.memory_space<vmem>>, vector<1x128xf32>
    %cst = arith.constant 0.000000e+00 : bf16
    %9 = vector.broadcast %cst : bf16 to vector<8x128xbf16>
    %c0_13 = arith.constant 0 : index
    %c0_14 = arith.constant 0 : index
    %c0_15 = arith.constant 0 : index
    %10 = vector.load %arg1[%c0_13, %c0_14, %c0_15] : memref<1x256x128xbf16, #tpu.memory_space<vmem>>, vector<1x64x128xbf16>
    %11 = vector.shape_cast %10 : vector<1x64x128xbf16> to vector<64x128xbf16>
    %cst_16 = arith.constant dense<0.000000e+00> : vector<64x128xf32>
    %12 = tpu.matmul %11, %0, %cst_16 {dimension_numbers = #tpu.dot_dimension_numbers<[1], [0], [0], [1], [0, 0, 1, 1], [], []>} : vector<64x128xbf16>, vector<128x128xbf16>, vector<64x128xf32> -> vector<64x128xf32>
    %13 = vector.broadcast %4 : vector<1x128xf32> to vector<64x128xf32>
    %14 = arith.addf %12, %13 : vector<64x128xf32>
    %cst_17 = arith.constant 0.000000e+00 : f32
    %15 = vector.broadcast %cst_17 : f32 to vector<64x128xf32>
    %16 = arith.maximumf %14, %15 : vector<64x128xf32>
    %c0_18 = arith.constant 0 : index
    %c64 = arith.constant 64 : index
    %c0_19 = arith.constant 0 : index
    %17 = vector.load %arg1[%c0_18, %c64, %c0_19] : memref<1x256x128xbf16, #tpu.memory_space<vmem>>, vector<1x64x128xbf16>
    %18 = vector.shape_cast %17 : vector<1x64x128xbf16> to vector<64x128xbf16>
    %cst_20 = arith.constant dense<0.000000e+00> : vector<64x128xf32>
    %19 = tpu.matmul %18, %0, %cst_20 {dimension_numbers = #tpu.dot_dimension_numbers<[1], [0], [0], [1], [0, 0, 1, 1], [], []>} : vector<64x128xbf16>, vector<128x128xbf16>, vector<64x128xf32> -> vector<64x128xf32>
    %20 = vector.broadcast %4 : vector<1x128xf32> to vector<64x128xf32>
    %21 = arith.addf %19, %20 : vector<64x128xf32>
    %cst_21 = arith.constant 0.000000e+00 : f32
    %22 = vector.broadcast %cst_21 : f32 to vector<64x128xf32>
    %23 = arith.maximumf %21, %22 : vector<64x128xf32>
    %24 = arith.maximumf %16, %23 : vector<64x128xf32>
    %c0_22 = arith.constant 0 : index
    %c128 = arith.constant 128 : index
    %c0_23 = arith.constant 0 : index
    %25 = vector.load %arg1[%c0_22, %c128, %c0_23] : memref<1x256x128xbf16, #tpu.memory_space<vmem>>, vector<1x64x128xbf16>
    %26 = vector.shape_cast %25 : vector<1x64x128xbf16> to vector<64x128xbf16>
    %cst_24 = arith.constant dense<0.000000e+00> : vector<64x128xf32>
    %27 = tpu.matmul %26, %0, %cst_24 {dimension_numbers = #tpu.dot_dimension_numbers<[1], [0], [0], [1], [0, 0, 1, 1], [], []>} : vector<64x128xbf16>, vector<128x128xbf16>, vector<64x128xf32> -> vector<64x128xf32>
    %28 = vector.broadcast %4 : vector<1x128xf32> to vector<64x128xf32>
    %29 = arith.addf %27, %28 : vector<64x128xf32>
    %cst_25 = arith.constant 0.000000e+00 : f32
    %30 = vector.broadcast %cst_25 : f32 to vector<64x128xf32>
    %31 = arith.maximumf %29, %30 : vector<64x128xf32>
    %32 = arith.maximumf %24, %31 : vector<64x128xf32>
    %c0_26 = arith.constant 0 : index
    %c192 = arith.constant 192 : index
    %c0_27 = arith.constant 0 : index
    %33 = vector.load %arg1[%c0_26, %c192, %c0_27] : memref<1x256x128xbf16, #tpu.memory_space<vmem>>, vector<1x64x128xbf16>
    %34 = vector.shape_cast %33 : vector<1x64x128xbf16> to vector<64x128xbf16>
    %cst_28 = arith.constant dense<0.000000e+00> : vector<64x128xf32>
    %35 = tpu.matmul %34, %0, %cst_28 {dimension_numbers = #tpu.dot_dimension_numbers<[1], [0], [0], [1], [0, 0, 1, 1], [], []>} : vector<64x128xbf16>, vector<128x128xbf16>, vector<64x128xf32> -> vector<64x128xf32>
    %36 = vector.broadcast %4 : vector<1x128xf32> to vector<64x128xf32>
    %37 = arith.addf %35, %36 : vector<64x128xf32>
    %cst_29 = arith.constant 0.000000e+00 : f32
    %38 = vector.broadcast %cst_29 : f32 to vector<64x128xf32>
    %39 = arith.maximumf %37, %38 : vector<64x128xf32>
    %40 = arith.maximumf %32, %39 : vector<64x128xf32>
    %cst_30 = arith.constant 0.000000e+00 : bf16
    %41 = vector.broadcast %cst_30 : bf16 to vector<32x128xbf16>
    %c0_31 = arith.constant 0 : index
    %c0_32 = arith.constant 0 : index
    %42 = vector.load %arg10[%c0_31, %c0_32] : memref<176x128xbf16, #tpu.memory_space<vmem>>, vector<32x128xbf16>
    tpu.vector_store %arg10[%c0_31, %c0_32], %41 {strides = array<i32>} : memref<176x128xbf16, #tpu.memory_space<vmem>>, vector<32x128xbf16>,
    %cst_33 = arith.constant 0.000000e+00 : bf16
    %43 = vector.broadcast %cst_33 : bf16 to vector<16x128xbf16>
    %c160 = arith.constant 160 : index
    %c0_34 = arith.constant 0 : index
    %44 = vector.load %arg10[%c160, %c0_34] : memref<176x128xbf16, #tpu.memory_space<vmem>>, vector<16x128xbf16>
    tpu.vector_store %arg10[%c160, %c0_34], %43 {strides = array<i32>} : memref<176x128xbf16, #tpu.memory_space<vmem>>, vector<16x128xbf16>,
    %45 = vector.extract_strided_slice %40 {offsets = [0, 0], sizes = [8, 128], strides = [1, 1]} : vector<64x128xf32> to vector<8x128xf32>
    %46 = arith.truncf %45 : vector<8x128xf32> to vector<8x128xbf16>
    %47 = tpu.concatenate %46, %9 in 0 : vector<8x128xbf16>, vector<8x128xbf16> -> vector<16x128xbf16>
    %c32 = arith.constant 32 : index
    %c0_35 = arith.constant 0 : index
    %48 = vector.load %arg10[%c32, %c0_35] : memref<176x128xbf16, #tpu.memory_space<vmem>>, vector<16x128xbf16>
    tpu.vector_store %arg10[%c32, %c0_35], %47 {strides = array<i32>} : memref<176x128xbf16, #tpu.memory_space<vmem>>, vector<16x128xbf16>,
    %49 = vector.extract_strided_slice %40 {offsets = [8, 0], sizes = [8, 128], strides = [1, 1]} : vector<64x128xf32> to vector<8x128xf32>
    %50 = arith.truncf %49 : vector<8x128xf32> to vector<8x128xbf16>
    %51 = tpu.concatenate %50, %9 in 0 : vector<8x128xbf16>, vector<8x128xbf16> -> vector<16x128xbf16>
    %c48 = arith.constant 48 : index
    %c0_36 = arith.constant 0 : index
    %52 = vector.load %arg10[%c48, %c0_36] : memref<176x128xbf16, #tpu.memory_space<vmem>>, vector<16x128xbf16>
    tpu.vector_store %arg10[%c48, %c0_36], %51 {strides = array<i32>} : memref<176x128xbf16, #tpu.memory_space<vmem>>, vector<16x128xbf16>,
    %53 = vector.extract_strided_slice %40 {offsets = [16, 0], sizes = [8, 128], strides = [1, 1]} : vector<64x128xf32> to vector<8x128xf32>
    %54 = arith.truncf %53 : vector<8x128xf32> to vector<8x128xbf16>
    %55 = tpu.concatenate %54, %9 in 0 : vector<8x128xbf16>, vector<8x128xbf16> -> vector<16x128xbf16>
    %c64_37 = arith.constant 64 : index
    %c0_38 = arith.constant 0 : index
    %56 = vector.load %arg10[%c64_37, %c0_38] : memref<176x128xbf16, #tpu.memory_space<vmem>>, vector<16x128xbf16>
    tpu.vector_store %arg10[%c64_37, %c0_38], %55 {strides = array<i32>} : memref<176x128xbf16, #tpu.memory_space<vmem>>, vector<16x128xbf16>,
    %57 = vector.extract_strided_slice %40 {offsets = [24, 0], sizes = [8, 128], strides = [1, 1]} : vector<64x128xf32> to vector<8x128xf32>
    %58 = arith.truncf %57 : vector<8x128xf32> to vector<8x128xbf16>
    %59 = tpu.concatenate %58, %9 in 0 : vector<8x128xbf16>, vector<8x128xbf16> -> vector<16x128xbf16>
    %c80 = arith.constant 80 : index
    %c0_39 = arith.constant 0 : index
    %60 = vector.load %arg10[%c80, %c0_39] : memref<176x128xbf16, #tpu.memory_space<vmem>>, vector<16x128xbf16>
    tpu.vector_store %arg10[%c80, %c0_39], %59 {strides = array<i32>} : memref<176x128xbf16, #tpu.memory_space<vmem>>, vector<16x128xbf16>,
    %61 = vector.extract_strided_slice %40 {offsets = [32, 0], sizes = [8, 128], strides = [1, 1]} : vector<64x128xf32> to vector<8x128xf32>
    %62 = arith.truncf %61 : vector<8x128xf32> to vector<8x128xbf16>
    %63 = tpu.concatenate %62, %9 in 0 : vector<8x128xbf16>, vector<8x128xbf16> -> vector<16x128xbf16>
    %c96 = arith.constant 96 : index
    %c0_40 = arith.constant 0 : index
    %64 = vector.load %arg10[%c96, %c0_40] : memref<176x128xbf16, #tpu.memory_space<vmem>>, vector<16x128xbf16>
    tpu.vector_store %arg10[%c96, %c0_40], %63 {strides = array<i32>} : memref<176x128xbf16, #tpu.memory_space<vmem>>, vector<16x128xbf16>,
    %65 = vector.extract_strided_slice %40 {offsets = [40, 0], sizes = [8, 128], strides = [1, 1]} : vector<64x128xf32> to vector<8x128xf32>
    %66 = arith.truncf %65 : vector<8x128xf32> to vector<8x128xbf16>
    %67 = tpu.concatenate %66, %9 in 0 : vector<8x128xbf16>, vector<8x128xbf16> -> vector<16x128xbf16>
    %c112 = arith.constant 112 : index
    %c0_41 = arith.constant 0 : index
    %68 = vector.load %arg10[%c112, %c0_41] : memref<176x128xbf16, #tpu.memory_space<vmem>>, vector<16x128xbf16>
    tpu.vector_store %arg10[%c112, %c0_41], %67 {strides = array<i32>} : memref<176x128xbf16, #tpu.memory_space<vmem>>, vector<16x128xbf16>,
    %69 = vector.extract_strided_slice %40 {offsets = [48, 0], sizes = [8, 128], strides = [1, 1]} : vector<64x128xf32> to vector<8x128xf32>
    %70 = arith.truncf %69 : vector<8x128xf32> to vector<8x128xbf16>
    %71 = tpu.concatenate %70, %9 in 0 : vector<8x128xbf16>, vector<8x128xbf16> -> vector<16x128xbf16>
    %c128_42 = arith.constant 128 : index
    %c0_43 = arith.constant 0 : index
    %72 = vector.load %arg10[%c128_42, %c0_43] : memref<176x128xbf16, #tpu.memory_space<vmem>>, vector<16x128xbf16>
    tpu.vector_store %arg10[%c128_42, %c0_43], %71 {strides = array<i32>} : memref<176x128xbf16, #tpu.memory_space<vmem>>, vector<16x128xbf16>,
    %73 = vector.extract_strided_slice %40 {offsets = [56, 0], sizes = [8, 128], strides = [1, 1]} : vector<64x128xf32> to vector<8x128xf32>
    %74 = arith.truncf %73 : vector<8x128xf32> to vector<8x128xbf16>
    %75 = tpu.concatenate %74, %9 in 0 : vector<8x128xbf16>, vector<8x128xbf16> -> vector<16x128xbf16>
    %c144 = arith.constant 144 : index
    %c0_44 = arith.constant 0 : index
    %76 = vector.load %arg10[%c144, %c0_44] : memref<176x128xbf16, #tpu.memory_space<vmem>>, vector<16x128xbf16>
    tpu.vector_store %arg10[%c144, %c0_44], %75 {strides = array<i32>} : memref<176x128xbf16, #tpu.memory_space<vmem>>, vector<16x128xbf16>,
    %cst_45 = arith.constant 0.000000e+00 : f32
    %77 = vector.broadcast %cst_45 : f32 to vector<120x128xf32>
    %c15 = arith.constant 15 : index
    %c0_46 = arith.constant 0 : index
    %78 = vector.load %arg10[%c15, %c0_46] : memref<176x128xbf16, #tpu.memory_space<vmem>>, vector<120x128xbf16>
    %c0_47 = arith.constant 0 : index
    %c0_48 = arith.constant 0 : index
    %c0_49 = arith.constant 0 : index
    %79 = vector.load %arg3[%c0_47, %c0_48, %c0_49] : memref<9x128x128xbf16, #tpu.memory_space<vmem>>, vector<1x128x128xbf16>
    %80 = vector.shape_cast %79 : vector<1x128x128xbf16> to vector<128x128xbf16>
    %cst_50 = arith.constant dense<0.000000e+00> : vector<120x128xf32>
    %81 = tpu.matmul %78, %80, %cst_50 {dimension_numbers = #tpu.dot_dimension_numbers<[1], [0], [0], [1], [0, 0, 1, 1], [], []>} : vector<120x128xbf16>, vector<128x128xbf16>, vector<120x128xf32> -> vector<120x128xf32>
    %82 = arith.addf %77, %81 : vector<120x128xf32>
    %c16 = arith.constant 16 : index
    %c0_51 = arith.constant 0 : index
    %83 = vector.load %arg10[%c16, %c0_51] : memref<176x128xbf16, #tpu.memory_space<vmem>>, vector<120x128xbf16>
    %c1_52 = arith.constant 1 : index
    %c0_53 = arith.constant 0 : index
    %c0_54 = arith.constant 0 : index
    %84 = vector.load %arg3[%c1_52, %c0_53, %c0_54] : memref<9x128x128xbf16, #tpu.memory_space<vmem>>, vector<1x128x128xbf16>
    %85 = vector.shape_cast %84 : vector<1x128x128xbf16> to vector<128x128xbf16>
    %cst_55 = arith.constant dense<0.000000e+00> : vector<120x128xf32>
    %86 = tpu.matmul %83, %85, %cst_55 {dimension_numbers = #tpu.dot_dimension_numbers<[1], [0], [0], [1], [0, 0, 1, 1], [], []>} : vector<120x128xbf16>, vector<128x128xbf16>, vector<120x128xf32> -> vector<120x128xf32>
    %87 = arith.addf %82, %86 : vector<120x128xf32>
    %c17 = arith.constant 17 : index
    %c0_56 = arith.constant 0 : index
    %88 = vector.load %arg10[%c17, %c0_56] : memref<176x128xbf16, #tpu.memory_space<vmem>>, vector<120x128xbf16>
    %c2_57 = arith.constant 2 : index
    %c0_58 = arith.constant 0 : index
    %c0_59 = arith.constant 0 : index
    %89 = vector.load %arg3[%c2_57, %c0_58, %c0_59] : memref<9x128x128xbf16, #tpu.memory_space<vmem>>, vector<1x128x128xbf16>
    %90 = vector.shape_cast %89 : vector<1x128x128xbf16> to vector<128x128xbf16>
    %cst_60 = arith.constant dense<0.000000e+00> : vector<120x128xf32>
    %91 = tpu.matmul %88, %90, %cst_60 {dimension_numbers = #tpu.dot_dimension_numbers<[1], [0], [0], [1], [0, 0, 1, 1], [], []>} : vector<120x128xbf16>, vector<128x128xbf16>, vector<120x128xf32> -> vector<120x128xf32>
    %92 = arith.addf %87, %91 : vector<120x128xf32>
    %c31 = arith.constant 31 : index
    %c0_61 = arith.constant 0 : index
    %93 = vector.load %arg10[%c31, %c0_61] : memref<176x128xbf16, #tpu.memory_space<vmem>>, vector<120x128xbf16>
    %c3_62 = arith.constant 3 : index
    %c0_63 = arith.constant 0 : index
    %c0_64 = arith.constant 0 : index
    %94 = vector.load %arg3[%c3_62, %c0_63, %c0_64] : memref<9x128x128xbf16, #tpu.memory_space<vmem>>, vector<1x128x128xbf16>
    %95 = vector.shape_cast %94 : vector<1x128x128xbf16> to vector<128x128xbf16>
    %cst_65 = arith.constant dense<0.000000e+00> : vector<120x128xf32>
    %96 = tpu.matmul %93, %95, %cst_65 {dimension_numbers = #tpu.dot_dimension_numbers<[1], [0], [0], [1], [0, 0, 1, 1], [], []>} : vector<120x128xbf16>, vector<128x128xbf16>, vector<120x128xf32> -> vector<120x128xf32>
    %97 = arith.addf %92, %96 : vector<120x128xf32>
    %c32_66 = arith.constant 32 : index
    %c0_67 = arith.constant 0 : index
    %98 = vector.load %arg10[%c32_66, %c0_67] : memref<176x128xbf16, #tpu.memory_space<vmem>>, vector<120x128xbf16>
    %c4_68 = arith.constant 4 : index
    %c0_69 = arith.constant 0 : index
    %c0_70 = arith.constant 0 : index
    %99 = vector.load %arg3[%c4_68, %c0_69, %c0_70] : memref<9x128x128xbf16, #tpu.memory_space<vmem>>, vector<1x128x128xbf16>
    %100 = vector.shape_cast %99 : vector<1x128x128xbf16> to vector<128x128xbf16>
    %cst_71 = arith.constant dense<0.000000e+00> : vector<120x128xf32>
    %101 = tpu.matmul %98, %100, %cst_71 {dimension_numbers = #tpu.dot_dimension_numbers<[1], [0], [0], [1], [0, 0, 1, 1], [], []>} : vector<120x128xbf16>, vector<128x128xbf16>, vector<120x128xf32> -> vector<120x128xf32>
    %102 = arith.addf %97, %101 : vector<120x128xf32>
    %c33 = arith.constant 33 : index
    %c0_72 = arith.constant 0 : index
    %103 = vector.load %arg10[%c33, %c0_72] : memref<176x128xbf16, #tpu.memory_space<vmem>>, vector<120x128xbf16>
    %c5 = arith.constant 5 : index
    %c0_73 = arith.constant 0 : index
    %c0_74 = arith.constant 0 : index
    %104 = vector.load %arg3[%c5, %c0_73, %c0_74] : memref<9x128x128xbf16, #tpu.memory_space<vmem>>, vector<1x128x128xbf16>
    %105 = vector.shape_cast %104 : vector<1x128x128xbf16> to vector<128x128xbf16>
    %cst_75 = arith.constant dense<0.000000e+00> : vector<120x128xf32>
    %106 = tpu.matmul %103, %105, %cst_75 {dimension_numbers = #tpu.dot_dimension_numbers<[1], [0], [0], [1], [0, 0, 1, 1], [], []>} : vector<120x128xbf16>, vector<128x128xbf16>, vector<120x128xf32> -> vector<120x128xf32>
    %107 = arith.addf %102, %106 : vector<120x128xf32>
    %c47 = arith.constant 47 : index
    %c0_76 = arith.constant 0 : index
    %108 = vector.load %arg10[%c47, %c0_76] : memref<176x128xbf16, #tpu.memory_space<vmem>>, vector<120x128xbf16>
    %c6 = arith.constant 6 : index
    %c0_77 = arith.constant 0 : index
    %c0_78 = arith.constant 0 : index
    %109 = vector.load %arg3[%c6, %c0_77, %c0_78] : memref<9x128x128xbf16, #tpu.memory_space<vmem>>, vector<1x128x128xbf16>
    %110 = vector.shape_cast %109 : vector<1x128x128xbf16> to vector<128x128xbf16>
    %cst_79 = arith.constant dense<0.000000e+00> : vector<120x128xf32>
    %111 = tpu.matmul %108, %110, %cst_79 {dimension_numbers = #tpu.dot_dimension_numbers<[1], [0], [0], [1], [0, 0, 1, 1], [], []>} : vector<120x128xbf16>, vector<128x128xbf16>, vector<120x128xf32> -> vector<120x128xf32>
    %112 = arith.addf %107, %111 : vector<120x128xf32>
    %c48_80 = arith.constant 48 : index
    %c0_81 = arith.constant 0 : index
    %113 = vector.load %arg10[%c48_80, %c0_81] : memref<176x128xbf16, #tpu.memory_space<vmem>>, vector<120x128xbf16>
    %c7 = arith.constant 7 : index
    %c0_82 = arith.constant 0 : index
    %c0_83 = arith.constant 0 : index
    %114 = vector.load %arg3[%c7, %c0_82, %c0_83] : memref<9x128x128xbf16, #tpu.memory_space<vmem>>, vector<1x128x128xbf16>
    %115 = vector.shape_cast %114 : vector<1x128x128xbf16> to vector<128x128xbf16>
    %cst_84 = arith.constant dense<0.000000e+00> : vector<120x128xf32>
    %116 = tpu.matmul %113, %115, %cst_84 {dimension_numbers = #tpu.dot_dimension_numbers<[1], [0], [0], [1], [0, 0, 1, 1], [], []>} : vector<120x128xbf16>, vector<128x128xbf16>, vector<120x128xf32> -> vector<120x128xf32>
    %117 = arith.addf %112, %116 : vector<120x128xf32>
    %c49 = arith.constant 49 : index
    %c0_85 = arith.constant 0 : index
    %118 = vector.load %arg10[%c49, %c0_85] : memref<176x128xbf16, #tpu.memory_space<vmem>>, vector<120x128xbf16>
    %c8 = arith.constant 8 : index
    %c0_86 = arith.constant 0 : index
    %c0_87 = arith.constant 0 : index
    %119 = vector.load %arg3[%c8, %c0_86, %c0_87] : memref<9x128x128xbf16, #tpu.memory_space<vmem>>, vector<1x128x128xbf16>
    %120 = vector.shape_cast %119 : vector<1x128x128xbf16> to vector<128x128xbf16>
    %cst_88 = arith.constant dense<0.000000e+00> : vector<120x128xf32>
    %121 = tpu.matmul %118, %120, %cst_88 {dimension_numbers = #tpu.dot_dimension_numbers<[1], [0], [0], [1], [0, 0, 1, 1], [], []>} : vector<120x128xbf16>, vector<128x128xbf16>, vector<120x128xf32> -> vector<120x128xf32>
    %122 = arith.addf %117, %121 : vector<120x128xf32>
    %123 = vector.broadcast %5 : vector<1x128xf32> to vector<120x128xf32>
    %124 = arith.addf %122, %123 : vector<120x128xf32>
    %cst_89 = arith.constant 0.000000e+00 : f32
    %125 = vector.broadcast %cst_89 : f32 to vector<120x128xf32>
    %126 = arith.maximumf %124, %125 : vector<120x128xf32>
    %c0_90 = arith.constant 0 : index
    %c0_91 = arith.constant 0 : index
    %127 = vector.load %arg11[%c0_90, %c0_91] : memref<120x128xf32, #tpu.memory_space<vmem>>, vector<120x128xf32>
    tpu.vector_store %arg11[%c0_90, %c0_91], %126 {strides = array<i32>} : memref<120x128xf32, #tpu.memory_space<vmem>>, vector<120x128xf32>,
    %c0_92 = arith.constant 0 : index
    %c0_93 = arith.constant 0 : index
    %128 = tpu.strided_load %arg11[%c0_92, %c0_93] {strides = array<i32: 2, 1>} : memref<120x128xf32, #tpu.memory_space<vmem>>, vector<4x128xf32>
    %c1_94 = arith.constant 1 : index
    %c0_95 = arith.constant 0 : index
    %129 = tpu.strided_load %arg11[%c1_94, %c0_95] {strides = array<i32: 2, 1>} : memref<120x128xf32, #tpu.memory_space<vmem>>, vector<4x128xf32>
    %130 = arith.maximumf %128, %129 : vector<4x128xf32>
    %c16_96 = arith.constant 16 : index
    %c0_97 = arith.constant 0 : index
    %131 = tpu.strided_load %arg11[%c16_96, %c0_97] {strides = array<i32: 2, 1>} : memref<120x128xf32, #tpu.memory_space<vmem>>, vector<4x128xf32>
    %c17_98 = arith.constant 17 : index
    %c0_99 = arith.constant 0 : index
    %132 = tpu.strided_load %arg11[%c17_98, %c0_99] {strides = array<i32: 2, 1>} : memref<120x128xf32, #tpu.memory_space<vmem>>, vector<4x128xf32>
    %133 = arith.maximumf %131, %132 : vector<4x128xf32>
    %134 = arith.maximumf %130, %133 : vector<4x128xf32>
    %c32_100 = arith.constant 32 : index
    %c0_101 = arith.constant 0 : index
    %135 = tpu.strided_load %arg11[%c32_100, %c0_101] {strides = array<i32: 2, 1>} : memref<120x128xf32, #tpu.memory_space<vmem>>, vector<4x128xf32>
    %c33_102 = arith.constant 33 : index
    %c0_103 = arith.constant 0 : index
    %136 = tpu.strided_load %arg11[%c33_102, %c0_103] {strides = array<i32: 2, 1>} : memref<120x128xf32, #tpu.memory_space<vmem>>, vector<4x128xf32>
    %137 = arith.maximumf %135, %136 : vector<4x128xf32>
    %c48_104 = arith.constant 48 : index
    %c0_105 = arith.constant 0 : index
    %138 = tpu.strided_load %arg11[%c48_104, %c0_105] {strides = array<i32: 2, 1>} : memref<120x128xf32, #tpu.memory_space<vmem>>, vector<4x128xf32>
    %c49_106 = arith.constant 49 : index
    %c0_107 = arith.constant 0 : index
    %139 = tpu.strided_load %arg11[%c49_106, %c0_107] {strides = array<i32: 2, 1>} : memref<120x128xf32, #tpu.memory_space<vmem>>, vector<4x128xf32>
    %140 = arith.maximumf %138, %139 : vector<4x128xf32>
    %141 = arith.maximumf %137, %140 : vector<4x128xf32>
    %c64_108 = arith.constant 64 : index
    %c0_109 = arith.constant 0 : index
    %142 = tpu.strided_load %arg11[%c64_108, %c0_109] {strides = array<i32: 2, 1>} : memref<120x128xf32, #tpu.memory_space<vmem>>, vector<4x128xf32>
    %c65 = arith.constant 65 : index
    %c0_110 = arith.constant 0 : index
    %143 = tpu.strided_load %arg11[%c65, %c0_110] {strides = array<i32: 2, 1>} : memref<120x128xf32, #tpu.memory_space<vmem>>, vector<4x128xf32>
    %144 = arith.maximumf %142, %143 : vector<4x128xf32>
    %c80_111 = arith.constant 80 : index
    %c0_112 = arith.constant 0 : index
    %145 = tpu.strided_load %arg11[%c80_111, %c0_112] {strides = array<i32: 2, 1>} : memref<120x128xf32, #tpu.memory_space<vmem>>, vector<4x128xf32>
    %c81 = arith.constant 81 : index
    %c0_113 = arith.constant 0 : index
    %146 = tpu.strided_load %arg11[%c81, %c0_113] {strides = array<i32: 2, 1>} : memref<120x128xf32, #tpu.memory_space<vmem>>, vector<4x128xf32>
    %147 = arith.maximumf %145, %146 : vector<4x128xf32>
    %148 = arith.maximumf %144, %147 : vector<4x128xf32>
    %c96_114 = arith.constant 96 : index
    %c0_115 = arith.constant 0 : index
    %149 = tpu.strided_load %arg11[%c96_114, %c0_115] {strides = array<i32: 2, 1>} : memref<120x128xf32, #tpu.memory_space<vmem>>, vector<4x128xf32>
    %c97 = arith.constant 97 : index
    %c0_116 = arith.constant 0 : index
    %150 = tpu.strided_load %arg11[%c97, %c0_116] {strides = array<i32: 2, 1>} : memref<120x128xf32, #tpu.memory_space<vmem>>, vector<4x128xf32>
    %151 = arith.maximumf %149, %150 : vector<4x128xf32>
    %c112_117 = arith.constant 112 : index
    %c0_118 = arith.constant 0 : index
    %152 = tpu.strided_load %arg11[%c112_117, %c0_118] {strides = array<i32: 2, 1>} : memref<120x128xf32, #tpu.memory_space<vmem>>, vector<4x128xf32>
    %c113 = arith.constant 113 : index
    %c0_119 = arith.constant 0 : index
    %153 = tpu.strided_load %arg11[%c113, %c0_119] {strides = array<i32: 2, 1>} : memref<120x128xf32, #tpu.memory_space<vmem>>, vector<4x128xf32>
    %154 = arith.maximumf %152, %153 : vector<4x128xf32>
    %155 = arith.maximumf %151, %154 : vector<4x128xf32>
    %156 = tpu.concatenate %134, %141, %148, %155 in 0 : vector<4x128xf32>, vector<4x128xf32>, vector<4x128xf32>, vector<4x128xf32> -> vector<16x128xf32>
    %157 = arith.truncf %156 : vector<16x128xf32> to vector<16x128xbf16>
    %cst_120 = arith.constant dense<0.000000e+00> : vector<16x128xf32>
    %158 = tpu.matmul %157, %1, %cst_120 {dimension_numbers = #tpu.dot_dimension_numbers<[1], [0], [0], [1], [0, 0, 1, 1], [], []>} : vector<16x128xbf16>, vector<128x128xbf16>, vector<16x128xf32> -> vector<16x128xf32>
    %159 = vector.broadcast %6 : vector<1x128xf32> to vector<16x128xf32>
    %160 = arith.addf %158, %159 : vector<16x128xf32>
    %cst_121 = arith.constant 0.000000e+00 : f32
    %161 = vector.broadcast %cst_121 : f32 to vector<16x128xf32>
    %162 = arith.maximumf %160, %161 : vector<16x128xf32>
    %163 = arith.truncf %162 : vector<16x128xf32> to vector<16x128xbf16>
    %cst_122 = arith.constant dense<0.000000e+00> : vector<16x128xf32>
    %164 = tpu.matmul %163, %2, %cst_122 {dimension_numbers = #tpu.dot_dimension_numbers<[1], [0], [0], [1], [0, 0, 1, 1], [], []>} : vector<16x128xbf16>, vector<128x128xbf16>, vector<16x128xf32> -> vector<16x128xf32>
    %165 = vector.broadcast %7 : vector<1x128xf32> to vector<16x128xf32>
    %166 = arith.addf %164, %165 : vector<16x128xf32>
    %c0_123 = arith.constant 0 : index
    %c0_124 = arith.constant 0 : index
    %c0_125 = arith.constant 0 : index
    %167 = vector.load %arg9[%c0_123, %c0_124, %c0_125] : memref<1x16x128xf32, #tpu.memory_space<vmem>>, vector<1x16x128xf32>
    %168 = vector.shape_cast %167 : vector<1x16x128xf32> to vector<16x128xf32>
    %169 = vector.shape_cast %166 : vector<16x128xf32> to vector<1x16x128xf32>
    tpu.vector_store %arg9[%c0_123, %c0_124, %c0_125], %169 {strides = array<i32>} : memref<1x16x128xf32, #tpu.memory_space<vmem>>, vector<1x16x128xf32>,
    %cst_126 = arith.constant dense<0.000000e+00> : vector<16x128xf32>
    %170 = tpu.matmul %163, %3, %cst_126 {dimension_numbers = #tpu.dot_dimension_numbers<[1], [0], [0], [1], [0, 0, 1, 1], [], []>} : vector<16x128xbf16>, vector<128x128xbf16>, vector<16x128xf32> -> vector<16x128xf32>
    %171 = vector.broadcast %8 : vector<1x128xf32> to vector<16x128xf32>
    %172 = arith.addf %170, %171 : vector<16x128xf32>
    %c0_127 = arith.constant 0 : index
    %c0_128 = arith.constant 0 : index
    %c0_129 = arith.constant 0 : index
    %173 = vector.load %arg8[%c0_127, %c0_128, %c0_129] : memref<1x16x128xf32, #tpu.memory_space<vmem>>, vector<1x16x128xf32>
    %174 = vector.shape_cast %173 : vector<1x16x128xf32> to vector<16x128xf32>
    %175 = vector.shape_cast %172 : vector<16x128xf32> to vector<1x16x128xf32>
    tpu.vector_store %arg8[%c0_127, %c0_128, %c0_129], %175 {strides = array<i32>} : memref<1x16x128xf32, #tpu.memory_space<vmem>>, vector<1x16x128xf32>,
    return
  }
  func.func @transform_0(%arg0: i32) -> (i32, i32, i32) {
    %c0_i32 = arith.constant 0 : i32
    %c0_i32_0 = arith.constant 0 : i32
    %c0_i32_1 = arith.constant 0 : i32
    return %arg0, %c0_i32, %c0_i32_0 : i32, i32, i32
  }
  func.func @transform_1(%arg0: i32) -> (i32, i32) {
    %c0_i32 = arith.constant 0 : i32
    %c0_i32_0 = arith.constant 0 : i32
    %c0_i32_1 = arith.constant 0 : i32
    return %c0_i32, %c0_i32_0 : i32, i32
  }
  func.func @transform_2(%arg0: i32) -> (i32, i32, i32) {
    %c0_i32 = arith.constant 0 : i32
    %c0_i32_0 = arith.constant 0 : i32
    %c0_i32_1 = arith.constant 0 : i32
    %c0_i32_2 = arith.constant 0 : i32
    return %c0_i32, %c0_i32_0, %c0_i32_1 : i32, i32, i32
  }
  func.func @transform_3(%arg0: i32) -> (i32, i32) {
    %c0_i32 = arith.constant 0 : i32
    %c0_i32_0 = arith.constant 0 : i32
    %c0_i32_1 = arith.constant 0 : i32
    return %c0_i32, %c0_i32_0 : i32, i32
  }
  func.func @transform_4(%arg0: i32) -> (i32, i32) {
    %c0_i32 = arith.constant 0 : i32
    %c0_i32_0 = arith.constant 0 : i32
    %c0_i32_1 = arith.constant 0 : i32
    return %c0_i32, %c0_i32_0 : i32, i32
  }
  func.func @transform_5(%arg0: i32) -> (i32, i32) {
    %c0_i32 = arith.constant 0 : i32
    %c0_i32_0 = arith.constant 0 : i32
    %c0_i32_1 = arith.constant 0 : i32
    return %c0_i32, %c0_i32_0 : i32, i32
  }
  func.func @transform_6(%arg0: i32) -> (i32, i32) {
    %c0_i32 = arith.constant 0 : i32
    %c0_i32_0 = arith.constant 0 : i32
    %c0_i32_1 = arith.constant 0 : i32
    return %c0_i32, %c0_i32_0 : i32, i32
  }
  func.func @transform_7(%arg0: i32) -> (i32, i32, i32) {
    %c0_i32 = arith.constant 0 : i32
    %c0_i32_0 = arith.constant 0 : i32
    %c0_i32_1 = arith.constant 0 : i32
    return %arg0, %c0_i32, %c0_i32_0 : i32, i32, i32
  }
  func.func @transform_8(%arg0: i32) -> (i32, i32, i32) {
    %c0_i32 = arith.constant 0 : i32
    %c0_i32_0 = arith.constant 0 : i32
    %c0_i32_1 = arith.constant 0 : i32
    return %arg0, %c0_i32, %c0_i32_0 : i32, i32, i32
  }
}

</mosaic_0001>

<llo_original>
// kernel: cnn_model_forward.1
$region0: #{cnn_model_forward.1}
  #allocation0 [shape = 'u32[]', space=smem, size = 0x4, offset = 0x4, fixed_abs, tag = 'smem constant byte address 0x4 - core index']
  #allocation1 [shape = 'u32[144,128]{1,0:T(1,128)}', space=vmem, size = 0x12000, scoped, tag = 'internal scratch']
  #allocation2 [shape = 'bf16[176,128]{1,0:T(16,128)(2,1)}', space=vmem, size = 0xb000, scoped, tag = 'scratch operand']
  #allocation3 [shape = 'f32[120,128]{1,0:T(8,128)}', space=vmem, size = 0xf000, scoped, tag = 'scratch operand']
  %s0 = inlined_call_operand.vmem [shape: bf16[2,256,128], index: 0, kind: input, shape index: {}]
  %s1 = inlined_call_operand.vmem [shape: bf16[128,128], index: 1, kind: input, shape index: {}]
  %s2 = inlined_call_operand.vmem [shape: bf16[9,128,128], index: 2, kind: input, shape index: {}]
  %s3 = inlined_call_operand.vmem [shape: bf16[128,128], index: 3, kind: input, shape index: {}]
  %s4 = inlined_call_operand.vmem [shape: bf16[128,128], index: 4, kind: input, shape index: {}]
  %s5 = inlined_call_operand.vmem [shape: bf16[128,128], index: 5, kind: input, shape index: {}]
  %s6 = inlined_call_operand.vmem [shape: f32[8,128], index: 6, kind: input, shape index: {}]
  %s7 = inlined_call_operand.vmem [shape: f32[2,16,128], index: 7, kind: output, shape index: {0}]
  %s8 = inlined_call_operand.hbm [shape: f32[2,16,128], index: 8, kind: output, shape index: {1}]
  %9 = xla_tuple %s7, %s8
  %s10 = sld [smem:[#allocation0]]
  $region69: #{cnn_model_forward.1} parent=0
    _
  %s12 = ssub.s32 1, %s10
  %s13 = scalar_select 0, %s12, %s10
  $region1: #{cnn_model_forward.1} parent=0
    #allocation4 [shape = 'u8[16384]{0}', space=vmem, size = 0x4000, scoped, tag = 'output window, operand 1']
    #allocation5 [shape = 's32[2]{0}', space=sflag, size = 0x8, scoped, tag = 'scoped memory for cnn_model_forward.1']
    %14 = vsyncpa [#allocation5], 0
    %s15 = scalar_lea.sflag [#allocation5], 1
    %16 = vsyncpa %s15, 0
    loop: start=0, step=1, limit=4
    $region2: #{cnn_model_forward.1} parent=1 // loop_pre_header
      _
    $region3: #{cnn_model_forward.1} parent=1 // loop_header
      %s18 = sphi 0, %s22
      %p19 = scmp.ge.s32.totalorder %s18, 4
      %s28 = sphi 0, %s30
      %s31 = sphi 0, %s28
      %s32 = sphi 0, %s31
      %s48 = sphi 0, %s32
      %s52 = sphi 0, %s52
      %s54 = sphi 0, %s52
      %s55 = sphi 0, %s54
      %s69 = sphi 0, %s55
      %s73 = sphi 0, %s73
      %s75 = sphi 0, %s73
      %s76 = sphi 0, %s75
      %s90 = sphi 0, %s76
      %s94 = sphi 0, %s94
      %s96 = sphi 0, %s94
      %s97 = sphi 0, %s96
      %s111 = sphi 0, %s97
      %s115 = sphi 0, %s115
      %s117 = sphi 0, %s115
      %s118 = sphi 0, %s117
      %s132 = sphi 0, %s118
      %s136 = sphi 0, %s136
      %s138 = sphi 0, %s136
      %s139 = sphi 0, %s138
      %s153 = sphi 0, %s139
      %s157 = sphi 0, %s157
      %s159 = sphi 0, %s157
      %s160 = sphi 0, %s159
      %s174 = sphi 0, %s160
      %s180 = sphi 0, %s182
      %s183 = sphi 0, %s180
      %s184 = sphi 0, %s183
      %s200 = sphi 0, %s184
      %s206 = sphi 0, %s208
      %s209 = sphi 0, %s206
      %s210 = sphi 0, %s209
      %s226 = sphi 0, %s210
    $region4: #{cnn_model_forward.1} parent=1 // loop_header_branch
      %21 = sbr.rel (%p19) target = $region8
    $region5: #{cnn_model_forward.1} parent=1 // loop_body
      %s23 = ssub.s32 %s18, 1
      %s24 = ssub.s32 %s18, 2
      %s25 = sadd.s32 %s18, 1
      %s26 = ssub.s32 %s18, %s25
      %p27 = scmp.eq.s32.totalorder %s26, 0
      %s29 = sadd.s32 %s28, 1
      %s30 = scalar_select %p27, %s28, %s29
      %p33 = pneg %p27
      %p34 = scmp.eq.s32.totalorder %s18, 1
      %p35 = por %p33, %p34
      %p36 = scmp.ne.s32.totalorder %s28, %s31
      %p37 = scmp.eq.s32.totalorder %s18, 0
      %p38 = por %p36, %p37
      %p39 = scmp.ne.s32.totalorder %s28, %s31
      %p40 = scmp.eq.s32.totalorder %s23, 1
      %p41 = por %p39, %p40
      %p42 = scmp.ne.s32.totalorder %s31, %s32
      %p43 = scmp.eq.s32.totalorder %s23, 0
      %p44 = por %p42, %p43
      %p45 = scmp.ne.s32.totalorder %s31, %s32
      %p46 = scmp.eq.s32.totalorder %s24, 1
      %p47 = por %p45, %p46
      %p49 = scmp.ne.s32.totalorder %s32, %s48
      %p50 = scmp.eq.s32.totalorder %s24, 0
      %p51 = por %p49, %p50
      %s53 = sadd.s32 %s52, 1
      %p56 = scmp.eq.s32.totalorder %s18, 1
      %p57 = scmp.ne.s32.totalorder %s52, %s54
      %p58 = scmp.eq.s32.totalorder %s18, 0
      %p59 = por %p57, %p58
      %p60 = scmp.ne.s32.totalorder %s52, %s54
      %p61 = scmp.eq.s32.totalorder %s23, 1
      %p62 = por %p60, %p61
      %p63 = scmp.ne.s32.totalorder %s54, %s55
      %p64 = scmp.eq.s32.totalorder %s23, 0
      %p65 = por %p63, %p64
      %p66 = scmp.ne.s32.totalorder %s54, %s55
      %p67 = scmp.eq.s32.totalorder %s24, 1
      %p68 = por %p66, %p67
      %p70 = scmp.ne.s32.totalorder %s55, %s69
      %p71 = scmp.eq.s32.totalorder %s24, 0
      %p72 = por %p70, %p71
      %s74 = sadd.s32 %s73, 1
      %p77 = scmp.eq.s32.totalorder %s18, 1
      %p78 = scmp.ne.s32.totalorder %s73, %s75
      %p79 = scmp.eq.s32.totalorder %s18, 0
      %p80 = por %p78, %p79
      %p81 = scmp.ne.s32.totalorder %s73, %s75
      %p82 = scmp.eq.s32.totalorder %s23, 1
      %p83 = por %p81, %p82
      %p84 = scmp.ne.s32.totalorder %s75, %s76
      %p85 = scmp.eq.s32.totalorder %s23, 0
      %p86 = por %p84, %p85
      %p87 = scmp.ne.s32.totalorder %s75, %s76
      %p88 = scmp.eq.s32.totalorder %s24, 1
      %p89 = por %p87, %p88
      %p91 = scmp.ne.s32.totalorder %s76, %s90
      %p92 = scmp.eq.s32.totalorder %s24, 0
      %p93 = por %p91, %p92
      %s95 = sadd.s32 %s94, 1
      %p98 = scmp.eq.s32.totalorder %s18, 1
      %p99 = scmp.ne.s32.totalorder %s94, %s96
      %p100 = scmp.eq.s32.totalorder %s18, 0
      %p101 = por %p99, %p100
      %p102 = scmp.ne.s32.totalorder %s94, %s96
      %p103 = scmp.eq.s32.totalorder %s23, 1
      %p104 = por %p102, %p103
      %p105 = scmp.ne.s32.totalorder %s96, %s97
      %p106 = scmp.eq.s32.totalorder %s23, 0
      %p107 = por %p105, %p106
      %p108 = scmp.ne.s32.totalorder %s96, %s97
      %p109 = scmp.eq.s32.totalorder %s24, 1
      %p110 = por %p108, %p109
      %p112 = scmp.ne.s32.totalorder %s97, %s111
      %p113 = scmp.eq.s32.totalorder %s24, 0
      %p114 = por %p112, %p113
      %s116 = sadd.s32 %s115, 1
      %p119 = scmp.eq.s32.totalorder %s18, 1
      %p120 = scmp.ne.s32.totalorder %s115, %s117
      %p121 = scmp.eq.s32.totalorder %s18, 0
      %p122 = por %p120, %p121
      %p123 = scmp.ne.s32.totalorder %s115, %s117
      %p124 = scmp.eq.s32.totalorder %s23, 1
      %p125 = por %p123, %p124
      %p126 = scmp.ne.s32.totalorder %s117, %s118
      %p127 = scmp.eq.s32.totalorder %s23, 0
      %p128 = por %p126, %p127
      %p129 = scmp.ne.s32.totalorder %s117, %s118
      %p130 = scmp.eq.s32.totalorder %s24, 1
      %p131 = por %p129, %p130
      %p133 = scmp.ne.s32.totalorder %s118, %s132
      %p134 = scmp.eq.s32.totalorder %s24, 0
      %p135 = por %p133, %p134
      %s137 = sadd.s32 %s136, 1
      %p140 = scmp.eq.s32.totalorder %s18, 1
      %p141 = scmp.ne.s32.totalorder %s136, %s138
      %p142 = scmp.eq.s32.totalorder %s18, 0
      %p143 = por %p141, %p142
      %p144 = scmp.ne.s32.totalorder %s136, %s138
      %p145 = scmp.eq.s32.totalorder %s23, 1
      %p146 = por %p144, %p145
      %p147 = scmp.ne.s32.totalorder %s138, %s139
      %p148 = scmp.eq.s32.totalorder %s23, 0
      %p149 = por %p147, %p148
      %p150 = scmp.ne.s32.totalorder %s138, %s139
      %p151 = scmp.eq.s32.totalorder %s24, 1
      %p152 = por %p150, %p151
      %p154 = scmp.ne.s32.totalorder %s139, %s153
      %p155 = scmp.eq.s32.totalorder %s24, 0
      %p156 = por %p154, %p155
      %s158 = sadd.s32 %s157, 1
      %p161 = scmp.eq.s32.totalorder %s18, 1
      %p162 = scmp.ne.s32.totalorder %s157, %s159
      %p163 = scmp.eq.s32.totalorder %s18, 0
      %p164 = por %p162, %p163
      %p165 = scmp.ne.s32.totalorder %s157, %s159
      %p166 = scmp.eq.s32.totalorder %s23, 1
      %p167 = por %p165, %p166
      %p168 = scmp.ne.s32.totalorder %s159, %s160
      %p169 = scmp.eq.s32.totalorder %s23, 0
      %p170 = por %p168, %p169
      %p171 = scmp.ne.s32.totalorder %s159, %s160
      %p172 = scmp.eq.s32.totalorder %s24, 1
      %p173 = por %p171, %p172
      %p175 = scmp.ne.s32.totalorder %s160, %s174
      %p176 = scmp.eq.s32.totalorder %s24, 0
      %p177 = por %p175, %p176
      %s178 = ssub.s32 %s18, %s25
      %p179 = scmp.eq.s32.totalorder %s178, 0
      %s181 = sadd.s32 %s180, 1
      %s182 = scalar_select %p179, %s180, %s181
      %p185 = pneg %p179
      %p186 = scmp.eq.s32.totalorder %s18, 1
      %p187 = por %p185, %p186
      %p188 = scmp.ne.s32.totalorder %s180, %s183
      %p189 = scmp.eq.s32.totalorder %s18, 0
      %p190 = por %p188, %p189
      %p191 = scmp.ne.s32.totalorder %s180, %s183
      %p192 = scmp.eq.s32.totalorder %s23, 1
      %p193 = por %p191, %p192
      %p194 = scmp.ne.s32.totalorder %s183, %s184
      %p195 = scmp.eq.s32.totalorder %s23, 0
      %p196 = por %p194, %p195
      %p197 = scmp.ne.s32.totalorder %s183, %s184
      %p198 = scmp.eq.s32.totalorder %s24, 1
      %p199 = por %p197, %p198
      %p201 = scmp.ne.s32.totalorder %s184, %s200
      %p202 = scmp.eq.s32.totalorder %s24, 0
      %p203 = por %p201, %p202
      %s204 = ssub.s32 %s18, %s25
      %p205 = scmp.eq.s32.totalorder %s204, 0
      %s207 = sadd.s32 %s206, 1
      %s208 = scalar_select %p205, %s206, %s207
      %p211 = pneg %p205
      %p212 = scmp.eq.s32.totalorder %s18, 1
      %p213 = por %p211, %p212
      %p214 = scmp.ne.s32.totalorder %s206, %s209
      %p215 = scmp.eq.s32.totalorder %s18, 0
      %p216 = por %p214, %p215
      %p217 = scmp.ne.s32.totalorder %s206, %s209
      %p218 = scmp.eq.s32.totalorder %s23, 1
      %p219 = por %p217, %p218
      %p220 = scmp.ne.s32.totalorder %s209, %s210
      %p221 = scmp.eq.s32.totalorder %s23, 0
      %p222 = por %p220, %p221
      %p223 = scmp.ne.s32.totalorder %s209, %s210
      %p224 = scmp.eq.s32.totalorder %s24, 1
      %p225 = por %p223, %p224
      %p227 = scmp.ne.s32.totalorder %s210, %s226
      %p228 = scmp.eq.s32.totalorder %s24, 0
      %p229 = por %p227, %p228
      %p230 = scmp.le.s32.totalorder 1, %s18
      %p231 = scmp.lt.s32.totalorder %s18, 3
      %p232 = pnand %p230, %p231
      %p233 = pneg %p232
      // Predicated region
      $region9: #{cnn_model_forward.1} parent=5 // pred_check
        _
      $region10: #{cnn_model_forward.1} parent=5 // pred_check_branch
        %235 = sbr.rel (%p232) target = $region12
      $region11: #{cnn_model_forward.1} parent=5 // pred_region
        %s236 = ssub.s32 %s18, 1
        // Predicated region
        $region13: #{cnn_model_forward.1} parent=11 // pred_check
          %p237 = pneg %p65
        $region14: #{cnn_model_forward.1} parent=11 // pred_check_branch
          %239 = sbr.rel (%p237) target = $region16
        $region15: #{cnn_model_forward.1} parent=11 // pred_region
          _
        $region16: #{cnn_model_forward.1} parent=11 // pred_fallthru
          _
        // Predicated region
        $region17: #{cnn_model_forward.1} parent=11 // pred_check
          %p240 = pneg %p86
        $region18: #{cnn_model_forward.1} parent=11 // pred_check_branch
          %242 = sbr.rel (%p240) target = $region20
        $region19: #{cnn_model_forward.1} parent=11 // pred_region
          _
        $region20: #{cnn_model_forward.1} parent=11 // pred_fallthru
          _
        // Predicated region
        $region21: #{cnn_model_forward.1} parent=11 // pred_check
          %p243 = pneg %p107
        $region22: #{cnn_model_forward.1} parent=11 // pred_check_branch
          %245 = sbr.rel (%p243) target = $region24
        $region23: #{cnn_model_forward.1} parent=11 // pred_region
          _
        $region24: #{cnn_model_forward.1} parent=11 // pred_fallthru
          _
        // Predicated region
        $region25: #{cnn_model_forward.1} parent=11 // pred_check
          %p246 = pneg %p128
        $region26: #{cnn_model_forward.1} parent=11 // pred_check_branch
          %248 = sbr.rel (%p246) target = $region28
        $region27: #{cnn_model_forward.1} parent=11 // pred_region
          _
        $region28: #{cnn_model_forward.1} parent=11 // pred_fallthru
          _
        // Predicated region
        $region29: #{cnn_model_forward.1} parent=11 // pred_check
          %p249 = pneg %p149
        $region30: #{cnn_model_forward.1} parent=11 // pred_check_branch
          %251 = sbr.rel (%p249) target = $region32
        $region31: #{cnn_model_forward.1} parent=11 // pred_region
          _
        $region32: #{cnn_model_forward.1} parent=11 // pred_fallthru
          _
        // Predicated region
        $region33: #{cnn_model_forward.1} parent=11 // pred_check
          %p252 = pneg %p170
        $region34: #{cnn_model_forward.1} parent=11 // pred_check_branch
          %254 = sbr.rel (%p252) target = $region36
        $region35: #{cnn_model_forward.1} parent=11 // pred_region
          _
        $region36: #{cnn_model_forward.1} parent=11 // pred_fallthru
          _
      $region12: #{cnn_model_forward.1} parent=5 // pred_fallthru
        _
      %p255 = scmp.lt.s32.totalorder %s18, 2
      // Predicated region
      $region37: #{cnn_model_forward.1} parent=5 // pred_check
        %p256 = pneg %p255
      $region38: #{cnn_model_forward.1} parent=5 // pred_check_branch
        %258 = sbr.rel (%p256) target = $region40
      $region39: #{cnn_model_forward.1} parent=5 // pred_region
        // Predicated region
        $region41: #{cnn_model_forward.1} parent=39 // pred_check
          %p259 = pneg %p38
        $region42: #{cnn_model_forward.1} parent=39 // pred_check_branch
          %261 = sbr.rel (%p259) target = $region44
        $region43: #{cnn_model_forward.1} parent=39 // pred_region
          %p262 = scmp.lt.s32.totalorder %s18, 1
          %s263 = scalar_select %p262, %s18, 1
          %s264 = smul.addr %s263, 32
          %s265 = smul.addr %s264, 4
          %s266 = scalar_lea.vmem %s0, %s265
        $region44: #{cnn_model_forward.1} parent=39 // pred_fallthru
          _
      $region40: #{cnn_model_forward.1} parent=5 // pred_fallthru
        _
      %p267 = scmp.le.s32.totalorder 1, %s18
      %p268 = scmp.lt.s32.totalorder %s18, 3
      %p269 = pnand %p267, %p268
      %p270 = pneg %p269
      // Predicated region
      $region45: #{cnn_model_forward.1} parent=5 // pred_check
        _
      $region46: #{cnn_model_forward.1} parent=5 // pred_check_branch
        %272 = sbr.rel (%p269) target = $region48
      $region47: #{cnn_model_forward.1} parent=5 // pred_region
        %s273 = ssub.s32 %s18, 1
        %p274 = scmp.lt.s32.totalorder %s23, 1
        %s275 = scalar_select %p274, %s23, 1
        %s276 = smul.addr %s275, 32
        %s277 = smul.addr %s276, 4
        %s278 = scalar_lea.vmem %s0, %s277
        %p279 = pneg %p44
        %p280 = pneg %p41
        %p281 = pneg %p65
        %p282 = pneg %p62
        %p283 = pneg %p86
        %p284 = pneg %p83
        %p285 = pneg %p107
        %p286 = pneg %p104
        %p287 = pneg %p128
        %p288 = pneg %p125
        %p289 = pneg %p149
        %p290 = pneg %p146
        %p291 = pneg %p170
        %p292 = pneg %p167
        %p293 = pneg %p196
        %p294 = pneg %p193
        %p295 = scmp.lt.s32.totalorder %s23, 1
        %s296 = scalar_select %p295, %s23, 1
        %s297 = smul.addr %s296, 2
        %s298 = smul.addr %s297, 8
        %s299 = scalar_lea.vmem %s7, %s298
        %p300 = pneg %p222
        %p301 = pneg %p219
        %s302 = sand.u32 %s209, 1
        %s303 = scalar_lea.sflag [#allocation5], %s302
        %s304 = sand.u32 %s209, 1
        %s305 = smul.addr %s304, 16
        %s306 = scalar_lea.vmem [#allocation4], %s305
        %p307 = scmp.lt.s32.totalorder %s23, 1
        %s308 = scalar_select %p307, %s23, 1
        %s309 = smul.addr %s308, 32
        %s310 = smul.addr %s309, 4
        %s311 = scalar_lea.vmem %s0, %s310
        %p312 = scmp.lt.s32.totalorder %s23, 1
        %s313 = scalar_select %p312, %s23, 1
        %s314 = smul.addr %s313, 2
        %s315 = smul.addr %s314, 8
        %s316 = scalar_lea.vmem %s7, %s315
        %v318 = vld [vmem:[%s1] sm:$0xf]
        %v319 = vld [vmem:[%s1 + $0x4] sm:$0xf]
        %v320 = vld [vmem:[%s1 + $0x8] sm:$0xf]
        %v321 = vld [vmem:[%s1 + $0xc] sm:$0xf]
        %v322 = vld [vmem:[%s1 + $0x10] sm:$0xf]
        %v323 = vld [vmem:[%s1 + $0x14] sm:$0xf]
        %v324 = vld [vmem:[%s1 + $0x18] sm:$0xf]
        %v325 = vld [vmem:[%s1 + $0x1c] sm:$0xf]
        %v326 = vld [vmem:[%s1 + $0x20] sm:$0xf]
        %v327 = vld [vmem:[%s1 + $0x24] sm:$0xf]
        %v328 = vld [vmem:[%s1 + $0x28] sm:$0xf]
        %v329 = vld [vmem:[%s1 + $0x2c] sm:$0xf]
        %v330 = vld [vmem:[%s1 + $0x30] sm:$0xf]
        %v331 = vld [vmem:[%s1 + $0x34] sm:$0xf]
        %v332 = vld [vmem:[%s1 + $0x38] sm:$0xf]
        %v333 = vld [vmem:[%s1 + $0x3c] sm:$0xf]
        %v334 = vld [vmem:[%s3] sm:$0xf]
        %v335 = vld [vmem:[%s3 + $0x4] sm:$0xf]
        %v336 = vld [vmem:[%s3 + $0x8] sm:$0xf]
        %v337 = vld [vmem:[%s3 + $0xc] sm:$0xf]
        %v338 = vld [vmem:[%s3 + $0x10] sm:$0xf]
        %v339 = vld [vmem:[%s3 + $0x14] sm:$0xf]
        %v340 = vld [vmem:[%s3 + $0x18] sm:$0xf]
        %v341 = vld [vmem:[%s3 + $0x1c] sm:$0xf]
        %v342 = vld [vmem:[%s3 + $0x20] sm:$0xf]
        %v343 = vld [vmem:[%s3 + $0x24] sm:$0xf]
        %v344 = vld [vmem:[%s3 + $0x28] sm:$0xf]
        %v345 = vld [vmem:[%s3 + $0x2c] sm:$0xf]
        %v346 = vld [vmem:[%s3 + $0x30] sm:$0xf]
        %v347 = vld [vmem:[%s3 + $0x34] sm:$0xf]
        %v348 = vld [vmem:[%s3 + $0x38] sm:$0xf]
        %v349 = vld [vmem:[%s3 + $0x3c] sm:$0xf]
        %v350 = vld [vmem:[%s4] sm:$0xf]
        %v351 = vld [vmem:[%s4 + $0x4] sm:$0xf]
        %v352 = vld [vmem:[%s4 + $0x8] sm:$0xf]
        %v353 = vld [vmem:[%s4 + $0xc] sm:$0xf]
        %v354 = vld [vmem:[%s4 + $0x10] sm:$0xf]
        %v355 = vld [vmem:[%s4 + $0x14] sm:$0xf]
        %v356 = vld [vmem:[%s4 + $0x18] sm:$0xf]
        %v357 = vld [vmem:[%s4 + $0x1c] sm:$0xf]
        %v358 = vld [vmem:[%s4 + $0x20] sm:$0xf]
        %v359 = vld [vmem:[%s4 + $0x24] sm:$0xf]
        %v360 = vld [vmem:[%s4 + $0x28] sm:$0xf]
        %v361 = vld [vmem:[%s4 + $0x2c] sm:$0xf]
        %v362 = vld [vmem:[%s4 + $0x30] sm:$0xf]
        %v363 = vld [vmem:[%s4 + $0x34] sm:$0xf]
        %v364 = vld [vmem:[%s4 + $0x38] sm:$0xf]
        %v365 = vld [vmem:[%s4 + $0x3c] sm:$0xf]
        %v366 = vld [vmem:[%s5] sm:$0xf]
        %v367 = vld [vmem:[%s5 + $0x4] sm:$0xf]
        %v368 = vld [vmem:[%s5 + $0x8] sm:$0xf]
        %v369 = vld [vmem:[%s5 + $0xc] sm:$0xf]
        %v370 = vld [vmem:[%s5 + $0x10] sm:$0xf]
        %v371 = vld [vmem:[%s5 + $0x14] sm:$0xf]
        %v372 = vld [vmem:[%s5 + $0x18] sm:$0xf]
        %v373 = vld [vmem:[%s5 + $0x1c] sm:$0xf]
        %v374 = vld [vmem:[%s5 + $0x20] sm:$0xf]
        %v375 = vld [vmem:[%s5 + $0x24] sm:$0xf]
        %v376 = vld [vmem:[%s5 + $0x28] sm:$0xf]
        %v377 = vld [vmem:[%s5 + $0x2c] sm:$0xf]
        %v378 = vld [vmem:[%s5 + $0x30] sm:$0xf]
        %v379 = vld [vmem:[%s5 + $0x34] sm:$0xf]
        %v380 = vld [vmem:[%s5 + $0x38] sm:$0xf]
        %v381 = vld [vmem:[%s5 + $0x3c] sm:$0xf]
        %v382 = vld [vmem:[%s6] sm:$0x1]
        %v383 = vld [vmem:[%s6 + $0x1] sm:$0x1]
        %v384 = vld [vmem:[%s6 + $0x2] sm:$0x1]
        %v385 = vld [vmem:[%s6 + $0x3] sm:$0x1]
        %v386 = vld [vmem:[%s6 + $0x4] sm:$0x1]
        %v387 = vld [vmem:[%s311] sm:$0xf]
        %v388 = vld [vmem:[%s311 + $0x4] sm:$0xf]
        %v389 = vld [vmem:[%s311 + $0x8] sm:$0xf]
        %v390 = vld [vmem:[%s311 + $0xc] sm:$0xf]
        %v391 = vld [vmem:[%s311 + $0x10] sm:$0xf]
        %v392 = vld [vmem:[%s311 + $0x14] sm:$0xf]
        %v393 = vld [vmem:[%s311 + $0x18] sm:$0xf]
        %v394 = vld [vmem:[%s311 + $0x1c] sm:$0xf]
        %v395 = vlaneseq
        %v396 = vshrl.u32 %v395, 7
        %v397 = vsub.s32 0, %v396
        %v398 = vrot.slane %v382, %v397
        %v407 = vunpack.c.l.b16 %v387
        %v408 = vunpack.c.l.b16 %v388
        %v409 = vunpack.c.l.b16 %v389
        %v410 = vunpack.c.l.b16 %v390
        %v411 = vunpack.c.l.b16 %v391
        %v412 = vunpack.c.l.b16 %v392
        %v413 = vunpack.c.l.b16 %v393
        %v414 = vunpack.c.l.b16 %v394
        %v415 = vpack.c.b16 %v408, %v407
        %v416 = vpack.c.b16 %v410, %v409
        %v417 = vpack.c.b16 %v412, %v411
        %v418 = vpack.c.b16 %v414, %v413
        %v439 = vunpack.c.l.b16 %v318
        %v440 = vunpack.c.l.b16 %v319
        %v441 = vunpack.c.l.b16 %v320
        %v442 = vunpack.c.l.b16 %v321
        %v443 = vunpack.c.l.b16 %v322
        %v444 = vunpack.c.l.b16 %v323
        %v445 = vunpack.c.l.b16 %v324
        %v446 = vunpack.c.l.b16 %v325
        %v447 = vunpack.c.l.b16 %v326
        %v448 = vunpack.c.l.b16 %v327
        %v449 = vunpack.c.l.b16 %v328
        %v450 = vunpack.c.l.b16 %v329
        %v451 = vunpack.c.l.b16 %v330
        %v452 = vunpack.c.l.b16 %v331
        %v453 = vunpack.c.l.b16 %v332
        %v454 = vunpack.c.l.b16 %v333
        %v455 = vpack.c.b16 %v440, %v439
        %v456 = vpack.c.b16 %v442, %v441
        %v457 = vpack.c.b16 %v444, %v443
        %v458 = vpack.c.b16 %v446, %v445
        %v459 = vpack.c.b16 %v448, %v447
        %v460 = vpack.c.b16 %v450, %v449
        %v461 = vpack.c.b16 %v452, %v451
        %v462 = vpack.c.b16 %v454, %v453
        %471 = vmatprep.subr.bf16.mxu0 0
        %472 = vmatpush1.bf16.msra.mxu0 %v455
        %473 = vmatprep.subr.bf16.mxu0 0
        %474 = vmatpush1.bf16.msra.mxu0 %v456
        %475 = vmatprep.subr.bf16.mxu0 0
        %476 = vmatpush1.bf16.msra.mxu0 %v457
        %477 = vmatprep.subr.bf16.mxu0 0
        %478 = vmatpush1.bf16.msra.mxu0 %v458
        %479 = vmatprep.subr.bf16.mxu0 0
        %480 = vmatpush1.bf16.msra.mxu0 %v459
        %481 = vmatprep.subr.bf16.mxu0 0
        %482 = vmatpush1.bf16.msra.mxu0 %v460
        %483 = vmatprep.subr.bf16.mxu0 0
        %484 = vmatpush1.bf16.msra.mxu0 %v461
        %485 = vmatprep.subr.bf16.mxu0 0
        %486 = vmatpush1.bf16.msra.mxu0 %v462
        %487 = vmatprep.subr.bf16.mxu0 0
        %488 = vmatpush1.bf16.msra.mxu0 0
        %489 = vmatprep.subr.bf16.mxu0 0
        %490 = vmatpush1.bf16.msra.mxu0 0
        %491 = vmatprep.subr.bf16.mxu0 0
        %492 = vmatpush1.bf16.msra.mxu0 0
        %493 = vmatprep.subr.bf16.mxu0 0
        %494 = vmatpush1.bf16.msra.mxu0 0
        %495 = vmatprep.subr.bf16.mxu0 0
        %496 = vmatpush1.bf16.msra.mxu0 0
        %497 = vmatprep.subr.bf16.mxu0 0
        %498 = vmatpush1.bf16.msra.mxu0 0
        %499 = vmatprep.subr.bf16.mxu0 0
        %500 = vmatpush1.bf16.msra.mxu0 0
        %501 = vmatprep.subr.bf16.mxu0 0
        %502 = vmatpush1.bf16.msra.mxu0 0
        %503 = vmatprep.mubr.bf16.mxu0 0
        %504 = vmatmul.mubr.bf16.gmra.mrb[0].mxu0 %v415
        %v505 = vpop.f32.mrb[0].mxu0
        %v506 = vadd.f32 %v398, %v505
        %v507 = vpop.f32.mrb[0].mxu0
        %v508 = vpop.f32.mrb[0].mxu0
        %v509 = vadd.f32 %v398, %v508
        %v510 = vpop.f32.mrb[0].mxu0
        %511 = vmatprep.mubr.bf16.mxu0 0
        %512 = vmatmul.mubr.bf16.gmra.mrb[0].mxu0 %v416
        %v513 = vpop.f32.mrb[0].mxu0
        %v514 = vadd.f32 %v398, %v513
        %v515 = vpop.f32.mrb[0].mxu0
        %v516 = vpop.f32.mrb[0].mxu0
        %v517 = vadd.f32 %v398, %v516
        %v518 = vpop.f32.mrb[0].mxu0
        %519 = vmatprep.mubr.bf16.mxu0 0
        %520 = vmatmul.mubr.bf16.gmra.mrb[0].mxu0 %v417
        %v521 = vpop.f32.mrb[0].mxu0
        %v522 = vadd.f32 %v398, %v521
        %v523 = vpop.f32.mrb[0].mxu0
        %v524 = vpop.f32.mrb[0].mxu0
        %v525 = vadd.f32 %v398, %v524
        %v526 = vpop.f32.mrb[0].mxu0
        %527 = vmatprep.mubr.bf16.mxu0 0
        %528 = vmatmul.mubr.bf16.gmra.mrb[0].mxu0 %v418
        %v529 = vpop.f32.mrb[0].mxu0
        %v530 = vadd.f32 %v398, %v529
        %v531 = vpop.f32.mrb[0].mxu0
        %v532 = vpop.f32.mrb[0].mxu0
        %v533 = vadd.f32 %v398, %v532
        %v534 = vpop.f32.mrb[0].mxu0
        %535 = vdwg.mxu0
        %v536 = vmax.f32 %v506, 0.0
        %v537 = vmax.f32 %v509, 0.0
        %v538 = vmax.f32 %v514, 0.0
        %v539 = vmax.f32 %v517, 0.0
        %v540 = vmax.f32 %v522, 0.0
        %v541 = vmax.f32 %v525, 0.0
        %v542 = vmax.f32 %v530, 0.0
        %v543 = vmax.f32 %v533, 0.0
        %v544 = vld [vmem:[%s311 + $0x20] sm:$0xf]
        %v545 = vld [vmem:[%s311 + $0x24] sm:$0xf]
        %v546 = vld [vmem:[%s311 + $0x28] sm:$0xf]
        %v547 = vld [vmem:[%s311 + $0x2c] sm:$0xf]
        %v548 = vld [vmem:[%s311 + $0x30] sm:$0xf]
        %v549 = vld [vmem:[%s311 + $0x34] sm:$0xf]
        %v550 = vld [vmem:[%s311 + $0x38] sm:$0xf]
        %v551 = vld [vmem:[%s311 + $0x3c] sm:$0xf]
        %v560 = vunpack.c.l.b16 %v544
        %v561 = vunpack.c.l.b16 %v545
        %v562 = vunpack.c.l.b16 %v546
        %v563 = vunpack.c.l.b16 %v547
        %v564 = vunpack.c.l.b16 %v548
        %v565 = vunpack.c.l.b16 %v549
        %v566 = vunpack.c.l.b16 %v550
        %v567 = vunpack.c.l.b16 %v551
        %v568 = vpack.c.b16 %v561, %v560
        %v569 = vpack.c.b16 %v563, %v562
        %v570 = vpack.c.b16 %v565, %v564
        %v571 = vpack.c.b16 %v567, %v566
        %576 = vmatprep.subr.bf16.mxu0 0
        %577 = vmatpush1.bf16.msra.mxu0 %v455
        %578 = vmatprep.subr.bf16.mxu0 0
        %579 = vmatpush1.bf16.msra.mxu0 %v456
        %580 = vmatprep.subr.bf16.mxu0 0
        %581 = vmatpush1.bf16.msra.mxu0 %v457
        %582 = vmatprep.subr.bf16.mxu0 0
        %583 = vmatpush1.bf16.msra.mxu0 %v458
        %584 = vmatprep.subr.bf16.mxu0 0
        %585 = vmatpush1.bf16.msra.mxu0 %v459
        %586 = vmatprep.subr.bf16.mxu0 0
        %587 = vmatpush1.bf16.msra.mxu0 %v460
        %588 = vmatprep.subr.bf16.mxu0 0
        %589 = vmatpush1.bf16.msra.mxu0 %v461
        %590 = vmatprep.subr.bf16.mxu0 0
        %591 = vmatpush1.bf16.msra.mxu0 %v462
        %592 = vmatprep.subr.bf16.mxu0 0
        %593 = vmatpush1.bf16.msra.mxu0 0
        %594 = vmatprep.subr.bf16.mxu0 0
        %595 = vmatpush1.bf16.msra.mxu0 0
        %596 = vmatprep.subr.bf16.mxu0 0
        %597 = vmatpush1.bf16.msra.mxu0 0
        %598 = vmatprep.subr.bf16.mxu0 0
        %599 = vmatpush1.bf16.msra.mxu0 0
        %600 = vmatprep.subr.bf16.mxu0 0
        %601 = vmatpush1.bf16.msra.mxu0 0
        %602 = vmatprep.subr.bf16.mxu0 0
        %603 = vmatpush1.bf16.msra.mxu0 0
        %604 = vmatprep.subr.bf16.mxu0 0
        %605 = vmatpush1.bf16.msra.mxu0 0
        %606 = vmatprep.subr.bf16.mxu0 0
        %607 = vmatpush1.bf16.msra.mxu0 0
        %608 = vmatprep.mubr.bf16.mxu0 0
        %609 = vmatmul.mubr.bf16.gmra.mrb[0].mxu0 %v568
        %v610 = vpop.f32.mrb[0].mxu0
        %v611 = vadd.f32 %v398, %v610
        %v612 = vpop.f32.mrb[0].mxu0
        %v613 = vpop.f32.mrb[0].mxu0
        %v614 = vadd.f32 %v398, %v613
        %v615 = vpop.f32.mrb[0].mxu0
        %616 = vmatprep.mubr.bf16.mxu0 0
        %617 = vmatmul.mubr.bf16.gmra.mrb[0].mxu0 %v569
        %v618 = vpop.f32.mrb[0].mxu0
        %v619 = vadd.f32 %v398, %v618
        %v620 = vpop.f32.mrb[0].mxu0
        %v621 = vpop.f32.mrb[0].mxu0
        %v622 = vadd.f32 %v398, %v621
        %v623 = vpop.f32.mrb[0].mxu0
        %624 = vmatprep.mubr.bf16.mxu0 0
        %625 = vmatmul.mubr.bf16.gmra.mrb[0].mxu0 %v570
        %v626 = vpop.f32.mrb[0].mxu0
        %v627 = vadd.f32 %v398, %v626
        %v628 = vpop.f32.mrb[0].mxu0
        %v629 = vpop.f32.mrb[0].mxu0
        %v630 = vadd.f32 %v398, %v629
        %v631 = vpop.f32.mrb[0].mxu0
        %632 = vmatprep.mubr.bf16.mxu0 0
        %633 = vmatmul.mubr.bf16.gmra.mrb[0].mxu0 %v571
        %v634 = vpop.f32.mrb[0].mxu0
        %v635 = vadd.f32 %v398, %v634
        %v636 = vpop.f32.mrb[0].mxu0
        %v637 = vpop.f32.mrb[0].mxu0
        %v638 = vadd.f32 %v398, %v637
        %v639 = vpop.f32.mrb[0].mxu0
        %640 = vdwg.mxu0
        %v641 = vmax.f32 %v611, 0.0
        %v642 = vmax.f32 %v614, 0.0
        %v643 = vmax.f32 %v619, 0.0
        %v644 = vmax.f32 %v622, 0.0
        %v645 = vmax.f32 %v627, 0.0
        %v646 = vmax.f32 %v630, 0.0
        %v647 = vmax.f32 %v635, 0.0
        %v648 = vmax.f32 %v638, 0.0
        %v649 = vmax.f32 %v536, %v641
        %v650 = vmax.f32 %v537, %v642
        %v651 = vmax.f32 %v538, %v643
        %v652 = vmax.f32 %v539, %v644
        %v653 = vmax.f32 %v540, %v645
        %v654 = vmax.f32 %v541, %v646
        %v655 = vmax.f32 %v542, %v647
        %v656 = vmax.f32 %v543, %v648
        %v657 = vld [vmem:[%s311 + $0x40] sm:$0xf]
        %v658 = vld [vmem:[%s311 + $0x44] sm:$0xf]
        %v659 = vld [vmem:[%s311 + $0x48] sm:$0xf]
        %v660 = vld [vmem:[%s311 + $0x4c] sm:$0xf]
        %v661 = vld [vmem:[%s311 + $0x50] sm:$0xf]
        %v662 = vld [vmem:[%s311 + $0x54] sm:$0xf]
        %v663 = vld [vmem:[%s311 + $0x58] sm:$0xf]
        %v664 = vld [vmem:[%s311 + $0x5c] sm:$0xf]
        %v673 = vunpack.c.l.b16 %v657
        %v674 = vunpack.c.l.b16 %v658
        %v675 = vunpack.c.l.b16 %v659
        %v676 = vunpack.c.l.b16 %v660
        %v677 = vunpack.c.l.b16 %v661
        %v678 = vunpack.c.l.b16 %v662
        %v679 = vunpack.c.l.b16 %v663
        %v680 = vunpack.c.l.b16 %v664
        %v681 = vpack.c.b16 %v674, %v673
        %v682 = vpack.c.b16 %v676, %v675
        %v683 = vpack.c.b16 %v678, %v677
        %v684 = vpack.c.b16 %v680, %v679
        %689 = vmatprep.subr.bf16.mxu0 0
        %690 = vmatpush1.bf16.msra.mxu0 %v455
        %691 = vmatprep.subr.bf16.mxu0 0
        %692 = vmatpush1.bf16.msra.mxu0 %v456
        %693 = vmatprep.subr.bf16.mxu0 0
        %694 = vmatpush1.bf16.msra.mxu0 %v457
        %695 = vmatprep.subr.bf16.mxu0 0
        %696 = vmatpush1.bf16.msra.mxu0 %v458
        %697 = vmatprep.subr.bf16.mxu0 0
        %698 = vmatpush1.bf16.msra.mxu0 %v459
        %699 = vmatprep.subr.bf16.mxu0 0
        %700 = vmatpush1.bf16.msra.mxu0 %v460
        %701 = vmatprep.subr.bf16.mxu0 0
        %702 = vmatpush1.bf16.msra.mxu0 %v461
        %703 = vmatprep.subr.bf16.mxu0 0
        %704 = vmatpush1.bf16.msra.mxu0 %v462
        %705 = vmatprep.subr.bf16.mxu0 0
        %706 = vmatpush1.bf16.msra.mxu0 0
        %707 = vmatprep.subr.bf16.mxu0 0
        %708 = vmatpush1.bf16.msra.mxu0 0
        %709 = vmatprep.subr.bf16.mxu0 0
        %710 = vmatpush1.bf16.msra.mxu0 0
        %711 = vmatprep.subr.bf16.mxu0 0
        %712 = vmatpush1.bf16.msra.mxu0 0
        %713 = vmatprep.subr.bf16.mxu0 0
        %714 = vmatpush1.bf16.msra.mxu0 0
        %715 = vmatprep.subr.bf16.mxu0 0
        %716 = vmatpush1.bf16.msra.mxu0 0
        %717 = vmatprep.subr.bf16.mxu0 0
        %718 = vmatpush1.bf16.msra.mxu0 0
        %719 = vmatprep.subr.bf16.mxu0 0
        %720 = vmatpush1.bf16.msra.mxu0 0
        %721 = vmatprep.mubr.bf16.mxu0 0
        %722 = vmatmul.mubr.bf16.gmra.mrb[0].mxu0 %v681
        %v723 = vpop.f32.mrb[0].mxu0
        %v724 = vadd.f32 %v398, %v723
        %v725 = vpop.f32.mrb[0].mxu0
        %v726 = vpop.f32.mrb[0].mxu0
        %v727 = vadd.f32 %v398, %v726
        %v728 = vpop.f32.mrb[0].mxu0
        %729 = vmatprep.mubr.bf16.mxu0 0
        %730 = vmatmul.mubr.bf16.gmra.mrb[0].mxu0 %v682
        %v731 = vpop.f32.mrb[0].mxu0
        %v732 = vadd.f32 %v398, %v731
        %v733 = vpop.f32.mrb[0].mxu0
        %v734 = vpop.f32.mrb[0].mxu0
        %v735 = vadd.f32 %v398, %v734
        %v736 = vpop.f32.mrb[0].mxu0
        %737 = vmatprep.mubr.bf16.mxu0 0
        %738 = vmatmul.mubr.bf16.gmra.mrb[0].mxu0 %v683
        %v739 = vpop.f32.mrb[0].mxu0
        %v740 = vadd.f32 %v398, %v739
        %v741 = vpop.f32.mrb[0].mxu0
        %v742 = vpop.f32.mrb[0].mxu0
        %v743 = vadd.f32 %v398, %v742
        %v744 = vpop.f32.mrb[0].mxu0
        %745 = vmatprep.mubr.bf16.mxu0 0
        %746 = vmatmul.mubr.bf16.gmra.mrb[0].mxu0 %v684
        %v747 = vpop.f32.mrb[0].mxu0
        %v748 = vadd.f32 %v398, %v747
        %v749 = vpop.f32.mrb[0].mxu0
        %v750 = vpop.f32.mrb[0].mxu0
        %v751 = vadd.f32 %v398, %v750
        %v752 = vpop.f32.mrb[0].mxu0
        %753 = vdwg.mxu0
        %v754 = vmax.f32 %v724, 0.0
        %v755 = vmax.f32 %v727, 0.0
        %v756 = vmax.f32 %v732, 0.0
        %v757 = vmax.f32 %v735, 0.0
        %v758 = vmax.f32 %v740, 0.0
        %v759 = vmax.f32 %v743, 0.0
        %v760 = vmax.f32 %v748, 0.0
        %v761 = vmax.f32 %v751, 0.0
        %v762 = vmax.f32 %v649, %v754
        %v763 = vmax.f32 %v650, %v755
        %v764 = vmax.f32 %v651, %v756
        %v765 = vmax.f32 %v652, %v757
        %v766 = vmax.f32 %v653, %v758
        %v767 = vmax.f32 %v654, %v759
        %v768 = vmax.f32 %v655, %v760
        %v769 = vmax.f32 %v656, %v761
        %v770 = vld [vmem:[%s311 + $0x60] sm:$0xf]
        %v771 = vld [vmem:[%s311 + $0x64] sm:$0xf]
        %v772 = vld [vmem:[%s311 + $0x68] sm:$0xf]
        %v773 = vld [vmem:[%s311 + $0x6c] sm:$0xf]
        %v774 = vld [vmem:[%s311 + $0x70] sm:$0xf]
        %v775 = vld [vmem:[%s311 + $0x74] sm:$0xf]
        %v776 = vld [vmem:[%s311 + $0x78] sm:$0xf]
        %v777 = vld [vmem:[%s311 + $0x7c] sm:$0xf]
        %v786 = vunpack.c.l.b16 %v770
        %v787 = vunpack.c.l.b16 %v771
        %v788 = vunpack.c.l.b16 %v772
        %v789 = vunpack.c.l.b16 %v773
        %v790 = vunpack.c.l.b16 %v774
        %v791 = vunpack.c.l.b16 %v775
        %v792 = vunpack.c.l.b16 %v776
        %v793 = vunpack.c.l.b16 %v777
        %v794 = vpack.c.b16 %v787, %v786
        %v795 = vpack.c.b16 %v789, %v788
        %v796 = vpack.c.b16 %v791, %v790
        %v797 = vpack.c.b16 %v793, %v792
        %802 = vmatprep.subr.bf16.mxu0 0
        %803 = vmatpush1.bf16.msra.mxu0 %v455
        %804 = vmatprep.subr.bf16.mxu0 0
        %805 = vmatpush1.bf16.msra.mxu0 %v456
        %806 = vmatprep.subr.bf16.mxu0 0
        %807 = vmatpush1.bf16.msra.mxu0 %v457
        %808 = vmatprep.subr.bf16.mxu0 0
        %809 = vmatpush1.bf16.msra.mxu0 %v458
        %810 = vmatprep.subr.bf16.mxu0 0
        %811 = vmatpush1.bf16.msra.mxu0 %v459
        %812 = vmatprep.subr.bf16.mxu0 0
        %813 = vmatpush1.bf16.msra.mxu0 %v460
        %814 = vmatprep.subr.bf16.mxu0 0
        %815 = vmatpush1.bf16.msra.mxu0 %v461
        %816 = vmatprep.subr.bf16.mxu0 0
        %817 = vmatpush1.bf16.msra.mxu0 %v462
        %818 = vmatprep.subr.bf16.mxu0 0
        %819 = vmatpush1.bf16.msra.mxu0 0
        %820 = vmatprep.subr.bf16.mxu0 0
        %821 = vmatpush1.bf16.msra.mxu0 0
        %822 = vmatprep.subr.bf16.mxu0 0
        %823 = vmatpush1.bf16.msra.mxu0 0
        %824 = vmatprep.subr.bf16.mxu0 0
        %825 = vmatpush1.bf16.msra.mxu0 0
        %826 = vmatprep.subr.bf16.mxu0 0
        %827 = vmatpush1.bf16.msra.mxu0 0
        %828 = vmatprep.subr.bf16.mxu0 0
        %829 = vmatpush1.bf16.msra.mxu0 0
        %830 = vmatprep.subr.bf16.mxu0 0
        %831 = vmatpush1.bf16.msra.mxu0 0
        %832 = vmatprep.subr.bf16.mxu0 0
        %833 = vmatpush1.bf16.msra.mxu0 0
        %834 = vmatprep.mubr.bf16.mxu0 0
        %835 = vmatmul.mubr.bf16.gmra.mrb[0].mxu0 %v794
        %v836 = vpop.f32.mrb[0].mxu0
        %v837 = vadd.f32 %v398, %v836
        %v838 = vpop.f32.mrb[0].mxu0
        %v839 = vpop.f32.mrb[0].mxu0
        %v840 = vadd.f32 %v398, %v839
        %v841 = vpop.f32.mrb[0].mxu0
        %842 = vmatprep.mubr.bf16.mxu0 0
        %843 = vmatmul.mubr.bf16.gmra.mrb[0].mxu0 %v795
        %v844 = vpop.f32.mrb[0].mxu0
        %v845 = vadd.f32 %v398, %v844
        %v846 = vpop.f32.mrb[0].mxu0
        %v847 = vpop.f32.mrb[0].mxu0
        %v848 = vadd.f32 %v398, %v847
        %v849 = vpop.f32.mrb[0].mxu0
        %850 = vmatprep.mubr.bf16.mxu0 0
        %851 = vmatmul.mubr.bf16.gmra.mrb[0].mxu0 %v796
        %v852 = vpop.f32.mrb[0].mxu0
        %v853 = vadd.f32 %v398, %v852
        %v854 = vpop.f32.mrb[0].mxu0
        %v855 = vpop.f32.mrb[0].mxu0
        %v856 = vadd.f32 %v398, %v855
        %v857 = vpop.f32.mrb[0].mxu0
        %858 = vmatprep.mubr.bf16.mxu0 0
        %859 = vmatmul.mubr.bf16.gmra.mrb[0].mxu0 %v797
        %v860 = vpop.f32.mrb[0].mxu0
        %v861 = vadd.f32 %v398, %v860
        %v862 = vpop.f32.mrb[0].mxu0
        %v863 = vpop.f32.mrb[0].mxu0
        %v864 = vadd.f32 %v398, %v863
        %v865 = vpop.f32.mrb[0].mxu0
        %866 = vdwg.mxu0
        %v867 = vmax.f32 %v837, 0.0
        %v868 = vmax.f32 %v840, 0.0
        %v869 = vmax.f32 %v845, 0.0
        %v870 = vmax.f32 %v848, 0.0
        %v871 = vmax.f32 %v853, 0.0
        %v872 = vmax.f32 %v856, 0.0
        %v873 = vmax.f32 %v861, 0.0
        %v874 = vmax.f32 %v864, 0.0
        %v875 = vmax.f32 %v762, %v867
        %v876 = vmax.f32 %v763, %v868
        %v877 = vmax.f32 %v764, %v869
        %v878 = vmax.f32 %v765, %v870
        %v879 = vmax.f32 %v766, %v871
        %v880 = vmax.f32 %v767, %v872
        %v881 = vmax.f32 %v768, %v873
        %v882 = vmax.f32 %v769, %v874
        %883 = vst [vmem:[#allocation2] sm:$0xff] 0
        %884 = vst [vmem:[#allocation2 + $0x8] sm:$0xff] 0
        %885 = vst [vmem:[#allocation2 + $0x50] sm:$0xff] 0
        %v886 = vpack.c.bf16 %v875, %v875
        %vm887 = vcmask 1043456
        %v890 = vsel %vm887, %v886, 0
        %892 = vst [vmem:[#allocation2 + $0x10] sm:$0xff] %v890
        %v893 = vpack.c.bf16 %v876, %v876
        %v895 = vsel %vm887, %v893, 0
        %897 = vst [vmem:[#allocation2 + $0x18] sm:$0xff] %v895
        %v898 = vpack.c.bf16 %v877, %v877
        %v900 = vsel %vm887, %v898, 0
        %902 = vst [vmem:[#allocation2 + $0x20] sm:$0xff] %v900
        %v903 = vpack.c.bf16 %v878, %v878
        %v905 = vsel %vm887, %v903, 0
        %907 = vst [vmem:[#allocation2 + $0x28] sm:$0xff] %v905
        %v908 = vpack.c.bf16 %v879, %v879
        %v910 = vsel %vm887, %v908, 0
        %912 = vst [vmem:[#allocation2 + $0x30] sm:$0xff] %v910
        %v913 = vpack.c.bf16 %v880, %v880
        %v915 = vsel %vm887, %v913, 0
        %917 = vst [vmem:[#allocation2 + $0x38] sm:$0xff] %v915
        %v918 = vpack.c.bf16 %v881, %v881
        %v920 = vsel %vm887, %v918, 0
        %922 = vst [vmem:[#allocation2 + $0x40] sm:$0xff] %v920
        %v923 = vpack.c.bf16 %v882, %v882
        %v925 = vsel %vm887, %v923, 0
        %927 = vst [vmem:[#allocation2 + $0x48] sm:$0xff] %v925
        %v928 = vld [vmem:[#allocation2] sm:$0x80]
        %v929 = vld [vmem:[#allocation2 + $0x8] sm:$0xff]
        %v930 = vld [vmem:[#allocation2 + $0x10] sm:$0xff]
        %v931 = vld [vmem:[#allocation2 + $0x18] sm:$0xff]
        %v932 = vld [vmem:[#allocation2 + $0x20] sm:$0xff]
        %v933 = vld [vmem:[#allocation2 + $0x28] sm:$0xff]
        %v934 = vld [vmem:[#allocation2 + $0x30] sm:$0xff]
        %v935 = vld [vmem:[#allocation2 + $0x38] sm:$0xff]
        %v936 = vld [vmem:[#allocation2 + $0x40] sm:$0xf]
        %v937 = vld [vmem:[%s2] sm:$0xf]
        %v938 = vld [vmem:[%s2 + $0x4] sm:$0xf]
        %v939 = vld [vmem:[%s2 + $0x8] sm:$0xf]
        %v940 = vld [vmem:[%s2 + $0xc] sm:$0xf]
        %v941 = vld [vmem:[%s2 + $0x10] sm:$0xf]
        %v942 = vld [vmem:[%s2 + $0x14] sm:$0xf]
        %v943 = vld [vmem:[%s2 + $0x18] sm:$0xf]
        %v944 = vld [vmem:[%s2 + $0x1c] sm:$0xf]
        %v945 = vld [vmem:[%s2 + $0x20] sm:$0xf]
        %v946 = vld [vmem:[%s2 + $0x24] sm:$0xf]
        %v947 = vld [vmem:[%s2 + $0x28] sm:$0xf]
        %v948 = vld [vmem:[%s2 + $0x2c] sm:$0xf]
        %v949 = vld [vmem:[%s2 + $0x30] sm:$0xf]
        %v950 = vld [vmem:[%s2 + $0x34] sm:$0xf]
        %v951 = vld [vmem:[%s2 + $0x38] sm:$0xf]
        %v952 = vld [vmem:[%s2 + $0x3c] sm:$0xf]
        %s953 = scalar_lea.vmem %s2, 64
        %v954 = vld [vmem:[%s953] sm:$0xf]
        %v955 = vld [vmem:[%s953 + $0x4] sm:$0xf]
        %v956 = vld [vmem:[%s953 + $0x8] sm:$0xf]
        %v957 = vld [vmem:[%s953 + $0xc] sm:$0xf]
        %v958 = vld [vmem:[%s953 + $0x10] sm:$0xf]
        %v959 = vld [vmem:[%s953 + $0x14] sm:$0xf]
        %v960 = vld [vmem:[%s953 + $0x18] sm:$0xf]
        %v961 = vld [vmem:[%s953 + $0x1c] sm:$0xf]
        %v962 = vld [vmem:[%s953 + $0x20] sm:$0xf]
        %v963 = vld [vmem:[%s953 + $0x24] sm:$0xf]
        %v964 = vld [vmem:[%s953 + $0x28] sm:$0xf]
        %v965 = vld [vmem:[%s953 + $0x2c] sm:$0xf]
        %v966 = vld [vmem:[%s953 + $0x30] sm:$0xf]
        %v967 = vld [vmem:[%s953 + $0x34] sm:$0xf]
        %v968 = vld [vmem:[%s953 + $0x38] sm:$0xf]
        %v969 = vld [vmem:[%s953 + $0x3c] sm:$0xf]
        %v986 = vunpack.c.l.b16 %v954
        %v987 = vunpack.c.l.b16 %v955
        %v988 = vunpack.c.l.b16 %v956
        %v989 = vunpack.c.l.b16 %v957
        %v990 = vunpack.c.l.b16 %v958
        %v991 = vunpack.c.l.b16 %v959
        %v992 = vunpack.c.l.b16 %v960
        %v993 = vunpack.c.l.b16 %v961
        %v994 = vunpack.c.l.b16 %v962
        %v995 = vunpack.c.l.b16 %v963
        %v996 = vunpack.c.l.b16 %v964
        %v997 = vunpack.c.l.b16 %v965
        %v998 = vunpack.c.l.b16 %v966
        %v999 = vunpack.c.l.b16 %v967
        %v1000 = vunpack.c.l.b16 %v968
        %v1001 = vunpack.c.l.b16 %v969
        %v1002 = vpack.c.b16 %v987, %v986
        %v1003 = vpack.c.b16 %v989, %v988
        %v1004 = vpack.c.b16 %v991, %v990
        %v1005 = vpack.c.b16 %v993, %v992
        %v1006 = vpack.c.b16 %v995, %v994
        %v1007 = vpack.c.b16 %v997, %v996
        %v1008 = vpack.c.b16 %v999, %v998
        %v1009 = vpack.c.b16 %v1001, %v1000
        %1018 = vmatprep.subr.bf16.mxu0 0
        %1019 = vmatpush1.bf16.msra.mxu0 %v1002
        %1020 = vmatprep.subr.bf16.mxu0 0
        %1021 = vmatpush1.bf16.msra.mxu0 %v1003
        %1022 = vmatprep.subr.bf16.mxu0 0
        %1023 = vmatpush1.bf16.msra.mxu0 %v1004
        %1024 = vmatprep.subr.bf16.mxu0 0
        %1025 = vmatpush1.bf16.msra.mxu0 %v1005
        %1026 = vmatprep.subr.bf16.mxu0 0
        %1027 = vmatpush1.bf16.msra.mxu0 %v1006
        %1028 = vmatprep.subr.bf16.mxu0 0
        %1029 = vmatpush1.bf16.msra.mxu0 %v1007
        %1030 = vmatprep.subr.bf16.mxu0 0
        %1031 = vmatpush1.bf16.msra.mxu0 %v1008
        %1032 = vmatprep.subr.bf16.mxu0 0
        %1033 = vmatpush1.bf16.msra.mxu0 %v1009
        %1034 = vmatprep.subr.bf16.mxu0 0
        %1035 = vmatpush1.bf16.msra.mxu0 0
        %1036 = vmatprep.subr.bf16.mxu0 0
        %1037 = vmatpush1.bf16.msra.mxu0 0
        %1038 = vmatprep.subr.bf16.mxu0 0
        %1039 = vmatpush1.bf16.msra.mxu0 0
        %1040 = vmatprep.subr.bf16.mxu0 0
        %1041 = vmatpush1.bf16.msra.mxu0 0
        %1042 = vmatprep.subr.bf16.mxu0 0
        %1043 = vmatpush1.bf16.msra.mxu0 0
        %1044 = vmatprep.subr.bf16.mxu0 0
        %1045 = vmatpush1.bf16.msra.mxu0 0
        %1046 = vmatprep.subr.bf16.mxu0 0
        %1047 = vmatpush1.bf16.msra.mxu0 0
        %1048 = vmatprep.subr.bf16.mxu0 0
        %1049 = vmatpush1.bf16.msra.mxu0 0
        %1050 = vmatprep.mubr.bf16.mxu0 0
        %1051 = vmatmul.mubr.bf16.gmra.mrb[0].mxu0 %v929
        %v1052 = vpop.f32.mrb[0].mxu0
        %v1053 = vadd.f32 0.0, %v1052
        %v1054 = vpop.f32.mrb[0].mxu0
        %v1055 = vpop.f32.mrb[0].mxu0
        %v1056 = vadd.f32 0.0, %v1055
        %v1057 = vpop.f32.mrb[0].mxu0
        %1058 = vmatprep.mubr.bf16.mxu0 0
        %1059 = vmatmul.mubr.bf16.gmra.mrb[0].mxu0 %v930
        %v1060 = vpop.f32.mrb[0].mxu0
        %v1061 = vadd.f32 0.0, %v1060
        %v1062 = vpop.f32.mrb[0].mxu0
        %v1063 = vpop.f32.mrb[0].mxu0
        %v1064 = vadd.f32 0.0, %v1063
        %v1065 = vpop.f32.mrb[0].mxu0
        %1066 = vmatprep.mubr.bf16.mxu0 0
        %1067 = vmatmul.mubr.bf16.gmra.mrb[0].mxu0 %v931
        %v1068 = vpop.f32.mrb[0].mxu0
        %v1069 = vadd.f32 0.0, %v1068
        %v1070 = vpop.f32.mrb[0].mxu0
        %v1071 = vpop.f32.mrb[0].mxu0
        %v1072 = vadd.f32 0.0, %v1071
        %v1073 = vpop.f32.mrb[0].mxu0
        %1074 = vmatprep.mubr.bf16.mxu0 0
        %1075 = vmatmul.mubr.bf16.gmra.mrb[0].mxu0 %v932
        %v1076 = vpop.f32.mrb[0].mxu0
        %v1077 = vadd.f32 0.0, %v1076
        %v1078 = vpop.f32.mrb[0].mxu0
        %v1079 = vpop.f32.mrb[0].mxu0
        %v1080 = vadd.f32 0.0, %v1079
        %v1081 = vpop.f32.mrb[0].mxu0
        %1082 = vmatprep.mubr.bf16.mxu0 0
        %1083 = vmatmul.mubr.bf16.gmra.mrb[0].mxu0 %v933
        %v1084 = vpop.f32.mrb[0].mxu0
        %v1085 = vadd.f32 0.0, %v1084
        %v1086 = vpop.f32.mrb[0].mxu0
        %v1087 = vpop.f32.mrb[0].mxu0
        %v1088 = vadd.f32 0.0, %v1087
        %v1089 = vpop.f32.mrb[0].mxu0
        %1090 = vmatprep.mubr.bf16.mxu0 0
        %1091 = vmatmul.mubr.bf16.gmra.mrb[0].mxu0 %v934
        %v1092 = vpop.f32.mrb[0].mxu0
        %v1093 = vadd.f32 0.0, %v1092
        %v1094 = vpop.f32.mrb[0].mxu0
        %v1095 = vpop.f32.mrb[0].mxu0
        %v1096 = vadd.f32 0.0, %v1095
        %v1097 = vpop.f32.mrb[0].mxu0
        %1098 = vmatprep.mubr.bf16.mxu0 0
        %1099 = vmatmul.mubr.bf16.gmra.mrb[0].mxu0 %v935
        %v1100 = vpop.f32.mrb[0].mxu0
        %v1101 = vadd.f32 0.0, %v1100
        %v1102 = vpop.f32.mrb[0].mxu0
        %v1103 = vpop.f32.mrb[0].mxu0
        %v1104 = vadd.f32 0.0, %v1103
        %v1105 = vpop.f32.mrb[0].mxu0
        %1106 = vmatprep.mubr.bf16.mxu0 0
        %1107 = vmatmul.mubr.bf16.gmra.mrb[0].mxu0 %v936
        %v1108 = vpop.f32.mrb[0].mxu0
        %v1109 = vadd.f32 0.0, %v1108
        %v1110 = vpop.f32.mrb[0].mxu0
        %v1111 = vpop.f32.mrb[0].mxu0
        %v1112 = vpop.f32.mrb[0].mxu0
        %1113 = vdwg.mxu0
        %vm1114 = vsmask.f32 256
        %v1116 = vshrl.u32 %v928, 16
        %v1118 = vrot.slane %v1116, 7
        %v1120 = vshrl.u32 %v929, 16
        %v1122 = vrot.slane %v1120, 7
        %v1123 = vshll.u32 %v929, 16
        %v1125 = vor.u32 %v1122, %v1123
        %v1126 = vsel %vm1114, %v1118, %v1125
        %v1128 = vshrl.u32 %v930, 16
        %v1130 = vrot.slane %v1128, 7
        %v1131 = vshll.u32 %v930, 16
        %v1133 = vor.u32 %v1130, %v1131
        %v1134 = vsel %vm1114, %v1122, %v1133
        %v1136 = vshrl.u32 %v931, 16
        %v1138 = vrot.slane %v1136, 7
        %v1139 = vshll.u32 %v931, 16
        %v1141 = vor.u32 %v1138, %v1139
        %v1142 = vsel %vm1114, %v1130, %v1141
        %v1144 = vshrl.u32 %v932, 16
        %v1146 = vrot.slane %v1144, 7
        %v1147 = vshll.u32 %v932, 16
        %v1149 = vor.u32 %v1146, %v1147
        %v1150 = vsel %vm1114, %v1138, %v1149
        %v1152 = vshrl.u32 %v933, 16
        %v1154 = vrot.slane %v1152, 7
        %v1155 = vshll.u32 %v933, 16
        %v1157 = vor.u32 %v1154, %v1155
        %v1158 = vsel %vm1114, %v1146, %v1157
        %v1160 = vshrl.u32 %v934, 16
        %v1162 = vrot.slane %v1160, 7
        %v1163 = vshll.u32 %v934, 16
        %v1165 = vor.u32 %v1162, %v1163
        %v1166 = vsel %vm1114, %v1154, %v1165
        %v1168 = vshrl.u32 %v935, 16
        %v1170 = vrot.slane %v1168, 7
        %v1171 = vshll.u32 %v935, 16
        %v1173 = vor.u32 %v1170, %v1171
        %v1174 = vsel %vm1114, %v1162, %v1173
        %v1176 = vshrl.u32 %v936, 16
        %v1178 = vrot.slane %v1176, 7
        %v1179 = vshll.u32 %v936, 16
        %v1181 = vor.u32 %v1178, %v1179
        %v1182 = vsel %vm1114, %v1170, %v1181
        %v1207 = vunpack.c.l.b16 %v937
        %v1208 = vunpack.c.l.b16 %v938
        %v1209 = vunpack.c.l.b16 %v939
        %v1210 = vunpack.c.l.b16 %v940
        %v1211 = vunpack.c.l.b16 %v941
        %v1212 = vunpack.c.l.b16 %v942
        %v1213 = vunpack.c.l.b16 %v943
        %v1214 = vunpack.c.l.b16 %v944
        %v1215 = vunpack.c.l.b16 %v945
        %v1216 = vunpack.c.l.b16 %v946
        %v1217 = vunpack.c.l.b16 %v947
        %v1218 = vunpack.c.l.b16 %v948
        %v1219 = vunpack.c.l.b16 %v949
        %v1220 = vunpack.c.l.b16 %v950
        %v1221 = vunpack.c.l.b16 %v951
        %v1222 = vunpack.c.l.b16 %v952
        %v1223 = vpack.c.b16 %v1208, %v1207
        %v1224 = vpack.c.b16 %v1210, %v1209
        %v1225 = vpack.c.b16 %v1212, %v1211
        %v1226 = vpack.c.b16 %v1214, %v1213
        %v1227 = vpack.c.b16 %v1216, %v1215
        %v1228 = vpack.c.b16 %v1218, %v1217
        %v1229 = vpack.c.b16 %v1220, %v1219
        %v1230 = vpack.c.b16 %v1222, %v1221
        %1239 = vmatprep.subr.bf16.mxu0 0
        %1240 = vmatpush1.bf16.msra.mxu0 %v1223
        %1241 = vmatprep.subr.bf16.mxu0 0
        %1242 = vmatpush1.bf16.msra.mxu0 %v1224
        %1243 = vmatprep.subr.bf16.mxu0 0
        %1244 = vmatpush1.bf16.msra.mxu0 %v1225
        %1245 = vmatprep.subr.bf16.mxu0 0
        %1246 = vmatpush1.bf16.msra.mxu0 %v1226
        %1247 = vmatprep.subr.bf16.mxu0 0
        %1248 = vmatpush1.bf16.msra.mxu0 %v1227
        %1249 = vmatprep.subr.bf16.mxu0 0
        %1250 = vmatpush1.bf16.msra.mxu0 %v1228
        %1251 = vmatprep.subr.bf16.mxu0 0
        %1252 = vmatpush1.bf16.msra.mxu0 %v1229
        %1253 = vmatprep.subr.bf16.mxu0 0
        %1254 = vmatpush1.bf16.msra.mxu0 %v1230
        %1255 = vmatprep.subr.bf16.mxu0 0
        %1256 = vmatpush1.bf16.msra.mxu0 0
        %1257 = vmatprep.subr.bf16.mxu0 0
        %1258 = vmatpush1.bf16.msra.mxu0 0
        %1259 = vmatprep.subr.bf16.mxu0 0
        %1260 = vmatpush1.bf16.msra.mxu0 0
        %1261 = vmatprep.subr.bf16.mxu0 0
        %1262 = vmatpush1.bf16.msra.mxu0 0
        %1263 = vmatprep.subr.bf16.mxu0 0
        %1264 = vmatpush1.bf16.msra.mxu0 0
        %1265 = vmatprep.subr.bf16.mxu0 0
        %1266 = vmatpush1.bf16.msra.mxu0 0
        %1267 = vmatprep.subr.bf16.mxu0 0
        %1268 = vmatpush1.bf16.msra.mxu0 0
        %1269 = vmatprep.subr.bf16.mxu0 0
        %1270 = vmatpush1.bf16.msra.mxu0 0
        %1271 = vmatprep.mubr.bf16.mxu0 0
        %1272 = vmatmul.mubr.bf16.gmra.mrb[0].mxu0 %v1126
        %v1273 = vpop.f32.mrb[0].mxu0
        %v1274 = vadd.f32 %v1053, %v1273
        %v1275 = vpop.f32.mrb[0].mxu0
        %v1276 = vpop.f32.mrb[0].mxu0
        %v1277 = vadd.f32 %v1056, %v1276
        %v1278 = vpop.f32.mrb[0].mxu0
        %1279 = vmatprep.mubr.bf16.mxu0 0
        %1280 = vmatmul.mubr.bf16.gmra.mrb[0].mxu0 %v1134
        %v1281 = vpop.f32.mrb[0].mxu0
        %v1282 = vadd.f32 %v1061, %v1281
        %v1283 = vpop.f32.mrb[0].mxu0
        %v1284 = vpop.f32.mrb[0].mxu0
        %v1285 = vadd.f32 %v1064, %v1284
        %v1286 = vpop.f32.mrb[0].mxu0
        %1287 = vmatprep.mubr.bf16.mxu0 0
        %1288 = vmatmul.mubr.bf16.gmra.mrb[0].mxu0 %v1142
        %v1289 = vpop.f32.mrb[0].mxu0
        %v1290 = vadd.f32 %v1069, %v1289
        %v1291 = vpop.f32.mrb[0].mxu0
        %v1292 = vpop.f32.mrb[0].mxu0
        %v1293 = vadd.f32 %v1072, %v1292
        %v1294 = vpop.f32.mrb[0].mxu0
        %1295 = vmatprep.mubr.bf16.mxu0 0
        %1296 = vmatmul.mubr.bf16.gmra.mrb[0].mxu0 %v1150
        %v1297 = vpop.f32.mrb[0].mxu0
        %v1298 = vadd.f32 %v1077, %v1297
        %v1299 = vpop.f32.mrb[0].mxu0
        %v1300 = vpop.f32.mrb[0].mxu0
        %v1301 = vadd.f32 %v1080, %v1300
        %v1302 = vpop.f32.mrb[0].mxu0
        %1303 = vmatprep.mubr.bf16.mxu0 0
        %1304 = vmatmul.mubr.bf16.gmra.mrb[0].mxu0 %v1158
        %v1305 = vpop.f32.mrb[0].mxu0
        %v1306 = vadd.f32 %v1085, %v1305
        %v1307 = vpop.f32.mrb[0].mxu0
        %v1308 = vpop.f32.mrb[0].mxu0
        %v1309 = vadd.f32 %v1088, %v1308
        %v1310 = vpop.f32.mrb[0].mxu0
        %1311 = vmatprep.mubr.bf16.mxu0 0
        %1312 = vmatmul.mubr.bf16.gmra.mrb[0].mxu0 %v1166
        %v1313 = vpop.f32.mrb[0].mxu0
        %v1314 = vadd.f32 %v1093, %v1313
        %v1315 = vpop.f32.mrb[0].mxu0
        %v1316 = vpop.f32.mrb[0].mxu0
        %v1317 = vadd.f32 %v1096, %v1316
        %v1318 = vpop.f32.mrb[0].mxu0
        %1319 = vmatprep.mubr.bf16.mxu0 0
        %1320 = vmatmul.mubr.bf16.gmra.mrb[0].mxu0 %v1174
        %v1321 = vpop.f32.mrb[0].mxu0
        %v1322 = vadd.f32 %v1101, %v1321
        %v1323 = vpop.f32.mrb[0].mxu0
        %v1324 = vpop.f32.mrb[0].mxu0
        %v1325 = vadd.f32 %v1104, %v1324
        %v1326 = vpop.f32.mrb[0].mxu0
        %1327 = vmatprep.mubr.bf16.mxu0 0
        %1328 = vmatmul.mubr.bf16.gmra.mrb[0].mxu0 %v1182
        %v1329 = vpop.f32.mrb[0].mxu0
        %v1330 = vadd.f32 %v1109, %v1329
        %v1331 = vpop.f32.mrb[0].mxu0
        %v1332 = vpop.f32.mrb[0].mxu0
        %v1333 = vpop.f32.mrb[0].mxu0
        %1334 = vdwg.mxu0
        %v1335 = vld [vmem:[#allocation2 + $0x40] sm:$0x1f]
        %s1336 = scalar_lea.vmem %s2, 128
        %v1337 = vld [vmem:[%s1336] sm:$0xf]
        %v1338 = vld [vmem:[%s1336 + $0x4] sm:$0xf]
        %v1339 = vld [vmem:[%s1336 + $0x8] sm:$0xf]
        %v1340 = vld [vmem:[%s1336 + $0xc] sm:$0xf]
        %v1341 = vld [vmem:[%s1336 + $0x10] sm:$0xf]
        %v1342 = vld [vmem:[%s1336 + $0x14] sm:$0xf]
        %v1343 = vld [vmem:[%s1336 + $0x18] sm:$0xf]
        %v1344 = vld [vmem:[%s1336 + $0x1c] sm:$0xf]
        %v1345 = vld [vmem:[%s1336 + $0x20] sm:$0xf]
        %v1346 = vld [vmem:[%s1336 + $0x24] sm:$0xf]
        %v1347 = vld [vmem:[%s1336 + $0x28] sm:$0xf]
        %v1348 = vld [vmem:[%s1336 + $0x2c] sm:$0xf]
        %v1349 = vld [vmem:[%s1336 + $0x30] sm:$0xf]
        %v1350 = vld [vmem:[%s1336 + $0x34] sm:$0xf]
        %v1351 = vld [vmem:[%s1336 + $0x38] sm:$0xf]
        %v1352 = vld [vmem:[%s1336 + $0x3c] sm:$0xf]
        %vm1353 = vsmask.f32 7424
        %v1354 = vrot.slane %v1123, 1
        %v1355 = vor.u32 %v1120, %v1354
        %v1356 = vrot.slane %v1131, 1
        %v1357 = vsel %vm1353, %v1355, %v1356
        %v1358 = vor.u32 %v1128, %v1356
        %v1359 = vrot.slane %v1139, 1
        %v1360 = vsel %vm1353, %v1358, %v1359
        %v1361 = vor.u32 %v1136, %v1359
        %v1362 = vrot.slane %v1147, 1
        %v1363 = vsel %vm1353, %v1361, %v1362
        %v1364 = vor.u32 %v1144, %v1362
        %v1365 = vrot.slane %v1155, 1
        %v1366 = vsel %vm1353, %v1364, %v1365
        %v1367 = vor.u32 %v1152, %v1365
        %v1368 = vrot.slane %v1163, 1
        %v1369 = vsel %vm1353, %v1367, %v1368
        %v1370 = vor.u32 %v1160, %v1368
        %v1371 = vrot.slane %v1171, 1
        %v1372 = vsel %vm1353, %v1370, %v1371
        %v1373 = vor.u32 %v1168, %v1371
        %v1375 = vshll.u32 %v1335, 16
        %v1377 = vrot.slane %v1375, 1
        %v1378 = vsel %vm1353, %v1373, %v1377
        %v1379 = vshrl.u32 %v1335, 16
        %v1381 = vor.u32 %v1379, %v1377
        %v1406 = vunpack.c.l.b16 %v1337
        %v1407 = vunpack.c.l.b16 %v1338
        %v1408 = vunpack.c.l.b16 %v1339
        %v1409 = vunpack.c.l.b16 %v1340
        %v1410 = vunpack.c.l.b16 %v1341
        %v1411 = vunpack.c.l.b16 %v1342
        %v1412 = vunpack.c.l.b16 %v1343
        %v1413 = vunpack.c.l.b16 %v1344
        %v1414 = vunpack.c.l.b16 %v1345
        %v1415 = vunpack.c.l.b16 %v1346
        %v1416 = vunpack.c.l.b16 %v1347
        %v1417 = vunpack.c.l.b16 %v1348
        %v1418 = vunpack.c.l.b16 %v1349
        %v1419 = vunpack.c.l.b16 %v1350
        %v1420 = vunpack.c.l.b16 %v1351
        %v1421 = vunpack.c.l.b16 %v1352
        %v1422 = vpack.c.b16 %v1407, %v1406
        %v1423 = vpack.c.b16 %v1409, %v1408
        %v1424 = vpack.c.b16 %v1411, %v1410
        %v1425 = vpack.c.b16 %v1413, %v1412
        %v1426 = vpack.c.b16 %v1415, %v1414
        %v1427 = vpack.c.b16 %v1417, %v1416
        %v1428 = vpack.c.b16 %v1419, %v1418
        %v1429 = vpack.c.b16 %v1421, %v1420
        %1438 = vmatprep.subr.bf16.mxu0 0
        %1439 = vmatpush1.bf16.msra.mxu0 %v1422
        %1440 = vmatprep.subr.bf16.mxu0 0
        %1441 = vmatpush1.bf16.msra.mxu0 %v1423
        %1442 = vmatprep.subr.bf16.mxu0 0
        %1443 = vmatpush1.bf16.msra.mxu0 %v1424
        %1444 = vmatprep.subr.bf16.mxu0 0
        %1445 = vmatpush1.bf16.msra.mxu0 %v1425
        %1446 = vmatprep.subr.bf16.mxu0 0
        %1447 = vmatpush1.bf16.msra.mxu0 %v1426
        %1448 = vmatprep.subr.bf16.mxu0 0
        %1449 = vmatpush1.bf16.msra.mxu0 %v1427
        %1450 = vmatprep.subr.bf16.mxu0 0
        %1451 = vmatpush1.bf16.msra.mxu0 %v1428
        %1452 = vmatprep.subr.bf16.mxu0 0
        %1453 = vmatpush1.bf16.msra.mxu0 %v1429
        %1454 = vmatprep.subr.bf16.mxu0 0
        %1455 = vmatpush1.bf16.msra.mxu0 0
        %1456 = vmatprep.subr.bf16.mxu0 0
        %1457 = vmatpush1.bf16.msra.mxu0 0
        %1458 = vmatprep.subr.bf16.mxu0 0
        %1459 = vmatpush1.bf16.msra.mxu0 0
        %1460 = vmatprep.subr.bf16.mxu0 0
        %1461 = vmatpush1.bf16.msra.mxu0 0
        %1462 = vmatprep.subr.bf16.mxu0 0
        %1463 = vmatpush1.bf16.msra.mxu0 0
        %1464 = vmatprep.subr.bf16.mxu0 0
        %1465 = vmatpush1.bf16.msra.mxu0 0
        %1466 = vmatprep.subr.bf16.mxu0 0
        %1467 = vmatpush1.bf16.msra.mxu0 0
        %1468 = vmatprep.subr.bf16.mxu0 0
        %1469 = vmatpush1.bf16.msra.mxu0 0
        %1470 = vmatprep.mubr.bf16.mxu0 0
        %1471 = vmatmul.mubr.bf16.gmra.mrb[0].mxu0 %v1357
        %v1472 = vpop.f32.mrb[0].mxu0
        %v1473 = vadd.f32 0.0, %v1472
        %v1474 = vpop.f32.mrb[0].mxu0
        %v1475 = vpop.f32.mrb[0].mxu0
        %v1476 = vadd.f32 0.0, %v1475
        %v1477 = vpop.f32.mrb[0].mxu0
        %1478 = vmatprep.mubr.bf16.mxu0 0
        %1479 = vmatmul.mubr.bf16.gmra.mrb[0].mxu0 %v1360
        %v1480 = vpop.f32.mrb[0].mxu0
        %v1481 = vadd.f32 0.0, %v1480
        %v1482 = vpop.f32.mrb[0].mxu0
        %v1483 = vpop.f32.mrb[0].mxu0
        %v1484 = vadd.f32 0.0, %v1483
        %v1485 = vpop.f32.mrb[0].mxu0
        %1486 = vmatprep.mubr.bf16.mxu0 0
        %1487 = vmatmul.mubr.bf16.gmra.mrb[0].mxu0 %v1363
        %v1488 = vpop.f32.mrb[0].mxu0
        %v1489 = vadd.f32 0.0, %v1488
        %v1490 = vpop.f32.mrb[0].mxu0
        %v1491 = vpop.f32.mrb[0].mxu0
        %v1492 = vadd.f32 0.0, %v1491
        %v1493 = vpop.f32.mrb[0].mxu0
        %1494 = vmatprep.mubr.bf16.mxu0 0
        %1495 = vmatmul.mubr.bf16.gmra.mrb[0].mxu0 %v1366
        %v1496 = vpop.f32.mrb[0].mxu0
        %v1497 = vadd.f32 0.0, %v1496
        %v1498 = vpop.f32.mrb[0].mxu0
        %v1499 = vpop.f32.mrb[0].mxu0
        %v1500 = vadd.f32 0.0, %v1499
        %v1501 = vpop.f32.mrb[0].mxu0
        %1502 = vmatprep.mubr.bf16.mxu0 0
        %1503 = vmatmul.mubr.bf16.gmra.mrb[0].mxu0 %v1369
        %v1504 = vpop.f32.mrb[0].mxu0
        %v1505 = vadd.f32 0.0, %v1504
        %v1506 = vpop.f32.mrb[0].mxu0
        %v1507 = vpop.f32.mrb[0].mxu0
        %v1508 = vadd.f32 0.0, %v1507
        %v1509 = vpop.f32.mrb[0].mxu0
        %1510 = vmatprep.mubr.bf16.mxu0 0
        %1511 = vmatmul.mubr.bf16.gmra.mrb[0].mxu0 %v1372
        %v1512 = vpop.f32.mrb[0].mxu0
        %v1513 = vadd.f32 0.0, %v1512
        %v1514 = vpop.f32.mrb[0].mxu0
        %v1515 = vpop.f32.mrb[0].mxu0
        %v1516 = vadd.f32 0.0, %v1515
        %v1517 = vpop.f32.mrb[0].mxu0
        %1518 = vmatprep.mubr.bf16.mxu0 0
        %1519 = vmatmul.mubr.bf16.gmra.mrb[0].mxu0 %v1378
        %v1520 = vpop.f32.mrb[0].mxu0
        %v1521 = vadd.f32 0.0, %v1520
        %v1522 = vpop.f32.mrb[0].mxu0
        %v1523 = vpop.f32.mrb[0].mxu0
        %v1524 = vadd.f32 0.0, %v1523
        %v1525 = vpop.f32.mrb[0].mxu0
        %1526 = vmatprep.mubr.bf16.mxu0 0
        %1527 = vmatmul.mubr.bf16.gmra.mrb[0].mxu0 %v1381
        %v1528 = vpop.f32.mrb[0].mxu0
        %v1529 = vadd.f32 0.0, %v1528
        %v1530 = vpop.f32.mrb[0].mxu0
        %v1531 = vpop.f32.mrb[0].mxu0
        %v1532 = vpop.f32.mrb[0].mxu0
        %1533 = vdwg.mxu0
        %v1534 = vadd.f32 %v1274, %v1473
        %v1535 = vadd.f32 %v1277, %v1476
        %v1536 = vadd.f32 %v1282, %v1481
        %v1537 = vadd.f32 %v1285, %v1484
        %v1538 = vadd.f32 %v1290, %v1489
        %v1539 = vadd.f32 %v1293, %v1492
        %v1540 = vadd.f32 %v1298, %v1497
        %v1541 = vadd.f32 %v1301, %v1500
        %v1542 = vadd.f32 %v1306, %v1505
        %v1543 = vadd.f32 %v1309, %v1508
        %v1544 = vadd.f32 %v1314, %v1513
        %v1545 = vadd.f32 %v1317, %v1516
        %v1546 = vadd.f32 %v1322, %v1521
        %v1547 = vadd.f32 %v1325, %v1524
        %v1548 = vadd.f32 %v1330, %v1529
        %v1549 = vld [vmem:[#allocation2 + $0x8] sm:$0x80]
        %v1550 = vld [vmem:[#allocation2 + $0x10] sm:$0xff]
        %v1551 = vld [vmem:[#allocation2 + $0x18] sm:$0xff]
        %v1552 = vld [vmem:[#allocation2 + $0x20] sm:$0xff]
        %v1553 = vld [vmem:[#allocation2 + $0x28] sm:$0xff]
        %v1554 = vld [vmem:[#allocation2 + $0x30] sm:$0xff]
        %v1555 = vld [vmem:[#allocation2 + $0x38] sm:$0xff]
        %v1556 = vld [vmem:[#allocation2 + $0x40] sm:$0xff]
        %v1557 = vld [vmem:[#allocation2 + $0x48] sm:$0xf]
        %s1558 = scalar_lea.vmem %s2, 192
        %v1559 = vld [vmem:[%s1558] sm:$0xf]
        %v1560 = vld [vmem:[%s1558 + $0x4] sm:$0xf]
        %v1561 = vld [vmem:[%s1558 + $0x8] sm:$0xf]
        %v1562 = vld [vmem:[%s1558 + $0xc] sm:$0xf]
        %v1563 = vld [vmem:[%s1558 + $0x10] sm:$0xf]
        %v1564 = vld [vmem:[%s1558 + $0x14] sm:$0xf]
        %v1565 = vld [vmem:[%s1558 + $0x18] sm:$0xf]
        %v1566 = vld [vmem:[%s1558 + $0x1c] sm:$0xf]
        %v1567 = vld [vmem:[%s1558 + $0x20] sm:$0xf]
        %v1568 = vld [vmem:[%s1558 + $0x24] sm:$0xf]
        %v1569 = vld [vmem:[%s1558 + $0x28] sm:$0xf]
        %v1570 = vld [vmem:[%s1558 + $0x2c] sm:$0xf]
        %v1571 = vld [vmem:[%s1558 + $0x30] sm:$0xf]
        %v1572 = vld [vmem:[%s1558 + $0x34] sm:$0xf]
        %v1573 = vld [vmem:[%s1558 + $0x38] sm:$0xf]
        %v1574 = vld [vmem:[%s1558 + $0x3c] sm:$0xf]
        %v1576 = vshrl.u32 %v1549, 16
        %v1578 = vrot.slane %v1576, 7
        %v1580 = vshrl.u32 %v1550, 16
        %v1582 = vrot.slane %v1580, 7
        %v1583 = vshll.u32 %v1550, 16
        %v1585 = vor.u32 %v1582, %v1583
        %v1586 = vsel %vm1114, %v1578, %v1585
        %v1588 = vshrl.u32 %v1551, 16
        %v1590 = vrot.slane %v1588, 7
        %v1591 = vshll.u32 %v1551, 16
        %v1593 = vor.u32 %v1590, %v1591
        %v1594 = vsel %vm1114, %v1582, %v1593
        %v1596 = vshrl.u32 %v1552, 16
        %v1598 = vrot.slane %v1596, 7
        %v1599 = vshll.u32 %v1552, 16
        %v1601 = vor.u32 %v1598, %v1599
        %v1602 = vsel %vm1114, %v1590, %v1601
        %v1604 = vshrl.u32 %v1553, 16
        %v1606 = vrot.slane %v1604, 7
        %v1607 = vshll.u32 %v1553, 16
        %v1609 = vor.u32 %v1606, %v1607
        %v1610 = vsel %vm1114, %v1598, %v1609
        %v1612 = vshrl.u32 %v1554, 16
        %v1614 = vrot.slane %v1612, 7
        %v1615 = vshll.u32 %v1554, 16
        %v1617 = vor.u32 %v1614, %v1615
        %v1618 = vsel %vm1114, %v1606, %v1617
        %v1620 = vshrl.u32 %v1555, 16
        %v1622 = vrot.slane %v1620, 7
        %v1623 = vshll.u32 %v1555, 16
        %v1625 = vor.u32 %v1622, %v1623
        %v1626 = vsel %vm1114, %v1614, %v1625
        %v1628 = vshrl.u32 %v1556, 16
        %v1630 = vrot.slane %v1628, 7
        %v1631 = vshll.u32 %v1556, 16
        %v1633 = vor.u32 %v1630, %v1631
        %v1634 = vsel %vm1114, %v1622, %v1633
        %v1636 = vshrl.u32 %v1557, 16
        %v1638 = vrot.slane %v1636, 7
        %v1639 = vshll.u32 %v1557, 16
        %v1641 = vor.u32 %v1638, %v1639
        %v1642 = vsel %vm1114, %v1630, %v1641
        %v1667 = vunpack.c.l.b16 %v1559
        %v1668 = vunpack.c.l.b16 %v1560
        %v1669 = vunpack.c.l.b16 %v1561
        %v1670 = vunpack.c.l.b16 %v1562
        %v1671 = vunpack.c.l.b16 %v1563
        %v1672 = vunpack.c.l.b16 %v1564
        %v1673 = vunpack.c.l.b16 %v1565
        %v1674 = vunpack.c.l.b16 %v1566
        %v1675 = vunpack.c.l.b16 %v1567
        %v1676 = vunpack.c.l.b16 %v1568
        %v1677 = vunpack.c.l.b16 %v1569
        %v1678 = vunpack.c.l.b16 %v1570
        %v1679 = vunpack.c.l.b16 %v1571
        %v1680 = vunpack.c.l.b16 %v1572
        %v1681 = vunpack.c.l.b16 %v1573
        %v1682 = vunpack.c.l.b16 %v1574
        %v1683 = vpack.c.b16 %v1668, %v1667
        %v1684 = vpack.c.b16 %v1670, %v1669
        %v1685 = vpack.c.b16 %v1672, %v1671
        %v1686 = vpack.c.b16 %v1674, %v1673
        %v1687 = vpack.c.b16 %v1676, %v1675
        %v1688 = vpack.c.b16 %v1678, %v1677
        %v1689 = vpack.c.b16 %v1680, %v1679
        %v1690 = vpack.c.b16 %v1682, %v1681
        %1699 = vmatprep.subr.bf16.mxu0 0
        %1700 = vmatpush1.bf16.msra.mxu0 %v1683
        %1701 = vmatprep.subr.bf16.mxu0 0
        %1702 = vmatpush1.bf16.msra.mxu0 %v1684
        %1703 = vmatprep.subr.bf16.mxu0 0
        %1704 = vmatpush1.bf16.msra.mxu0 %v1685
        %1705 = vmatprep.subr.bf16.mxu0 0
        %1706 = vmatpush1.bf16.msra.mxu0 %v1686
        %1707 = vmatprep.subr.bf16.mxu0 0
        %1708 = vmatpush1.bf16.msra.mxu0 %v1687
        %1709 = vmatprep.subr.bf16.mxu0 0
        %1710 = vmatpush1.bf16.msra.mxu0 %v1688
        %1711 = vmatprep.subr.bf16.mxu0 0
        %1712 = vmatpush1.bf16.msra.mxu0 %v1689
        %1713 = vmatprep.subr.bf16.mxu0 0
        %1714 = vmatpush1.bf16.msra.mxu0 %v1690
        %1715 = vmatprep.subr.bf16.mxu0 0
        %1716 = vmatpush1.bf16.msra.mxu0 0
        %1717 = vmatprep.subr.bf16.mxu0 0
        %1718 = vmatpush1.bf16.msra.mxu0 0
        %1719 = vmatprep.subr.bf16.mxu0 0
        %1720 = vmatpush1.bf16.msra.mxu0 0
        %1721 = vmatprep.subr.bf16.mxu0 0
        %1722 = vmatpush1.bf16.msra.mxu0 0
        %1723 = vmatprep.subr.bf16.mxu0 0
        %1724 = vmatpush1.bf16.msra.mxu0 0
        %1725 = vmatprep.subr.bf16.mxu0 0
        %1726 = vmatpush1.bf16.msra.mxu0 0
        %1727 = vmatprep.subr.bf16.mxu0 0
        %1728 = vmatpush1.bf16.msra.mxu0 0
        %1729 = vmatprep.subr.bf16.mxu0 0
        %1730 = vmatpush1.bf16.msra.mxu0 0
        %1731 = vmatprep.mubr.bf16.mxu0 0
        %1732 = vmatmul.mubr.bf16.gmra.mrb[0].mxu0 %v1586
        %v1733 = vpop.f32.mrb[0].mxu0
        %v1734 = vadd.f32 0.0, %v1733
        %v1735 = vpop.f32.mrb[0].mxu0
        %v1736 = vpop.f32.mrb[0].mxu0
        %v1737 = vadd.f32 0.0, %v1736
        %v1738 = vpop.f32.mrb[0].mxu0
        %1739 = vmatprep.mubr.bf16.mxu0 0
        %1740 = vmatmul.mubr.bf16.gmra.mrb[0].mxu0 %v1594
        %v1741 = vpop.f32.mrb[0].mxu0
        %v1742 = vadd.f32 0.0, %v1741
        %v1743 = vpop.f32.mrb[0].mxu0
        %v1744 = vpop.f32.mrb[0].mxu0
        %v1745 = vadd.f32 0.0, %v1744
        %v1746 = vpop.f32.mrb[0].mxu0
        %1747 = vmatprep.mubr.bf16.mxu0 0
        %1748 = vmatmul.mubr.bf16.gmra.mrb[0].mxu0 %v1602
        %v1749 = vpop.f32.mrb[0].mxu0
        %v1750 = vadd.f32 0.0, %v1749
        %v1751 = vpop.f32.mrb[0].mxu0
        %v1752 = vpop.f32.mrb[0].mxu0
        %v1753 = vadd.f32 0.0, %v1752
        %v1754 = vpop.f32.mrb[0].mxu0
        %1755 = vmatprep.mubr.bf16.mxu0 0
        %1756 = vmatmul.mubr.bf16.gmra.mrb[0].mxu0 %v1610
        %v1757 = vpop.f32.mrb[0].mxu0
        %v1758 = vadd.f32 0.0, %v1757
        %v1759 = vpop.f32.mrb[0].mxu0
        %v1760 = vpop.f32.mrb[0].mxu0
        %v1761 = vadd.f32 0.0, %v1760
        %v1762 = vpop.f32.mrb[0].mxu0
        %1763 = vmatprep.mubr.bf16.mxu0 0
        %1764 = vmatmul.mubr.bf16.gmra.mrb[0].mxu0 %v1618
        %v1765 = vpop.f32.mrb[0].mxu0
        %v1766 = vadd.f32 0.0, %v1765
        %v1767 = vpop.f32.mrb[0].mxu0
        %v1768 = vpop.f32.mrb[0].mxu0
        %v1769 = vadd.f32 0.0, %v1768
        %v1770 = vpop.f32.mrb[0].mxu0
        %1771 = vmatprep.mubr.bf16.mxu0 0
        %1772 = vmatmul.mubr.bf16.gmra.mrb[0].mxu0 %v1626
        %v1773 = vpop.f32.mrb[0].mxu0
        %v1774 = vadd.f32 0.0, %v1773
        %v1775 = vpop.f32.mrb[0].mxu0
        %v1776 = vpop.f32.mrb[0].mxu0
        %v1777 = vadd.f32 0.0, %v1776
        %v1778 = vpop.f32.mrb[0].mxu0
        %1779 = vmatprep.mubr.bf16.mxu0 0
        %1780 = vmatmul.mubr.bf16.gmra.mrb[0].mxu0 %v1634
        %v1781 = vpop.f32.mrb[0].mxu0
        %v1782 = vadd.f32 0.0, %v1781
        %v1783 = vpop.f32.mrb[0].mxu0
        %v1784 = vpop.f32.mrb[0].mxu0
        %v1785 = vadd.f32 0.0, %v1784
        %v1786 = vpop.f32.mrb[0].mxu0
        %1787 = vmatprep.mubr.bf16.mxu0 0
        %1788 = vmatmul.mubr.bf16.gmra.mrb[0].mxu0 %v1642
        %v1789 = vpop.f32.mrb[0].mxu0
        %v1790 = vadd.f32 0.0, %v1789
        %v1791 = vpop.f32.mrb[0].mxu0
        %v1792 = vpop.f32.mrb[0].mxu0
        %v1793 = vpop.f32.mrb[0].mxu0
        %1794 = vdwg.mxu0
        %v1795 = vadd.f32 %v1534, %v1734
        %v1796 = vadd.f32 %v1535, %v1737
        %v1797 = vadd.f32 %v1536, %v1742
        %v1798 = vadd.f32 %v1537, %v1745
        %v1799 = vadd.f32 %v1538, %v1750
        %v1800 = vadd.f32 %v1539, %v1753
        %v1801 = vadd.f32 %v1540, %v1758
        %v1802 = vadd.f32 %v1541, %v1761
        %v1803 = vadd.f32 %v1542, %v1766
        %v1804 = vadd.f32 %v1543, %v1769
        %v1805 = vadd.f32 %v1544, %v1774
        %v1806 = vadd.f32 %v1545, %v1777
        %v1807 = vadd.f32 %v1546, %v1782
        %v1808 = vadd.f32 %v1547, %v1785
        %v1809 = vadd.f32 %v1548, %v1790
        %s1810 = scalar_lea.vmem %s2, 256
        %v1811 = vld [vmem:[%s1810] sm:$0xf]
        %v1812 = vld [vmem:[%s1810 + $0x4] sm:$0xf]
        %v1813 = vld [vmem:[%s1810 + $0x8] sm:$0xf]
        %v1814 = vld [vmem:[%s1810 + $0xc] sm:$0xf]
        %v1815 = vld [vmem:[%s1810 + $0x10] sm:$0xf]
        %v1816 = vld [vmem:[%s1810 + $0x14] sm:$0xf]
        %v1817 = vld [vmem:[%s1810 + $0x18] sm:$0xf]
        %v1818 = vld [vmem:[%s1810 + $0x1c] sm:$0xf]
        %v1819 = vld [vmem:[%s1810 + $0x20] sm:$0xf]
        %v1820 = vld [vmem:[%s1810 + $0x24] sm:$0xf]
        %v1821 = vld [vmem:[%s1810 + $0x28] sm:$0xf]
        %v1822 = vld [vmem:[%s1810 + $0x2c] sm:$0xf]
        %v1823 = vld [vmem:[%s1810 + $0x30] sm:$0xf]
        %v1824 = vld [vmem:[%s1810 + $0x34] sm:$0xf]
        %v1825 = vld [vmem:[%s1810 + $0x38] sm:$0xf]
        %v1826 = vld [vmem:[%s1810 + $0x3c] sm:$0xf]
        %v1843 = vunpack.c.l.b16 %v1811
        %v1844 = vunpack.c.l.b16 %v1812
        %v1845 = vunpack.c.l.b16 %v1813
        %v1846 = vunpack.c.l.b16 %v1814
        %v1847 = vunpack.c.l.b16 %v1815
        %v1848 = vunpack.c.l.b16 %v1816
        %v1849 = vunpack.c.l.b16 %v1817
        %v1850 = vunpack.c.l.b16 %v1818
        %v1851 = vunpack.c.l.b16 %v1819
        %v1852 = vunpack.c.l.b16 %v1820
        %v1853 = vunpack.c.l.b16 %v1821
        %v1854 = vunpack.c.l.b16 %v1822
        %v1855 = vunpack.c.l.b16 %v1823
        %v1856 = vunpack.c.l.b16 %v1824
        %v1857 = vunpack.c.l.b16 %v1825
        %v1858 = vunpack.c.l.b16 %v1826
        %v1859 = vpack.c.b16 %v1844, %v1843
        %v1860 = vpack.c.b16 %v1846, %v1845
        %v1861 = vpack.c.b16 %v1848, %v1847
        %v1862 = vpack.c.b16 %v1850, %v1849
        %v1863 = vpack.c.b16 %v1852, %v1851
        %v1864 = vpack.c.b16 %v1854, %v1853
        %v1865 = vpack.c.b16 %v1856, %v1855
        %v1866 = vpack.c.b16 %v1858, %v1857
        %1875 = vmatprep.subr.bf16.mxu0 0
        %1876 = vmatpush1.bf16.msra.mxu0 %v1859
        %1877 = vmatprep.subr.bf16.mxu0 0
        %1878 = vmatpush1.bf16.msra.mxu0 %v1860
        %1879 = vmatprep.subr.bf16.mxu0 0
        %1880 = vmatpush1.bf16.msra.mxu0 %v1861
        %1881 = vmatprep.subr.bf16.mxu0 0
        %1882 = vmatpush1.bf16.msra.mxu0 %v1862
        %1883 = vmatprep.subr.bf16.mxu0 0
        %1884 = vmatpush1.bf16.msra.mxu0 %v1863
        %1885 = vmatprep.subr.bf16.mxu0 0
        %1886 = vmatpush1.bf16.msra.mxu0 %v1864
        %1887 = vmatprep.subr.bf16.mxu0 0
        %1888 = vmatpush1.bf16.msra.mxu0 %v1865
        %1889 = vmatprep.subr.bf16.mxu0 0
        %1890 = vmatpush1.bf16.msra.mxu0 %v1866
        %1891 = vmatprep.subr.bf16.mxu0 0
        %1892 = vmatpush1.bf16.msra.mxu0 0
        %1893 = vmatprep.subr.bf16.mxu0 0
        %1894 = vmatpush1.bf16.msra.mxu0 0
        %1895 = vmatprep.subr.bf16.mxu0 0
        %1896 = vmatpush1.bf16.msra.mxu0 0
        %1897 = vmatprep.subr.bf16.mxu0 0
        %1898 = vmatpush1.bf16.msra.mxu0 0
        %1899 = vmatprep.subr.bf16.mxu0 0
        %1900 = vmatpush1.bf16.msra.mxu0 0
        %1901 = vmatprep.subr.bf16.mxu0 0
        %1902 = vmatpush1.bf16.msra.mxu0 0
        %1903 = vmatprep.subr.bf16.mxu0 0
        %1904 = vmatpush1.bf16.msra.mxu0 0
        %1905 = vmatprep.subr.bf16.mxu0 0
        %1906 = vmatpush1.bf16.msra.mxu0 0
        %1907 = vmatprep.mubr.bf16.mxu0 0
        %1908 = vmatmul.mubr.bf16.gmra.mrb[0].mxu0 %v1550
        %v1909 = vpop.f32.mrb[0].mxu0
        %v1910 = vadd.f32 0.0, %v1909
        %v1911 = vpop.f32.mrb[0].mxu0
        %v1912 = vpop.f32.mrb[0].mxu0
        %v1913 = vadd.f32 0.0, %v1912
        %v1914 = vpop.f32.mrb[0].mxu0
        %1915 = vmatprep.mubr.bf16.mxu0 0
        %1916 = vmatmul.mubr.bf16.gmra.mrb[0].mxu0 %v1551
        %v1917 = vpop.f32.mrb[0].mxu0
        %v1918 = vadd.f32 0.0, %v1917
        %v1919 = vpop.f32.mrb[0].mxu0
        %v1920 = vpop.f32.mrb[0].mxu0
        %v1921 = vadd.f32 0.0, %v1920
        %v1922 = vpop.f32.mrb[0].mxu0
        %1923 = vmatprep.mubr.bf16.mxu0 0
        %1924 = vmatmul.mubr.bf16.gmra.mrb[0].mxu0 %v1552
        %v1925 = vpop.f32.mrb[0].mxu0
        %v1926 = vadd.f32 0.0, %v1925
        %v1927 = vpop.f32.mrb[0].mxu0
        %v1928 = vpop.f32.mrb[0].mxu0
        %v1929 = vadd.f32 0.0, %v1928
        %v1930 = vpop.f32.mrb[0].mxu0
        %1931 = vmatprep.mubr.bf16.mxu0 0
        %1932 = vmatmul.mubr.bf16.gmra.mrb[0].mxu0 %v1553
        %v1933 = vpop.f32.mrb[0].mxu0
        %v1934 = vadd.f32 0.0, %v1933
        %v1935 = vpop.f32.mrb[0].mxu0
        %v1936 = vpop.f32.mrb[0].mxu0
        %v1937 = vadd.f32 0.0, %v1936
        %v1938 = vpop.f32.mrb[0].mxu0
        %1939 = vmatprep.mubr.bf16.mxu0 0
        %1940 = vmatmul.mubr.bf16.gmra.mrb[0].mxu0 %v1554
        %v1941 = vpop.f32.mrb[0].mxu0
        %v1942 = vadd.f32 0.0, %v1941
        %v1943 = vpop.f32.mrb[0].mxu0
        %v1944 = vpop.f32.mrb[0].mxu0
        %v1945 = vadd.f32 0.0, %v1944
        %v1946 = vpop.f32.mrb[0].mxu0
        %1947 = vmatprep.mubr.bf16.mxu0 0
        %1948 = vmatmul.mubr.bf16.gmra.mrb[0].mxu0 %v1555
        %v1949 = vpop.f32.mrb[0].mxu0
        %v1950 = vadd.f32 0.0, %v1949
        %v1951 = vpop.f32.mrb[0].mxu0
        %v1952 = vpop.f32.mrb[0].mxu0
        %v1953 = vadd.f32 0.0, %v1952
        %v1954 = vpop.f32.mrb[0].mxu0
        %1955 = vmatprep.mubr.bf16.mxu0 0
        %1956 = vmatmul.mubr.bf16.gmra.mrb[0].mxu0 %v1556
        %v1957 = vpop.f32.mrb[0].mxu0
        %v1958 = vadd.f32 0.0, %v1957
        %v1959 = vpop.f32.mrb[0].mxu0
        %v1960 = vpop.f32.mrb[0].mxu0
        %v1961 = vadd.f32 0.0, %v1960
        %v1962 = vpop.f32.mrb[0].mxu0
        %1963 = vmatprep.mubr.bf16.mxu0 0
        %1964 = vmatmul.mubr.bf16.gmra.mrb[0].mxu0 %v1557
        %v1965 = vpop.f32.mrb[0].mxu0
        %v1966 = vadd.f32 0.0, %v1965
        %v1967 = vpop.f32.mrb[0].mxu0
        %v1968 = vpop.f32.mrb[0].mxu0
        %v1969 = vpop.f32.mrb[0].mxu0
        %1970 = vdwg.mxu0
        %v1971 = vadd.f32 %v1795, %v1910
        %v1972 = vadd.f32 %v1796, %v1913
        %v1973 = vadd.f32 %v1797, %v1918
        %v1974 = vadd.f32 %v1798, %v1921
        %v1975 = vadd.f32 %v1799, %v1926
        %v1976 = vadd.f32 %v1800, %v1929
        %v1977 = vadd.f32 %v1801, %v1934
        %v1978 = vadd.f32 %v1802, %v1937
        %v1979 = vadd.f32 %v1803, %v1942
        %v1980 = vadd.f32 %v1804, %v1945
        %v1981 = vadd.f32 %v1805, %v1950
        %v1982 = vadd.f32 %v1806, %v1953
        %v1983 = vadd.f32 %v1807, %v1958
        %v1984 = vadd.f32 %v1808, %v1961
        %v1985 = vadd.f32 %v1809, %v1966
        %v1986 = vld [vmem:[#allocation2 + $0x48] sm:$0x1f]
        %s1987 = scalar_lea.vmem %s2, 320
        %v1988 = vld [vmem:[%s1987] sm:$0xf]
        %v1989 = vld [vmem:[%s1987 + $0x4] sm:$0xf]
        %v1990 = vld [vmem:[%s1987 + $0x8] sm:$0xf]
        %v1991 = vld [vmem:[%s1987 + $0xc] sm:$0xf]
        %v1992 = vld [vmem:[%s1987 + $0x10] sm:$0xf]
        %v1993 = vld [vmem:[%s1987 + $0x14] sm:$0xf]
        %v1994 = vld [vmem:[%s1987 + $0x18] sm:$0xf]
        %v1995 = vld [vmem:[%s1987 + $0x1c] sm:$0xf]
        %v1996 = vld [vmem:[%s1987 + $0x20] sm:$0xf]
        %v1997 = vld [vmem:[%s1987 + $0x24] sm:$0xf]
        %v1998 = vld [vmem:[%s1987 + $0x28] sm:$0xf]
        %v1999 = vld [vmem:[%s1987 + $0x2c] sm:$0xf]
        %v2000 = vld [vmem:[%s1987 + $0x30] sm:$0xf]
        %v2001 = vld [vmem:[%s1987 + $0x34] sm:$0xf]
        %v2002 = vld [vmem:[%s1987 + $0x38] sm:$0xf]
        %v2003 = vld [vmem:[%s1987 + $0x3c] sm:$0xf]
        %v2004 = vrot.slane %v1583, 1
        %v2005 = vor.u32 %v1580, %v2004
        %v2006 = vrot.slane %v1591, 1
        %v2007 = vsel %vm1353, %v2005, %v2006
        %v2008 = vor.u32 %v1588, %v2006
        %v2009 = vrot.slane %v1599, 1
        %v2010 = vsel %vm1353, %v2008, %v2009
        %v2011 = vor.u32 %v1596, %v2009
        %v2012 = vrot.slane %v1607, 1
        %v2013 = vsel %vm1353, %v2011, %v2012
        %v2014 = vor.u32 %v1604, %v2012
        %v2015 = vrot.slane %v1615, 1
        %v2016 = vsel %vm1353, %v2014, %v2015
        %v2017 = vor.u32 %v1612, %v2015
        %v2018 = vrot.slane %v1623, 1
        %v2019 = vsel %vm1353, %v2017, %v2018
        %v2020 = vor.u32 %v1620, %v2018
        %v2021 = vrot.slane %v1631, 1
        %v2022 = vsel %vm1353, %v2020, %v2021
        %v2023 = vor.u32 %v1628, %v2021
        %v2025 = vshll.u32 %v1986, 16
        %v2027 = vrot.slane %v2025, 1
        %v2028 = vsel %vm1353, %v2023, %v2027
        %v2029 = vshrl.u32 %v1986, 16
        %v2031 = vor.u32 %v2029, %v2027
        %v2056 = vunpack.c.l.b16 %v1988
        %v2057 = vunpack.c.l.b16 %v1989
        %v2058 = vunpack.c.l.b16 %v1990
        %v2059 = vunpack.c.l.b16 %v1991
        %v2060 = vunpack.c.l.b16 %v1992
        %v2061 = vunpack.c.l.b16 %v1993
        %v2062 = vunpack.c.l.b16 %v1994
        %v2063 = vunpack.c.l.b16 %v1995
        %v2064 = vunpack.c.l.b16 %v1996
        %v2065 = vunpack.c.l.b16 %v1997
        %v2066 = vunpack.c.l.b16 %v1998
        %v2067 = vunpack.c.l.b16 %v1999
        %v2068 = vunpack.c.l.b16 %v2000
        %v2069 = vunpack.c.l.b16 %v2001
        %v2070 = vunpack.c.l.b16 %v2002
        %v2071 = vunpack.c.l.b16 %v2003
        %v2072 = vpack.c.b16 %v2057, %v2056
        %v2073 = vpack.c.b16 %v2059, %v2058
        %v2074 = vpack.c.b16 %v2061, %v2060
        %v2075 = vpack.c.b16 %v2063, %v2062
        %v2076 = vpack.c.b16 %v2065, %v2064
        %v2077 = vpack.c.b16 %v2067, %v2066
        %v2078 = vpack.c.b16 %v2069, %v2068
        %v2079 = vpack.c.b16 %v2071, %v2070
        %2088 = vmatprep.subr.bf16.mxu0 0
        %2089 = vmatpush1.bf16.msra.mxu0 %v2072
        %2090 = vmatprep.subr.bf16.mxu0 0
        %2091 = vmatpush1.bf16.msra.mxu0 %v2073
        %2092 = vmatprep.subr.bf16.mxu0 0
        %2093 = vmatpush1.bf16.msra.mxu0 %v2074
        %2094 = vmatprep.subr.bf16.mxu0 0
        %2095 = vmatpush1.bf16.msra.mxu0 %v2075
        %2096 = vmatprep.subr.bf16.mxu0 0
        %2097 = vmatpush1.bf16.msra.mxu0 %v2076
        %2098 = vmatprep.subr.bf16.mxu0 0
        %2099 = vmatpush1.bf16.msra.mxu0 %v2077
        %2100 = vmatprep.subr.bf16.mxu0 0
        %2101 = vmatpush1.bf16.msra.mxu0 %v2078
        %2102 = vmatprep.subr.bf16.mxu0 0
        %2103 = vmatpush1.bf16.msra.mxu0 %v2079
        %2104 = vmatprep.subr.bf16.mxu0 0
        %2105 = vmatpush1.bf16.msra.mxu0 0
        %2106 = vmatprep.subr.bf16.mxu0 0
        %2107 = vmatpush1.bf16.msra.mxu0 0
        %2108 = vmatprep.subr.bf16.mxu0 0
        %2109 = vmatpush1.bf16.msra.mxu0 0
        %2110 = vmatprep.subr.bf16.mxu0 0
        %2111 = vmatpush1.bf16.msra.mxu0 0
        %2112 = vmatprep.subr.bf16.mxu0 0
        %2113 = vmatpush1.bf16.msra.mxu0 0
        %2114 = vmatprep.subr.bf16.mxu0 0
        %2115 = vmatpush1.bf16.msra.mxu0 0
        %2116 = vmatprep.subr.bf16.mxu0 0
        %2117 = vmatpush1.bf16.msra.mxu0 0
        %2118 = vmatprep.subr.bf16.mxu0 0
        %2119 = vmatpush1.bf16.msra.mxu0 0
        %2120 = vmatprep.mubr.bf16.mxu0 0
        %2121 = vmatmul.mubr.bf16.gmra.mrb[0].mxu0 %v2007
        %v2122 = vpop.f32.mrb[0].mxu0
        %v2123 = vadd.f32 0.0, %v2122
        %v2124 = vpop.f32.mrb[0].mxu0
        %v2125 = vpop.f32.mrb[0].mxu0
        %v2126 = vadd.f32 0.0, %v2125
        %v2127 = vpop.f32.mrb[0].mxu0
        %2128 = vmatprep.mubr.bf16.mxu0 0
        %2129 = vmatmul.mubr.bf16.gmra.mrb[0].mxu0 %v2010
        %v2130 = vpop.f32.mrb[0].mxu0
        %v2131 = vadd.f32 0.0, %v2130
        %v2132 = vpop.f32.mrb[0].mxu0
        %v2133 = vpop.f32.mrb[0].mxu0
        %v2134 = vadd.f32 0.0, %v2133
        %v2135 = vpop.f32.mrb[0].mxu0
        %2136 = vmatprep.mubr.bf16.mxu0 0
        %2137 = vmatmul.mubr.bf16.gmra.mrb[0].mxu0 %v2013
        %v2138 = vpop.f32.mrb[0].mxu0
        %v2139 = vadd.f32 0.0, %v2138
        %v2140 = vpop.f32.mrb[0].mxu0
        %v2141 = vpop.f32.mrb[0].mxu0
        %v2142 = vadd.f32 0.0, %v2141
        %v2143 = vpop.f32.mrb[0].mxu0
        %2144 = vmatprep.mubr.bf16.mxu0 0
        %2145 = vmatmul.mubr.bf16.gmra.mrb[0].mxu0 %v2016
        %v2146 = vpop.f32.mrb[0].mxu0
        %v2147 = vadd.f32 0.0, %v2146
        %v2148 = vpop.f32.mrb[0].mxu0
        %v2149 = vpop.f32.mrb[0].mxu0
        %v2150 = vadd.f32 0.0, %v2149
        %v2151 = vpop.f32.mrb[0].mxu0
        %2152 = vmatprep.mubr.bf16.mxu0 0
        %2153 = vmatmul.mubr.bf16.gmra.mrb[0].mxu0 %v2019
        %v2154 = vpop.f32.mrb[0].mxu0
        %v2155 = vadd.f32 0.0, %v2154
        %v2156 = vpop.f32.mrb[0].mxu0
        %v2157 = vpop.f32.mrb[0].mxu0
        %v2158 = vadd.f32 0.0, %v2157
        %v2159 = vpop.f32.mrb[0].mxu0
        %2160 = vmatprep.mubr.bf16.mxu0 0
        %2161 = vmatmul.mubr.bf16.gmra.mrb[0].mxu0 %v2022
        %v2162 = vpop.f32.mrb[0].mxu0
        %v2163 = vadd.f32 0.0, %v2162
        %v2164 = vpop.f32.mrb[0].mxu0
        %v2165 = vpop.f32.mrb[0].mxu0
        %v2166 = vadd.f32 0.0, %v2165
        %v2167 = vpop.f32.mrb[0].mxu0
        %2168 = vmatprep.mubr.bf16.mxu0 0
        %2169 = vmatmul.mubr.bf16.gmra.mrb[0].mxu0 %v2028
        %v2170 = vpop.f32.mrb[0].mxu0
        %v2171 = vadd.f32 0.0, %v2170
        %v2172 = vpop.f32.mrb[0].mxu0
        %v2173 = vpop.f32.mrb[0].mxu0
        %v2174 = vadd.f32 0.0, %v2173
        %v2175 = vpop.f32.mrb[0].mxu0
        %2176 = vmatprep.mubr.bf16.mxu0 0
        %2177 = vmatmul.mubr.bf16.gmra.mrb[0].mxu0 %v2031
        %v2178 = vpop.f32.mrb[0].mxu0
        %v2179 = vadd.f32 0.0, %v2178
        %v2180 = vpop.f32.mrb[0].mxu0
        %v2181 = vpop.f32.mrb[0].mxu0
        %v2182 = vpop.f32.mrb[0].mxu0
        %2183 = vdwg.mxu0
        %v2184 = vadd.f32 %v1971, %v2123
        %v2185 = vadd.f32 %v1972, %v2126
        %v2186 = vadd.f32 %v1973, %v2131
        %v2187 = vadd.f32 %v1974, %v2134
        %v2188 = vadd.f32 %v1975, %v2139
        %v2189 = vadd.f32 %v1976, %v2142
        %v2190 = vadd.f32 %v1977, %v2147
        %v2191 = vadd.f32 %v1978, %v2150
        %v2192 = vadd.f32 %v1979, %v2155
        %v2193 = vadd.f32 %v1980, %v2158
        %v2194 = vadd.f32 %v1981, %v2163
        %v2195 = vadd.f32 %v1982, %v2166
        %v2196 = vadd.f32 %v1983, %v2171
        %v2197 = vadd.f32 %v1984, %v2174
        %v2198 = vadd.f32 %v1985, %v2179
        %v2199 = vld [vmem:[#allocation2 + $0x10] sm:$0x80]
        %v2200 = vld [vmem:[#allocation2 + $0x18] sm:$0xff]
        %v2201 = vld [vmem:[#allocation2 + $0x20] sm:$0xff]
        %v2202 = vld [vmem:[#allocation2 + $0x28] sm:$0xff]
        %v2203 = vld [vmem:[#allocation2 + $0x30] sm:$0xff]
        %v2204 = vld [vmem:[#allocation2 + $0x38] sm:$0xff]
        %v2205 = vld [vmem:[#allocation2 + $0x40] sm:$0xff]
        %v2206 = vld [vmem:[#allocation2 + $0x48] sm:$0xff]
        %v2207 = vld [vmem:[#allocation2 + $0x50] sm:$0xf]
        %s2208 = scalar_lea.vmem %s2, 384
        %v2209 = vld [vmem:[%s2208] sm:$0xf]
        %v2210 = vld [vmem:[%s2208 + $0x4] sm:$0xf]
        %v2211 = vld [vmem:[%s2208 + $0x8] sm:$0xf]
        %v2212 = vld [vmem:[%s2208 + $0xc] sm:$0xf]
        %v2213 = vld [vmem:[%s2208 + $0x10] sm:$0xf]
        %v2214 = vld [vmem:[%s2208 + $0x14] sm:$0xf]
        %v2215 = vld [vmem:[%s2208 + $0x18] sm:$0xf]
        %v2216 = vld [vmem:[%s2208 + $0x1c] sm:$0xf]
        %v2217 = vld [vmem:[%s2208 + $0x20] sm:$0xf]
        %v2218 = vld [vmem:[%s2208 + $0x24] sm:$0xf]
        %v2219 = vld [vmem:[%s2208 + $0x28] sm:$0xf]
        %v2220 = vld [vmem:[%s2208 + $0x2c] sm:$0xf]
        %v2221 = vld [vmem:[%s2208 + $0x30] sm:$0xf]
        %v2222 = vld [vmem:[%s2208 + $0x34] sm:$0xf]
        %v2223 = vld [vmem:[%s2208 + $0x38] sm:$0xf]
        %v2224 = vld [vmem:[%s2208 + $0x3c] sm:$0xf]
        %v2226 = vshrl.u32 %v2199, 16
        %v2228 = vrot.slane %v2226, 7
        %v2230 = vshrl.u32 %v2200, 16
        %v2232 = vrot.slane %v2230, 7
        %v2233 = vshll.u32 %v2200, 16
        %v2235 = vor.u32 %v2232, %v2233
        %v2236 = vsel %vm1114, %v2228, %v2235
        %v2238 = vshrl.u32 %v2201, 16
        %v2240 = vrot.slane %v2238, 7
        %v2241 = vshll.u32 %v2201, 16
        %v2243 = vor.u32 %v2240, %v2241
        %v2244 = vsel %vm1114, %v2232, %v2243
        %v2246 = vshrl.u32 %v2202, 16
        %v2248 = vrot.slane %v2246, 7
        %v2249 = vshll.u32 %v2202, 16
        %v2251 = vor.u32 %v2248, %v2249
        %v2252 = vsel %vm1114, %v2240, %v2251
        %v2254 = vshrl.u32 %v2203, 16
        %v2256 = vrot.slane %v2254, 7
        %v2257 = vshll.u32 %v2203, 16
        %v2259 = vor.u32 %v2256, %v2257
        %v2260 = vsel %vm1114, %v2248, %v2259
        %v2262 = vshrl.u32 %v2204, 16
        %v2264 = vrot.slane %v2262, 7
        %v2265 = vshll.u32 %v2204, 16
        %v2267 = vor.u32 %v2264, %v2265
        %v2268 = vsel %vm1114, %v2256, %v2267
        %v2270 = vshrl.u32 %v2205, 16
        %v2272 = vrot.slane %v2270, 7
        %v2273 = vshll.u32 %v2205, 16
        %v2275 = vor.u32 %v2272, %v2273
        %v2276 = vsel %vm1114, %v2264, %v2275
        %v2278 = vshrl.u32 %v2206, 16
        %v2280 = vrot.slane %v2278, 7
        %v2281 = vshll.u32 %v2206, 16
        %v2283 = vor.u32 %v2280, %v2281
        %v2284 = vsel %vm1114, %v2272, %v2283
        %v2286 = vshrl.u32 %v2207, 16
        %v2288 = vrot.slane %v2286, 7
        %v2289 = vshll.u32 %v2207, 16
        %v2291 = vor.u32 %v2288, %v2289
        %v2292 = vsel %vm1114, %v2280, %v2291
        %v2317 = vunpack.c.l.b16 %v2209
        %v2318 = vunpack.c.l.b16 %v2210
        %v2319 = vunpack.c.l.b16 %v2211
        %v2320 = vunpack.c.l.b16 %v2212
        %v2321 = vunpack.c.l.b16 %v2213
        %v2322 = vunpack.c.l.b16 %v2214
        %v2323 = vunpack.c.l.b16 %v2215
        %v2324 = vunpack.c.l.b16 %v2216
        %v2325 = vunpack.c.l.b16 %v2217
        %v2326 = vunpack.c.l.b16 %v2218
        %v2327 = vunpack.c.l.b16 %v2219
        %v2328 = vunpack.c.l.b16 %v2220
        %v2329 = vunpack.c.l.b16 %v2221
        %v2330 = vunpack.c.l.b16 %v2222
        %v2331 = vunpack.c.l.b16 %v2223
        %v2332 = vunpack.c.l.b16 %v2224
        %v2333 = vpack.c.b16 %v2318, %v2317
        %v2334 = vpack.c.b16 %v2320, %v2319
        %v2335 = vpack.c.b16 %v2322, %v2321
        %v2336 = vpack.c.b16 %v2324, %v2323
        %v2337 = vpack.c.b16 %v2326, %v2325
        %v2338 = vpack.c.b16 %v2328, %v2327
        %v2339 = vpack.c.b16 %v2330, %v2329
        %v2340 = vpack.c.b16 %v2332, %v2331
        %2349 = vmatprep.subr.bf16.mxu0 0
        %2350 = vmatpush1.bf16.msra.mxu0 %v2333
        %2351 = vmatprep.subr.bf16.mxu0 0
        %2352 = vmatpush1.bf16.msra.mxu0 %v2334
        %2353 = vmatprep.subr.bf16.mxu0 0
        %2354 = vmatpush1.bf16.msra.mxu0 %v2335
        %2355 = vmatprep.subr.bf16.mxu0 0
        %2356 = vmatpush1.bf16.msra.mxu0 %v2336
        %2357 = vmatprep.subr.bf16.mxu0 0
        %2358 = vmatpush1.bf16.msra.mxu0 %v2337
        %2359 = vmatprep.subr.bf16.mxu0 0
        %2360 = vmatpush1.bf16.msra.mxu0 %v2338
        %2361 = vmatprep.subr.bf16.mxu0 0
        %2362 = vmatpush1.bf16.msra.mxu0 %v2339
        %2363 = vmatprep.subr.bf16.mxu0 0
        %2364 = vmatpush1.bf16.msra.mxu0 %v2340
        %2365 = vmatprep.subr.bf16.mxu0 0
        %2366 = vmatpush1.bf16.msra.mxu0 0
        %2367 = vmatprep.subr.bf16.mxu0 0
        %2368 = vmatpush1.bf16.msra.mxu0 0
        %2369 = vmatprep.subr.bf16.mxu0 0
        %2370 = vmatpush1.bf16.msra.mxu0 0
        %2371 = vmatprep.subr.bf16.mxu0 0
        %2372 = vmatpush1.bf16.msra.mxu0 0
        %2373 = vmatprep.subr.bf16.mxu0 0
        %2374 = vmatpush1.bf16.msra.mxu0 0
        %2375 = vmatprep.subr.bf16.mxu0 0
        %2376 = vmatpush1.bf16.msra.mxu0 0
        %2377 = vmatprep.subr.bf16.mxu0 0
        %2378 = vmatpush1.bf16.msra.mxu0 0
        %2379 = vmatprep.subr.bf16.mxu0 0
        %2380 = vmatpush1.bf16.msra.mxu0 0
        %2381 = vmatprep.mubr.bf16.mxu0 0
        %2382 = vmatmul.mubr.bf16.gmra.mrb[0].mxu0 %v2236
        %v2383 = vpop.f32.mrb[0].mxu0
        %v2384 = vadd.f32 0.0, %v2383
        %v2385 = vpop.f32.mrb[0].mxu0
        %v2386 = vpop.f32.mrb[0].mxu0
        %v2387 = vadd.f32 0.0, %v2386
        %v2388 = vpop.f32.mrb[0].mxu0
        %2389 = vmatprep.mubr.bf16.mxu0 0
        %2390 = vmatmul.mubr.bf16.gmra.mrb[0].mxu0 %v2244
        %v2391 = vpop.f32.mrb[0].mxu0
        %v2392 = vadd.f32 0.0, %v2391
        %v2393 = vpop.f32.mrb[0].mxu0
        %v2394 = vpop.f32.mrb[0].mxu0
        %v2395 = vadd.f32 0.0, %v2394
        %v2396 = vpop.f32.mrb[0].mxu0
        %2397 = vmatprep.mubr.bf16.mxu0 0
        %2398 = vmatmul.mubr.bf16.gmra.mrb[0].mxu0 %v2252
        %v2399 = vpop.f32.mrb[0].mxu0
        %v2400 = vadd.f32 0.0, %v2399
        %v2401 = vpop.f32.mrb[0].mxu0
        %v2402 = vpop.f32.mrb[0].mxu0
        %v2403 = vadd.f32 0.0, %v2402
        %v2404 = vpop.f32.mrb[0].mxu0
        %2405 = vmatprep.mubr.bf16.mxu0 0
        %2406 = vmatmul.mubr.bf16.gmra.mrb[0].mxu0 %v2260
        %v2407 = vpop.f32.mrb[0].mxu0
        %v2408 = vadd.f32 0.0, %v2407
        %v2409 = vpop.f32.mrb[0].mxu0
        %v2410 = vpop.f32.mrb[0].mxu0
        %v2411 = vadd.f32 0.0, %v2410
        %v2412 = vpop.f32.mrb[0].mxu0
        %2413 = vmatprep.mubr.bf16.mxu0 0
        %2414 = vmatmul.mubr.bf16.gmra.mrb[0].mxu0 %v2268
        %v2415 = vpop.f32.mrb[0].mxu0
        %v2416 = vadd.f32 0.0, %v2415
        %v2417 = vpop.f32.mrb[0].mxu0
        %v2418 = vpop.f32.mrb[0].mxu0
        %v2419 = vadd.f32 0.0, %v2418
        %v2420 = vpop.f32.mrb[0].mxu0
        %2421 = vmatprep.mubr.bf16.mxu0 0
        %2422 = vmatmul.mubr.bf16.gmra.mrb[0].mxu0 %v2276
        %v2423 = vpop.f32.mrb[0].mxu0
        %v2424 = vadd.f32 0.0, %v2423
        %v2425 = vpop.f32.mrb[0].mxu0
        %v2426 = vpop.f32.mrb[0].mxu0
        %v2427 = vadd.f32 0.0, %v2426
        %v2428 = vpop.f32.mrb[0].mxu0
        %2429 = vmatprep.mubr.bf16.mxu0 0
        %2430 = vmatmul.mubr.bf16.gmra.mrb[0].mxu0 %v2284
        %v2431 = vpop.f32.mrb[0].mxu0
        %v2432 = vadd.f32 0.0, %v2431
        %v2433 = vpop.f32.mrb[0].mxu0
        %v2434 = vpop.f32.mrb[0].mxu0
        %v2435 = vadd.f32 0.0, %v2434
        %v2436 = vpop.f32.mrb[0].mxu0
        %2437 = vmatprep.mubr.bf16.mxu0 0
        %2438 = vmatmul.mubr.bf16.gmra.mrb[0].mxu0 %v2292
        %v2439 = vpop.f32.mrb[0].mxu0
        %v2440 = vadd.f32 0.0, %v2439
        %v2441 = vpop.f32.mrb[0].mxu0
        %v2442 = vpop.f32.mrb[0].mxu0
        %v2443 = vpop.f32.mrb[0].mxu0
        %2444 = vdwg.mxu0
        %v2445 = vadd.f32 %v2184, %v2384
        %v2446 = vadd.f32 %v2185, %v2387
        %v2447 = vadd.f32 %v2186, %v2392
        %v2448 = vadd.f32 %v2187, %v2395
        %v2449 = vadd.f32 %v2188, %v2400
        %v2450 = vadd.f32 %v2189, %v2403
        %v2451 = vadd.f32 %v2190, %v2408
        %v2452 = vadd.f32 %v2191, %v2411
        %v2453 = vadd.f32 %v2192, %v2416
        %v2454 = vadd.f32 %v2193, %v2419
        %v2455 = vadd.f32 %v2194, %v2424
        %v2456 = vadd.f32 %v2195, %v2427
        %v2457 = vadd.f32 %v2196, %v2432
        %v2458 = vadd.f32 %v2197, %v2435
        %v2459 = vadd.f32 %v2198, %v2440
        %s2460 = scalar_lea.vmem %s2, 448
        %v2461 = vld [vmem:[%s2460] sm:$0xf]
        %v2462 = vld [vmem:[%s2460 + $0x4] sm:$0xf]
        %v2463 = vld [vmem:[%s2460 + $0x8] sm:$0xf]
        %v2464 = vld [vmem:[%s2460 + $0xc] sm:$0xf]
        %v2465 = vld [vmem:[%s2460 + $0x10] sm:$0xf]
        %v2466 = vld [vmem:[%s2460 + $0x14] sm:$0xf]
        %v2467 = vld [vmem:[%s2460 + $0x18] sm:$0xf]
        %v2468 = vld [vmem:[%s2460 + $0x1c] sm:$0xf]
        %v2469 = vld [vmem:[%s2460 + $0x20] sm:$0xf]
        %v2470 = vld [vmem:[%s2460 + $0x24] sm:$0xf]
        %v2471 = vld [vmem:[%s2460 + $0x28] sm:$0xf]
        %v2472 = vld [vmem:[%s2460 + $0x2c] sm:$0xf]
        %v2473 = vld [vmem:[%s2460 + $0x30] sm:$0xf]
        %v2474 = vld [vmem:[%s2460 + $0x34] sm:$0xf]
        %v2475 = vld [vmem:[%s2460 + $0x38] sm:$0xf]
        %v2476 = vld [vmem:[%s2460 + $0x3c] sm:$0xf]
        %v2493 = vunpack.c.l.b16 %v2461
        %v2494 = vunpack.c.l.b16 %v2462
        %v2495 = vunpack.c.l.b16 %v2463
        %v2496 = vunpack.c.l.b16 %v2464
        %v2497 = vunpack.c.l.b16 %v2465
        %v2498 = vunpack.c.l.b16 %v2466
        %v2499 = vunpack.c.l.b16 %v2467
        %v2500 = vunpack.c.l.b16 %v2468
        %v2501 = vunpack.c.l.b16 %v2469
        %v2502 = vunpack.c.l.b16 %v2470
        %v2503 = vunpack.c.l.b16 %v2471
        %v2504 = vunpack.c.l.b16 %v2472
        %v2505 = vunpack.c.l.b16 %v2473
        %v2506 = vunpack.c.l.b16 %v2474
        %v2507 = vunpack.c.l.b16 %v2475
        %v2508 = vunpack.c.l.b16 %v2476
        %v2509 = vpack.c.b16 %v2494, %v2493
        %v2510 = vpack.c.b16 %v2496, %v2495
        %v2511 = vpack.c.b16 %v2498, %v2497
        %v2512 = vpack.c.b16 %v2500, %v2499
        %v2513 = vpack.c.b16 %v2502, %v2501
        %v2514 = vpack.c.b16 %v2504, %v2503
        %v2515 = vpack.c.b16 %v2506, %v2505
        %v2516 = vpack.c.b16 %v2508, %v2507
        %2525 = vmatprep.subr.bf16.mxu0 0
        %2526 = vmatpush1.bf16.msra.mxu0 %v2509
        %2527 = vmatprep.subr.bf16.mxu0 0
        %2528 = vmatpush1.bf16.msra.mxu0 %v2510
        %2529 = vmatprep.subr.bf16.mxu0 0
        %2530 = vmatpush1.bf16.msra.mxu0 %v2511
        %2531 = vmatprep.subr.bf16.mxu0 0
        %2532 = vmatpush1.bf16.msra.mxu0 %v2512
        %2533 = vmatprep.subr.bf16.mxu0 0
        %2534 = vmatpush1.bf16.msra.mxu0 %v2513
        %2535 = vmatprep.subr.bf16.mxu0 0
        %2536 = vmatpush1.bf16.msra.mxu0 %v2514
        %2537 = vmatprep.subr.bf16.mxu0 0
        %2538 = vmatpush1.bf16.msra.mxu0 %v2515
        %2539 = vmatprep.subr.bf16.mxu0 0
        %2540 = vmatpush1.bf16.msra.mxu0 %v2516
        %2541 = vmatprep.subr.bf16.mxu0 0
        %2542 = vmatpush1.bf16.msra.mxu0 0
        %2543 = vmatprep.subr.bf16.mxu0 0
        %2544 = vmatpush1.bf16.msra.mxu0 0
        %2545 = vmatprep.subr.bf16.mxu0 0
        %2546 = vmatpush1.bf16.msra.mxu0 0
        %2547 = vmatprep.subr.bf16.mxu0 0
        %2548 = vmatpush1.bf16.msra.mxu0 0
        %2549 = vmatprep.subr.bf16.mxu0 0
        %2550 = vmatpush1.bf16.msra.mxu0 0
        %2551 = vmatprep.subr.bf16.mxu0 0
        %2552 = vmatpush1.bf16.msra.mxu0 0
        %2553 = vmatprep.subr.bf16.mxu0 0
        %2554 = vmatpush1.bf16.msra.mxu0 0
        %2555 = vmatprep.subr.bf16.mxu0 0
        %2556 = vmatpush1.bf16.msra.mxu0 0
        %2557 = vmatprep.mubr.bf16.mxu0 0
        %2558 = vmatmul.mubr.bf16.gmra.mrb[0].mxu0 %v2200
        %v2559 = vpop.f32.mrb[0].mxu0
        %v2560 = vadd.f32 0.0, %v2559
        %v2561 = vpop.f32.mrb[0].mxu0
        %v2562 = vpop.f32.mrb[0].mxu0
        %v2563 = vadd.f32 0.0, %v2562
        %v2564 = vpop.f32.mrb[0].mxu0
        %2565 = vmatprep.mubr.bf16.mxu0 0
        %2566 = vmatmul.mubr.bf16.gmra.mrb[0].mxu0 %v2201
        %v2567 = vpop.f32.mrb[0].mxu0
        %v2568 = vadd.f32 0.0, %v2567
        %v2569 = vpop.f32.mrb[0].mxu0
        %v2570 = vpop.f32.mrb[0].mxu0
        %v2571 = vadd.f32 0.0, %v2570
        %v2572 = vpop.f32.mrb[0].mxu0
        %2573 = vmatprep.mubr.bf16.mxu0 0
        %2574 = vmatmul.mubr.bf16.gmra.mrb[0].mxu0 %v2202
        %v2575 = vpop.f32.mrb[0].mxu0
        %v2576 = vadd.f32 0.0, %v2575
        %v2577 = vpop.f32.mrb[0].mxu0
        %v2578 = vpop.f32.mrb[0].mxu0
        %v2579 = vadd.f32 0.0, %v2578
        %v2580 = vpop.f32.mrb[0].mxu0
        %2581 = vmatprep.mubr.bf16.mxu0 0
        %2582 = vmatmul.mubr.bf16.gmra.mrb[0].mxu0 %v2203
        %v2583 = vpop.f32.mrb[0].mxu0
        %v2584 = vadd.f32 0.0, %v2583
        %v2585 = vpop.f32.mrb[0].mxu0
        %v2586 = vpop.f32.mrb[0].mxu0
        %v2587 = vadd.f32 0.0, %v2586
        %v2588 = vpop.f32.mrb[0].mxu0
        %2589 = vmatprep.mubr.bf16.mxu0 0
        %2590 = vmatmul.mubr.bf16.gmra.mrb[0].mxu0 %v2204
        %v2591 = vpop.f32.mrb[0].mxu0
        %v2592 = vadd.f32 0.0, %v2591
        %v2593 = vpop.f32.mrb[0].mxu0
        %v2594 = vpop.f32.mrb[0].mxu0
        %v2595 = vadd.f32 0.0, %v2594
        %v2596 = vpop.f32.mrb[0].mxu0
        %2597 = vmatprep.mubr.bf16.mxu0 0
        %2598 = vmatmul.mubr.bf16.gmra.mrb[0].mxu0 %v2205
        %v2599 = vpop.f32.mrb[0].mxu0
        %v2600 = vadd.f32 0.0, %v2599
        %v2601 = vpop.f32.mrb[0].mxu0
        %v2602 = vpop.f32.mrb[0].mxu0
        %v2603 = vadd.f32 0.0, %v2602
        %v2604 = vpop.f32.mrb[0].mxu0
        %2605 = vmatprep.mubr.bf16.mxu0 0
        %2606 = vmatmul.mubr.bf16.gmra.mrb[0].mxu0 %v2206
        %v2607 = vpop.f32.mrb[0].mxu0
        %v2608 = vadd.f32 0.0, %v2607
        %v2609 = vpop.f32.mrb[0].mxu0
        %v2610 = vpop.f32.mrb[0].mxu0
        %v2611 = vadd.f32 0.0, %v2610
        %v2612 = vpop.f32.mrb[0].mxu0
        %2613 = vmatprep.mubr.bf16.mxu0 0
        %2614 = vmatmul.mubr.bf16.gmra.mrb[0].mxu0 %v2207
        %v2615 = vpop.f32.mrb[0].mxu0
        %v2616 = vadd.f32 0.0, %v2615
        %v2617 = vpop.f32.mrb[0].mxu0
        %v2618 = vpop.f32.mrb[0].mxu0
        %v2619 = vpop.f32.mrb[0].mxu0
        %2620 = vdwg.mxu0
        %v2621 = vadd.f32 %v2445, %v2560
        %v2622 = vadd.f32 %v2446, %v2563
        %v2623 = vadd.f32 %v2447, %v2568
        %v2624 = vadd.f32 %v2448, %v2571
        %v2625 = vadd.f32 %v2449, %v2576
        %v2626 = vadd.f32 %v2450, %v2579
        %v2627 = vadd.f32 %v2451, %v2584
        %v2628 = vadd.f32 %v2452, %v2587
        %v2629 = vadd.f32 %v2453, %v2592
        %v2630 = vadd.f32 %v2454, %v2595
        %v2631 = vadd.f32 %v2455, %v2600
        %v2632 = vadd.f32 %v2456, %v2603
        %v2633 = vadd.f32 %v2457, %v2608
        %v2634 = vadd.f32 %v2458, %v2611
        %v2635 = vadd.f32 %v2459, %v2616
        %v2636 = vld [vmem:[#allocation2 + $0x50] sm:$0x1f]
        %s2637 = scalar_lea.vmem %s2, 512
        %v2638 = vld [vmem:[%s2637] sm:$0xf]
        %v2639 = vld [vmem:[%s2637 + $0x4] sm:$0xf]
        %v2640 = vld [vmem:[%s2637 + $0x8] sm:$0xf]
        %v2641 = vld [vmem:[%s2637 + $0xc] sm:$0xf]
        %v2642 = vld [vmem:[%s2637 + $0x10] sm:$0xf]
        %v2643 = vld [vmem:[%s2637 + $0x14] sm:$0xf]
        %v2644 = vld [vmem:[%s2637 + $0x18] sm:$0xf]
        %v2645 = vld [vmem:[%s2637 + $0x1c] sm:$0xf]
        %v2646 = vld [vmem:[%s2637 + $0x20] sm:$0xf]
        %v2647 = vld [vmem:[%s2637 + $0x24] sm:$0xf]
        %v2648 = vld [vmem:[%s2637 + $0x28] sm:$0xf]
        %v2649 = vld [vmem:[%s2637 + $0x2c] sm:$0xf]
        %v2650 = vld [vmem:[%s2637 + $0x30] sm:$0xf]
        %v2651 = vld [vmem:[%s2637 + $0x34] sm:$0xf]
        %v2652 = vld [vmem:[%s2637 + $0x38] sm:$0xf]
        %v2653 = vld [vmem:[%s2637 + $0x3c] sm:$0xf]
        %v2654 = vrot.slane %v2233, 1
        %v2655 = vor.u32 %v2230, %v2654
        %v2656 = vrot.slane %v2241, 1
        %v2657 = vsel %vm1353, %v2655, %v2656
        %v2658 = vor.u32 %v2238, %v2656
        %v2659 = vrot.slane %v2249, 1
        %v2660 = vsel %vm1353, %v2658, %v2659
        %v2661 = vor.u32 %v2246, %v2659
        %v2662 = vrot.slane %v2257, 1
        %v2663 = vsel %vm1353, %v2661, %v2662
        %v2664 = vor.u32 %v2254, %v2662
        %v2665 = vrot.slane %v2265, 1
        %v2666 = vsel %vm1353, %v2664, %v2665
        %v2667 = vor.u32 %v2262, %v2665
        %v2668 = vrot.slane %v2273, 1
        %v2669 = vsel %vm1353, %v2667, %v2668
        %v2670 = vor.u32 %v2270, %v2668
        %v2671 = vrot.slane %v2281, 1
        %v2672 = vsel %vm1353, %v2670, %v2671
        %v2673 = vor.u32 %v2278, %v2671
        %v2675 = vshll.u32 %v2636, 16
        %v2677 = vrot.slane %v2675, 1
        %v2678 = vsel %vm1353, %v2673, %v2677
        %v2679 = vshrl.u32 %v2636, 16
        %v2681 = vor.u32 %v2679, %v2677
        %v2706 = vunpack.c.l.b16 %v2638
        %v2707 = vunpack.c.l.b16 %v2639
        %v2708 = vunpack.c.l.b16 %v2640
        %v2709 = vunpack.c.l.b16 %v2641
        %v2710 = vunpack.c.l.b16 %v2642
        %v2711 = vunpack.c.l.b16 %v2643
        %v2712 = vunpack.c.l.b16 %v2644
        %v2713 = vunpack.c.l.b16 %v2645
        %v2714 = vunpack.c.l.b16 %v2646
        %v2715 = vunpack.c.l.b16 %v2647
        %v2716 = vunpack.c.l.b16 %v2648
        %v2717 = vunpack.c.l.b16 %v2649
        %v2718 = vunpack.c.l.b16 %v2650
        %v2719 = vunpack.c.l.b16 %v2651
        %v2720 = vunpack.c.l.b16 %v2652
        %v2721 = vunpack.c.l.b16 %v2653
        %v2722 = vpack.c.b16 %v2707, %v2706
        %v2723 = vpack.c.b16 %v2709, %v2708
        %v2724 = vpack.c.b16 %v2711, %v2710
        %v2725 = vpack.c.b16 %v2713, %v2712
        %v2726 = vpack.c.b16 %v2715, %v2714
        %v2727 = vpack.c.b16 %v2717, %v2716
        %v2728 = vpack.c.b16 %v2719, %v2718
        %v2729 = vpack.c.b16 %v2721, %v2720
        %2738 = vmatprep.subr.bf16.mxu0 0
        %2739 = vmatpush1.bf16.msra.mxu0 %v2722
        %2740 = vmatprep.subr.bf16.mxu0 0
        %2741 = vmatpush1.bf16.msra.mxu0 %v2723
        %2742 = vmatprep.subr.bf16.mxu0 0
        %2743 = vmatpush1.bf16.msra.mxu0 %v2724
        %2744 = vmatprep.subr.bf16.mxu0 0
        %2745 = vmatpush1.bf16.msra.mxu0 %v2725
        %2746 = vmatprep.subr.bf16.mxu0 0
        %2747 = vmatpush1.bf16.msra.mxu0 %v2726
        %2748 = vmatprep.subr.bf16.mxu0 0
        %2749 = vmatpush1.bf16.msra.mxu0 %v2727
        %2750 = vmatprep.subr.bf16.mxu0 0
        %2751 = vmatpush1.bf16.msra.mxu0 %v2728
        %2752 = vmatprep.subr.bf16.mxu0 0
        %2753 = vmatpush1.bf16.msra.mxu0 %v2729
        %2754 = vmatprep.subr.bf16.mxu0 0
        %2755 = vmatpush1.bf16.msra.mxu0 0
        %2756 = vmatprep.subr.bf16.mxu0 0
        %2757 = vmatpush1.bf16.msra.mxu0 0
        %2758 = vmatprep.subr.bf16.mxu0 0
        %2759 = vmatpush1.bf16.msra.mxu0 0
        %2760 = vmatprep.subr.bf16.mxu0 0
        %2761 = vmatpush1.bf16.msra.mxu0 0
        %2762 = vmatprep.subr.bf16.mxu0 0
        %2763 = vmatpush1.bf16.msra.mxu0 0
        %2764 = vmatprep.subr.bf16.mxu0 0
        %2765 = vmatpush1.bf16.msra.mxu0 0
        %2766 = vmatprep.subr.bf16.mxu0 0
        %2767 = vmatpush1.bf16.msra.mxu0 0
        %2768 = vmatprep.subr.bf16.mxu0 0
        %2769 = vmatpush1.bf16.msra.mxu0 0
        %2770 = vmatprep.mubr.bf16.mxu0 0
        %2771 = vmatmul.mubr.bf16.gmra.mrb[0].mxu0 %v2657
        %v2772 = vpop.f32.mrb[0].mxu0
        %v2773 = vadd.f32 0.0, %v2772
        %v2774 = vpop.f32.mrb[0].mxu0
        %v2775 = vpop.f32.mrb[0].mxu0
        %v2776 = vadd.f32 0.0, %v2775
        %v2777 = vpop.f32.mrb[0].mxu0
        %2778 = vmatprep.mubr.bf16.mxu0 0
        %2779 = vmatmul.mubr.bf16.gmra.mrb[0].mxu0 %v2660
        %v2780 = vpop.f32.mrb[0].mxu0
        %v2781 = vadd.f32 0.0, %v2780
        %v2782 = vpop.f32.mrb[0].mxu0
        %v2783 = vpop.f32.mrb[0].mxu0
        %v2784 = vadd.f32 0.0, %v2783
        %v2785 = vpop.f32.mrb[0].mxu0
        %2786 = vmatprep.mubr.bf16.mxu0 0
        %2787 = vmatmul.mubr.bf16.gmra.mrb[0].mxu0 %v2663
        %v2788 = vpop.f32.mrb[0].mxu0
        %v2789 = vadd.f32 0.0, %v2788
        %v2790 = vpop.f32.mrb[0].mxu0
        %v2791 = vpop.f32.mrb[0].mxu0
        %v2792 = vadd.f32 0.0, %v2791
        %v2793 = vpop.f32.mrb[0].mxu0
        %2794 = vmatprep.mubr.bf16.mxu0 0
        %2795 = vmatmul.mubr.bf16.gmra.mrb[0].mxu0 %v2666
        %v2796 = vpop.f32.mrb[0].mxu0
        %v2797 = vadd.f32 0.0, %v2796
        %v2798 = vpop.f32.mrb[0].mxu0
        %v2799 = vpop.f32.mrb[0].mxu0
        %v2800 = vadd.f32 0.0, %v2799
        %v2801 = vpop.f32.mrb[0].mxu0
        %2802 = vmatprep.mubr.bf16.mxu0 0
        %2803 = vmatmul.mubr.bf16.gmra.mrb[0].mxu0 %v2669
        %v2804 = vpop.f32.mrb[0].mxu0
        %v2805 = vadd.f32 0.0, %v2804
        %v2806 = vpop.f32.mrb[0].mxu0
        %v2807 = vpop.f32.mrb[0].mxu0
        %v2808 = vadd.f32 0.0, %v2807
        %v2809 = vpop.f32.mrb[0].mxu0
        %2810 = vmatprep.mubr.bf16.mxu0 0
        %2811 = vmatmul.mubr.bf16.gmra.mrb[0].mxu0 %v2672
        %v2812 = vpop.f32.mrb[0].mxu0
        %v2813 = vadd.f32 0.0, %v2812
        %v2814 = vpop.f32.mrb[0].mxu0
        %v2815 = vpop.f32.mrb[0].mxu0
        %v2816 = vadd.f32 0.0, %v2815
        %v2817 = vpop.f32.mrb[0].mxu0
        %2818 = vmatprep.mubr.bf16.mxu0 0
        %2819 = vmatmul.mubr.bf16.gmra.mrb[0].mxu0 %v2678
        %v2820 = vpop.f32.mrb[0].mxu0
        %v2821 = vadd.f32 0.0, %v2820
        %v2822 = vpop.f32.mrb[0].mxu0
        %v2823 = vpop.f32.mrb[0].mxu0
        %v2824 = vadd.f32 0.0, %v2823
        %v2825 = vpop.f32.mrb[0].mxu0
        %2826 = vmatprep.mubr.bf16.mxu0 0
        %2827 = vmatmul.mubr.bf16.gmra.mrb[0].mxu0 %v2681
        %v2828 = vpop.f32.mrb[0].mxu0
        %v2829 = vadd.f32 0.0, %v2828
        %v2830 = vpop.f32.mrb[0].mxu0
        %v2831 = vpop.f32.mrb[0].mxu0
        %v2832 = vpop.f32.mrb[0].mxu0
        %2833 = vdwg.mxu0
        %v2834 = vadd.f32 %v2621, %v2773
        %v2835 = vadd.f32 %v2622, %v2776
        %v2836 = vadd.f32 %v2623, %v2781
        %v2837 = vadd.f32 %v2624, %v2784
        %v2838 = vadd.f32 %v2625, %v2789
        %v2839 = vadd.f32 %v2626, %v2792
        %v2840 = vadd.f32 %v2627, %v2797
        %v2841 = vadd.f32 %v2628, %v2800
        %v2842 = vadd.f32 %v2629, %v2805
        %v2843 = vadd.f32 %v2630, %v2808
        %v2844 = vadd.f32 %v2631, %v2813
        %v2845 = vadd.f32 %v2632, %v2816
        %v2846 = vadd.f32 %v2633, %v2821
        %v2847 = vadd.f32 %v2634, %v2824
        %v2848 = vadd.f32 %v2635, %v2829
        %v2849 = vlaneseq
        %v2850 = vshrl.u32 %v2849, 7
        %v2851 = vsub.s32 0, %v2850
        %v2852 = vrot.slane %v383, %v2851
        %v2853 = vadd.f32 %v2834, %v2852
        %v2854 = vadd.f32 %v2835, %v2852
        %v2855 = vadd.f32 %v2836, %v2852
        %v2856 = vadd.f32 %v2837, %v2852
        %v2857 = vadd.f32 %v2838, %v2852
        %v2858 = vadd.f32 %v2839, %v2852
        %v2859 = vadd.f32 %v2840, %v2852
        %v2860 = vadd.f32 %v2841, %v2852
        %v2861 = vadd.f32 %v2842, %v2852
        %v2862 = vadd.f32 %v2843, %v2852
        %v2863 = vadd.f32 %v2844, %v2852
        %v2864 = vadd.f32 %v2845, %v2852
        %v2865 = vadd.f32 %v2846, %v2852
        %v2866 = vadd.f32 %v2847, %v2852
        %v2867 = vadd.f32 %v2848, %v2852
        %v2868 = vmax.f32 %v2853, 0.0
        %v2869 = vmax.f32 %v2854, 0.0
        %v2870 = vmax.f32 %v2855, 0.0
        %v2871 = vmax.f32 %v2856, 0.0
        %v2872 = vmax.f32 %v2857, 0.0
        %v2873 = vmax.f32 %v2858, 0.0
        %v2874 = vmax.f32 %v2859, 0.0
        %v2875 = vmax.f32 %v2860, 0.0
        %v2876 = vmax.f32 %v2861, 0.0
        %v2877 = vmax.f32 %v2862, 0.0
        %v2878 = vmax.f32 %v2863, 0.0
        %v2879 = vmax.f32 %v2864, 0.0
        %v2880 = vmax.f32 %v2865, 0.0
        %v2881 = vmax.f32 %v2866, 0.0
        %v2882 = vmax.f32 %v2867, 0.0
        %2883 = vst [vmem:[#allocation3] sm:$0xff] %v2868
        %2884 = vst [vmem:[#allocation3 + $0x8] sm:$0xff] %v2869
        %2885 = vst [vmem:[#allocation3 + $0x10] sm:$0xff] %v2870
        %2886 = vst [vmem:[#allocation3 + $0x18] sm:$0xff] %v2871
        %2887 = vst [vmem:[#allocation3 + $0x20] sm:$0xff] %v2872
        %2888 = vst [vmem:[#allocation3 + $0x28] sm:$0xff] %v2873
        %2889 = vst [vmem:[#allocation3 + $0x30] sm:$0xff] %v2874
        %2890 = vst [vmem:[#allocation3 + $0x38] sm:$0xff] %v2875
        %2891 = vst [vmem:[#allocation3 + $0x40] sm:$0xff] %v2876
        %2892 = vst [vmem:[#allocation3 + $0x48] sm:$0xff] %v2877
        %2893 = vst [vmem:[#allocation3 + $0x50] sm:$0xff] %v2878
        %2894 = vst [vmem:[#allocation3 + $0x58] sm:$0xff] %v2879
        %2895 = vst [vmem:[#allocation3 + $0x60] sm:$0xff] %v2880
        %2896 = vst [vmem:[#allocation3 + $0x68] sm:$0xff] %v2881
        %2897 = vst [vmem:[#allocation3 + $0x70] sm:$0xff] %v2882
        %v2898 = vld [vmem:[#allocation3] ss:$2 sm:$0xf]
        %s2899 = scalar_lea.vmem [#allocation3], 1
        %v2900 = vld [vmem:[%s2899] ss:$2 sm:$0xf]
        %v2901 = vmax.f32 %v2898, %v2900
        %s2902 = scalar_lea.vmem [#allocation3], 16
        %v2903 = vld [vmem:[%s2902] ss:$2 sm:$0xf]
        %s2904 = scalar_lea.vmem [#allocation3], 17
        %v2905 = vld [vmem:[%s2904] ss:$2 sm:$0xf]
        %v2906 = vmax.f32 %v2903, %v2905
        %v2907 = vmax.f32 %v2901, %v2906
        %s2908 = scalar_lea.vmem [#allocation3], 32
        %v2909 = vld [vmem:[%s2908] ss:$2 sm:$0xf]
        %s2910 = scalar_lea.vmem [#allocation3], 33
        %v2911 = vld [vmem:[%s2910] ss:$2 sm:$0xf]
        %v2912 = vmax.f32 %v2909, %v2911
        %s2913 = scalar_lea.vmem [#allocation3], 48
        %v2914 = vld [vmem:[%s2913] ss:$2 sm:$0xf]
        %s2915 = scalar_lea.vmem [#allocation3], 49
        %v2916 = vld [vmem:[%s2915] ss:$2 sm:$0xf]
        %v2917 = vmax.f32 %v2914, %v2916
        %v2918 = vmax.f32 %v2912, %v2917
        %s2919 = scalar_lea.vmem [#allocation3], 64
        %v2920 = vld [vmem:[%s2919] ss:$2 sm:$0xf]
        %s2921 = scalar_lea.vmem [#allocation3], 65
        %v2922 = vld [vmem:[%s2921] ss:$2 sm:$0xf]
        %v2923 = vmax.f32 %v2920, %v2922
        %s2924 = scalar_lea.vmem [#allocation3], 80
        %v2925 = vld [vmem:[%s2924] ss:$2 sm:$0xf]
        %s2926 = scalar_lea.vmem [#allocation3], 81
        %v2927 = vld [vmem:[%s2926] ss:$2 sm:$0xf]
        %v2928 = vmax.f32 %v2925, %v2927
        %v2929 = vmax.f32 %v2923, %v2928
        %s2930 = scalar_lea.vmem [#allocation3], 96
        %v2931 = vld [vmem:[%s2930] ss:$2 sm:$0xf]
        %s2932 = scalar_lea.vmem [#allocation3], 97
        %v2933 = vld [vmem:[%s2932] ss:$2 sm:$0xf]
        %v2934 = vmax.f32 %v2931, %v2933
        %s2935 = scalar_lea.vmem [#allocation3], 112
        %v2936 = vld [vmem:[%s2935] ss:$2 sm:$0xf]
        %s2937 = scalar_lea.vmem [#allocation3], 113
        %v2938 = vld [vmem:[%s2937] ss:$2 sm:$0xf]
        %v2939 = vmax.f32 %v2936, %v2938
        %v2940 = vmax.f32 %v2934, %v2939
        %v2942 = vrot.slane %v2918, 4
        %v2945 = vrot.slane %v2940, 4
        %v2947 = vsel %vm887, %v2907, %v2942
        %v2948 = vsel %vm887, %v2929, %v2945
        %v2949 = vpack.c.bf16 %v2948, %v2947
        %v2950 = vlaneseq
        %v2951 = vshrl.u32 %v2950, 7
        %v2952 = vsub.s32 0, %v2951
        %v2953 = vrot.slane %v384, %v2952
        %v2970 = vunpack.c.l.b16 %v334
        %v2971 = vunpack.c.l.b16 %v335
        %v2972 = vunpack.c.l.b16 %v336
        %v2973 = vunpack.c.l.b16 %v337
        %v2974 = vunpack.c.l.b16 %v338
        %v2975 = vunpack.c.l.b16 %v339
        %v2976 = vunpack.c.l.b16 %v340
        %v2977 = vunpack.c.l.b16 %v341
        %v2978 = vunpack.c.l.b16 %v342
        %v2979 = vunpack.c.l.b16 %v343
        %v2980 = vunpack.c.l.b16 %v344
        %v2981 = vunpack.c.l.b16 %v345
        %v2982 = vunpack.c.l.b16 %v346
        %v2983 = vunpack.c.l.b16 %v347
        %v2984 = vunpack.c.l.b16 %v348
        %v2985 = vunpack.c.l.b16 %v349
        %v2986 = vpack.c.b16 %v2971, %v2970
        %v2987 = vpack.c.b16 %v2973, %v2972
        %v2988 = vpack.c.b16 %v2975, %v2974
        %v2989 = vpack.c.b16 %v2977, %v2976
        %v2990 = vpack.c.b16 %v2979, %v2978
        %v2991 = vpack.c.b16 %v2981, %v2980
        %v2992 = vpack.c.b16 %v2983, %v2982
        %v2993 = vpack.c.b16 %v2985, %v2984
        %3002 = vmatprep.subr.bf16.mxu0 0
        %3003 = vmatpush1.bf16.msra.mxu0 %v2986
        %3004 = vmatprep.subr.bf16.mxu0 0
        %3005 = vmatpush1.bf16.msra.mxu0 %v2987
        %3006 = vmatprep.subr.bf16.mxu0 0
        %3007 = vmatpush1.bf16.msra.mxu0 %v2988
        %3008 = vmatprep.subr.bf16.mxu0 0
        %3009 = vmatpush1.bf16.msra.mxu0 %v2989
        %3010 = vmatprep.subr.bf16.mxu0 0
        %3011 = vmatpush1.bf16.msra.mxu0 %v2990
        %3012 = vmatprep.subr.bf16.mxu0 0
        %3013 = vmatpush1.bf16.msra.mxu0 %v2991
        %3014 = vmatprep.subr.bf16.mxu0 0
        %3015 = vmatpush1.bf16.msra.mxu0 %v2992
        %3016 = vmatprep.subr.bf16.mxu0 0
        %3017 = vmatpush1.bf16.msra.mxu0 %v2993
        %3018 = vmatprep.subr.bf16.mxu0 0
        %3019 = vmatpush1.bf16.msra.mxu0 0
        %3020 = vmatprep.subr.bf16.mxu0 0
        %3021 = vmatpush1.bf16.msra.mxu0 0
        %3022 = vmatprep.subr.bf16.mxu0 0
        %3023 = vmatpush1.bf16.msra.mxu0 0
        %3024 = vmatprep.subr.bf16.mxu0 0
        %3025 = vmatpush1.bf16.msra.mxu0 0
        %3026 = vmatprep.subr.bf16.mxu0 0
        %3027 = vmatpush1.bf16.msra.mxu0 0
        %3028 = vmatprep.subr.bf16.mxu0 0
        %3029 = vmatpush1.bf16.msra.mxu0 0
        %3030 = vmatprep.subr.bf16.mxu0 0
        %3031 = vmatpush1.bf16.msra.mxu0 0
        %3032 = vmatprep.subr.bf16.mxu0 0
        %3033 = vmatpush1.bf16.msra.mxu0 0
        %3034 = vmatprep.mubr.bf16.mxu0 0
        %3035 = vmatmul.mubr.bf16.gmra.mrb[0].mxu0 %v2949
        %v3036 = vpop.f32.mrb[0].mxu0
        %v3037 = vadd.f32 %v2953, %v3036
        %v3038 = vpop.f32.mrb[0].mxu0
        %v3039 = vpop.f32.mrb[0].mxu0
        %v3040 = vadd.f32 %v2953, %v3039
        %v3041 = vpop.f32.mrb[0].mxu0
        %3042 = vdwg.mxu0
        %v3043 = vmax.f32 %v3037, 0.0
        %v3044 = vmax.f32 %v3040, 0.0
        %v3045 = vpack.c.bf16 %v3044, %v3043
        %v3046 = vlaneseq
        %v3047 = vshrl.u32 %v3046, 7
        %v3048 = vsub.s32 0, %v3047
        %v3049 = vrot.slane %v385, %v3048
        %v3066 = vunpack.c.l.b16 %v350
        %v3067 = vunpack.c.l.b16 %v351
        %v3068 = vunpack.c.l.b16 %v352
        %v3069 = vunpack.c.l.b16 %v353
        %v3070 = vunpack.c.l.b16 %v354
        %v3071 = vunpack.c.l.b16 %v355
        %v3072 = vunpack.c.l.b16 %v356
        %v3073 = vunpack.c.l.b16 %v357
        %v3074 = vunpack.c.l.b16 %v358
        %v3075 = vunpack.c.l.b16 %v359
        %v3076 = vunpack.c.l.b16 %v360
        %v3077 = vunpack.c.l.b16 %v361
        %v3078 = vunpack.c.l.b16 %v362
        %v3079 = vunpack.c.l.b16 %v363
        %v3080 = vunpack.c.l.b16 %v364
        %v3081 = vunpack.c.l.b16 %v365
        %v3082 = vpack.c.b16 %v3067, %v3066
        %v3083 = vpack.c.b16 %v3069, %v3068
        %v3084 = vpack.c.b16 %v3071, %v3070
        %v3085 = vpack.c.b16 %v3073, %v3072
        %v3086 = vpack.c.b16 %v3075, %v3074
        %v3087 = vpack.c.b16 %v3077, %v3076
        %v3088 = vpack.c.b16 %v3079, %v3078
        %v3089 = vpack.c.b16 %v3081, %v3080
        %3098 = vmatprep.subr.bf16.mxu0 0
        %3099 = vmatpush1.bf16.msra.mxu0 %v3082
        %3100 = vmatprep.subr.bf16.mxu0 0
        %3101 = vmatpush1.bf16.msra.mxu0 %v3083
        %3102 = vmatprep.subr.bf16.mxu0 0
        %3103 = vmatpush1.bf16.msra.mxu0 %v3084
        %3104 = vmatprep.subr.bf16.mxu0 0
        %3105 = vmatpush1.bf16.msra.mxu0 %v3085
        %3106 = vmatprep.subr.bf16.mxu0 0
        %3107 = vmatpush1.bf16.msra.mxu0 %v3086
        %3108 = vmatprep.subr.bf16.mxu0 0
        %3109 = vmatpush1.bf16.msra.mxu0 %v3087
        %3110 = vmatprep.subr.bf16.mxu0 0
        %3111 = vmatpush1.bf16.msra.mxu0 %v3088
        %3112 = vmatprep.subr.bf16.mxu0 0
        %3113 = vmatpush1.bf16.msra.mxu0 %v3089
        %3114 = vmatprep.subr.bf16.mxu0 0
        %3115 = vmatpush1.bf16.msra.mxu0 0
        %3116 = vmatprep.subr.bf16.mxu0 0
        %3117 = vmatpush1.bf16.msra.mxu0 0
        %3118 = vmatprep.subr.bf16.mxu0 0
        %3119 = vmatpush1.bf16.msra.mxu0 0
        %3120 = vmatprep.subr.bf16.mxu0 0
        %3121 = vmatpush1.bf16.msra.mxu0 0
        %3122 = vmatprep.subr.bf16.mxu0 0
        %3123 = vmatpush1.bf16.msra.mxu0 0
        %3124 = vmatprep.subr.bf16.mxu0 0
        %3125 = vmatpush1.bf16.msra.mxu0 0
        %3126 = vmatprep.subr.bf16.mxu0 0
        %3127 = vmatpush1.bf16.msra.mxu0 0
        %3128 = vmatprep.subr.bf16.mxu0 0
        %3129 = vmatpush1.bf16.msra.mxu0 0
        %3130 = vmatprep.mubr.bf16.mxu0 0
        %3131 = vmatmul.mubr.bf16.gmra.mrb[0].mxu0 %v3045
        %v3132 = vpop.f32.mrb[0].mxu0
        %v3133 = vadd.f32 %v3049, %v3132
        %v3134 = vpop.f32.mrb[0].mxu0
        %v3135 = vpop.f32.mrb[0].mxu0
        %v3136 = vadd.f32 %v3049, %v3135
        %v3137 = vpop.f32.mrb[0].mxu0
        %3138 = vdwg.mxu0
        %3139 = vst [vmem:[%s306] sm:$0xff] %v3133
        %3140 = vst [vmem:[%s306 + $0x8] sm:$0xff] %v3136
        %v3141 = vlaneseq
        %v3142 = vshrl.u32 %v3141, 7
        %v3143 = vsub.s32 0, %v3142
        %v3144 = vrot.slane %v386, %v3143
        %v3161 = vunpack.c.l.b16 %v366
        %v3162 = vunpack.c.l.b16 %v367
        %v3163 = vunpack.c.l.b16 %v368
        %v3164 = vunpack.c.l.b16 %v369
        %v3165 = vunpack.c.l.b16 %v370
        %v3166 = vunpack.c.l.b16 %v371
        %v3167 = vunpack.c.l.b16 %v372
        %v3168 = vunpack.c.l.b16 %v373
        %v3169 = vunpack.c.l.b16 %v374
        %v3170 = vunpack.c.l.b16 %v375
        %v3171 = vunpack.c.l.b16 %v376
        %v3172 = vunpack.c.l.b16 %v377
        %v3173 = vunpack.c.l.b16 %v378
        %v3174 = vunpack.c.l.b16 %v379
        %v3175 = vunpack.c.l.b16 %v380
        %v3176 = vunpack.c.l.b16 %v381
        %v3177 = vpack.c.b16 %v3162, %v3161
        %v3178 = vpack.c.b16 %v3164, %v3163
        %v3179 = vpack.c.b16 %v3166, %v3165
        %v3180 = vpack.c.b16 %v3168, %v3167
        %v3181 = vpack.c.b16 %v3170, %v3169
        %v3182 = vpack.c.b16 %v3172, %v3171
        %v3183 = vpack.c.b16 %v3174, %v3173
        %v3184 = vpack.c.b16 %v3176, %v3175
        %3193 = vmatprep.subr.bf16.mxu0 0
        %3194 = vmatpush1.bf16.msra.mxu0 %v3177
        %3195 = vmatprep.subr.bf16.mxu0 0
        %3196 = vmatpush1.bf16.msra.mxu0 %v3178
        %3197 = vmatprep.subr.bf16.mxu0 0
        %3198 = vmatpush1.bf16.msra.mxu0 %v3179
        %3199 = vmatprep.subr.bf16.mxu0 0
        %3200 = vmatpush1.bf16.msra.mxu0 %v3180
        %3201 = vmatprep.subr.bf16.mxu0 0
        %3202 = vmatpush1.bf16.msra.mxu0 %v3181
        %3203 = vmatprep.subr.bf16.mxu0 0
        %3204 = vmatpush1.bf16.msra.mxu0 %v3182
        %3205 = vmatprep.subr.bf16.mxu0 0
        %3206 = vmatpush1.bf16.msra.mxu0 %v3183
        %3207 = vmatprep.subr.bf16.mxu0 0
        %3208 = vmatpush1.bf16.msra.mxu0 %v3184
        %3209 = vmatprep.subr.bf16.mxu0 0
        %3210 = vmatpush1.bf16.msra.mxu0 0
        %3211 = vmatprep.subr.bf16.mxu0 0
        %3212 = vmatpush1.bf16.msra.mxu0 0
        %3213 = vmatprep.subr.bf16.mxu0 0
        %3214 = vmatpush1.bf16.msra.mxu0 0
        %3215 = vmatprep.subr.bf16.mxu0 0
        %3216 = vmatpush1.bf16.msra.mxu0 0
        %3217 = vmatprep.subr.bf16.mxu0 0
        %3218 = vmatpush1.bf16.msra.mxu0 0
        %3219 = vmatprep.subr.bf16.mxu0 0
        %3220 = vmatpush1.bf16.msra.mxu0 0
        %3221 = vmatprep.subr.bf16.mxu0 0
        %3222 = vmatpush1.bf16.msra.mxu0 0
        %3223 = vmatprep.subr.bf16.mxu0 0
        %3224 = vmatpush1.bf16.msra.mxu0 0
        %3225 = vmatprep.mubr.bf16.mxu0 0
        %3226 = vmatmul.mubr.bf16.gmra.mrb[0].mxu0 %v3045
        %v3227 = vpop.f32.mrb[0].mxu0
        %v3228 = vadd.f32 %v3144, %v3227
        %v3229 = vpop.f32.mrb[0].mxu0
        %v3230 = vpop.f32.mrb[0].mxu0
        %v3231 = vadd.f32 %v3144, %v3230
        %v3232 = vpop.f32.mrb[0].mxu0
        %3233 = vdwg.mxu0
        %3234 = vst [vmem:[%s316] sm:$0xff] %v3228
        %3235 = vst [vmem:[%s316 + $0x8] sm:$0xff] %v3231
        %p3236 = scmp.lt.s32.totalorder %s23, 1
        %s3237 = scalar_select %p3236, %s23, 1
        %s3238 = smul.addr %s3237, 2
        %s3239 = smul.addr %s3238, 8
        %s3240 = scalar_lea.vmem %s7, %s3239
        %s3241 = sand.u32 %s209, 1
        %s3242 = scalar_lea.sflag [#allocation5], %s3241
        %s3243 = sand.u32 %s209, 1
        %s3244 = smul.addr %s3243, 16
        %s3245 = scalar_lea.vmem [#allocation4], %s3244
        // Predicated region
        $region49: #{cnn_model_forward.1} parent=47 // pred_check
          %p3246 = pneg %p193
        $region50: #{cnn_model_forward.1} parent=47 // pred_check_branch
          %3248 = sbr.rel (%p3246) target = $region52
        $region51: #{cnn_model_forward.1} parent=47 // pred_region
          _
        $region52: #{cnn_model_forward.1} parent=47 // pred_fallthru
          _
        // Predicated region
        $region53: #{cnn_model_forward.1} parent=47 // pred_check
          %p3249 = pneg %p219
        $region54: #{cnn_model_forward.1} parent=47 // pred_check_branch
          %3251 = sbr.rel (%p3249) target = $region56
        $region55: #{cnn_model_forward.1} parent=47 // pred_region
          %s3253 = ssub.s32 256, 256
          %3254 = vsyncadd %s3242, %s3253
          %s3255 = smul.addr %s23, 2
          %s3256 = smul.addr %s3255, 128
          %s3257 = scalar_lea.hbm %s8, %s3256
          %s3258 = sshll.u32 %s3245, 4
          %s3259 = int_to_ptr.vmem [resolvable:$true] %s3258
          %3264 = dma.vmem_to_hbm [thread:$0]  %s3259, 256, %s3257, %s3242, 128, 128, 8
        $region56: #{cnn_model_forward.1} parent=47 // pred_fallthru
          _
      $region48: #{cnn_model_forward.1} parent=5 // pred_fallthru
        _
      %p3265 = scmp.le.s32.totalorder 2, %s18
      // Predicated region
      $region57: #{cnn_model_forward.1} parent=5 // pred_check
        %p3266 = pneg %p3265
      $region58: #{cnn_model_forward.1} parent=5 // pred_check_branch
        %3268 = sbr.rel (%p3266) target = $region60
      $region59: #{cnn_model_forward.1} parent=5 // pred_region
        %s3269 = ssub.s32 %s18, 2
        // Predicated region
        $region61: #{cnn_model_forward.1} parent=59 // pred_check
          %p3270 = pneg %p199
        $region62: #{cnn_model_forward.1} parent=59 // pred_check_branch
          %3272 = sbr.rel (%p3270) target = $region64
        $region63: #{cnn_model_forward.1} parent=59 // pred_region
          %p3273 = scmp.lt.s32.totalorder %s24, 1
          %s3274 = scalar_select %p3273, %s24, 1
          %s3275 = smul.addr %s3274, 2
          %s3276 = smul.addr %s3275, 8
          %s3277 = scalar_lea.vmem %s7, %s3276
        $region64: #{cnn_model_forward.1} parent=59 // pred_fallthru
          _
        // Predicated region
        $region65: #{cnn_model_forward.1} parent=59 // pred_check
          %p3278 = pneg %p225
        $region66: #{cnn_model_forward.1} parent=59 // pred_check_branch
          %3280 = sbr.rel (%p3278) target = $region68
        $region67: #{cnn_model_forward.1} parent=59 // pred_region
          %s3281 = sand.u32 %s210, 1
          %s3282 = scalar_lea.sflag [#allocation5], %s3281
          %s3283 = sand.u32 %s210, 1
          %s3284 = smul.addr %s3283, 16
          %s3285 = scalar_lea.vmem [#allocation4], %s3284
          %3286 = dma.done %s3282, 256
        $region68: #{cnn_model_forward.1} parent=59 // pred_fallthru
          _
      $region60: #{cnn_model_forward.1} parent=5 // pred_fallthru
        _
    $region6: #{cnn_model_forward.1} parent=1 // loop_footer
      %s22 = sadd.s32 1, %s18
    $region7: #{cnn_model_forward.1} parent=1 // loop_footer_branch
      %17 = sbr.rel target = $region3
    $region8: #{cnn_model_forward.1} parent=1 // loop_exit
      _
    %3287 = vsyncpa [#allocation5], 1
    %s3288 = scalar_lea.sflag [#allocation5], 1
    %3289 = vsyncpa %s3288, 1

</llo_original>
